<compile_context>
chip_gen: v7x
topology: tpu7x:2x2x1
jax: 0.10.0
libtpu: 0.0.40
codegen_flags: <defaults>
</compile_context>

<pallas_src>
import jax
import jax.numpy as jnp
from jax.experimental import pallas as pl
from jax.experimental.pallas import tpu as pltpu


def _add_relu_matmul_kernel(a_ref, b_ref, w_ref, o_ref):
    # a_ref, b_ref: (C_in, M)  f32 resident activations
    # w_ref:        (tn, C_in) bf16 streamed weight tile
    # o_ref:        (tn, M)    f32 output tile
    x = jnp.maximum(a_ref[...] + b_ref[...], 0.0)          # add + ReLU (VPU)
    x = x.astype(jnp.bfloat16)                              # bf16 MXU operand
    o_ref[...] = jnp.dot(                                   # 1x1 conv tile, f32 acc
        w_ref[...], x, preferred_element_type=jnp.float32
    ).astype(o_ref.dtype)


def _pick_cout_tile(c_out):
    """Prefer exactly two C_out tiles: minimal per-step overhead, only 2x
    relu(A+B) recompute, and a perfect 1/1 TensorCore split on v7x.  Tiles
    must be a multiple of 8 (sublane-legal)."""
    if c_out % 2 == 0 and (c_out // 2) % 8 == 0:
        return c_out // 2
    # Fallback: largest sublane-legal divisor that yields an EVEN tile count.
    for cand in range(((min(c_out, 1024)) // 8) * 8, 7, -8):
        if c_out % cand == 0 and (c_out // cand) % 2 == 0:
            return cand
    return c_out  # single full-extent tile (no pipelining, still correct)


def add_relu_conv1x1(x_a, x_b, weight):
    """x_a, x_b: (N, C_in, H, W) float32 (NCHW, like PyTorch).
    weight: (C_out, C_in) float32 (PyTorch Conv2d 1x1 weight squeezed).
    Returns (N, C_out, H, W) float32 ~= conv1x1(relu(x_a + x_b))
    (weight streamed / multiplied in bf16, accumulated in f32)."""
    N, C_in, H, W = x_a.shape
    C_out = weight.shape[0]
    M = N * H * W

    # Channels-first flattened view: zero-copy for N == 1 (the module's case).
    if N == 1:
        a = x_a.reshape(C_in, M)
        b = x_b.reshape(C_in, M)
    else:
        a = jnp.transpose(x_a, (1, 0, 2, 3)).reshape(C_in, M)
        b = jnp.transpose(x_b, (1, 0, 2, 3)).reshape(C_in, M)

    # Halve the dominant HBM stream: weight travels as bf16.
    w_bf16 = weight.astype(jnp.bfloat16)

    tn = _pick_cout_tile(C_out)
    grid = (C_out // tn,)

    out_flat = pl.pallas_call(
        _add_relu_matmul_kernel,
        out_shape=jax.ShapeDtypeStruct((C_out, M), x_a.dtype),
        grid=grid,
        in_specs=[
            pl.BlockSpec((C_in, M), lambda j: (0, 0)),     # A resident in VMEM
            pl.BlockSpec((C_in, M), lambda j: (0, 0)),     # B resident in VMEM
            pl.BlockSpec((tn, C_in), lambda j: (j, 0)),    # bf16 weight row tiles
        ],
        out_specs=pl.BlockSpec((tn, M), lambda j: (j, 0)),
        compiler_params=pltpu.CompilerParams(
            # Independent C_out tiles -> the 2-long grid shards 1/1 across
            # TensorCores on v7x; harmless no-op on single-TC v5e/v6e.
            dimension_semantics=("parallel",),
            # Actual footprint ~8-9 MiB (resident f32 acts + double-buffered
            # bf16 weight tile + f32 output tiles); 32 MiB leaves headroom on
            # all generations (v7x physical VMEM is 64 MiB).
            vmem_limit_bytes=32 << 20,
        ),
    )(a, b, w_bf16)

    # (C_out, M) -> NCHW (free reshape for N == 1).
    if N == 1:
        return out_flat.reshape(1, C_out, H, W)
    return jnp.transpose(out_flat.reshape(C_out, N, H, W), (1, 0, 2, 3))


if __name__ == "__main__":
    key = jax.random.PRNGKey(0)
    k1, k2, k3 = jax.random.split(key, 3)

    N, C, H, W = 1, 1232, 14, 14  # shapes implied by the module
    x233 = jax.random.normal(k1, (N, C, H, W), dtype=jnp.float32)
    x247 = jax.random.normal(k2, (N, C, H, W), dtype=jnp.float32)
    # Deterministic synthetic Conv2d(1232, 1232, 1x1, bias=False) weight.
    weight = jax.random.normal(k3, (C, C), dtype=jnp.float32) * (1.0 / jnp.sqrt(C))

    out = add_relu_conv1x1(x233, x247, weight)
    out = jax.block_until_ready(out)
    assert out.shape == (N, C, H, W)

    x_relu = jnp.maximum(x233 + x247, 0.0)
    # Reference A: same bf16-operand / f32-accumulate math as the kernel.
    ref_bf16 = jnp.einsum(
        "oc,nchw->nohw",
        weight.astype(jnp.bfloat16),
        x_relu.astype(jnp.bfloat16),
        preferred_element_type=jnp.float32,
    )
    # Reference B: the module's pure-f32 math (bf16 stream adds ~1e-3 abs err).
    ref_f32 = jnp.einsum("oc,nchw->nohw", weight, x_relu)

    assert jnp.allclose(out, ref_bf16, atol=1e-2, rtol=1e-2)
    assert jnp.allclose(out, ref_f32, atol=5e-2, rtol=5e-2)

    print("KERNEL_OK")
</pallas_src>

<mosaic_0001>
module attributes {stable_mosaic.version = 11 : i64} {
  func.func @_add_relu_matmul_kernel(%arg0: i32, %arg1: memref<1232x196xf32, #tpu.memory_space<vmem>>, %arg2: memref<1232x196xf32, #tpu.memory_space<vmem>>, %arg3: memref<616x1232xbf16, #tpu.memory_space<vmem>>, %arg4: memref<616x196xf32, #tpu.memory_space<vmem>>) attributes {dimension_semantics = [#tpu.dimension_semantics<parallel>], iteration_bounds = array<i64: 2>, scalar_prefetch = 0 : i64, scratch_operands = 0 : i64, tpu.core_type = #tpu.core_type<tc>, window_params = [{pipeline_mode = #tpu.pipeline_mode<synchronous>, transform_indices = @transform_0, window_bounds = array<i64: 1232, 196>}, {pipeline_mode = #tpu.pipeline_mode<synchronous>, transform_indices = @transform_1, window_bounds = array<i64: 1232, 196>}, {transform_indices = @transform_2, window_bounds = array<i64: 616, 1232>}, {transform_indices = @transform_3, window_bounds = array<i64: 616, 196>}]} {
    %c0 = arith.constant 0 : index
    %c0_0 = arith.constant 0 : index
    %0 = vector.load %arg1[%c0, %c0_0] : memref<1232x196xf32, #tpu.memory_space<vmem>>, vector<1232x196xf32>
    %c0_1 = arith.constant 0 : index
    %c0_2 = arith.constant 0 : index
    %1 = vector.load %arg2[%c0_1, %c0_2] : memref<1232x196xf32, #tpu.memory_space<vmem>>, vector<1232x196xf32>
    %2 = arith.addf %0, %1 : vector<1232x196xf32>
    %cst = arith.constant 0.000000e+00 : f32
    %3 = vector.broadcast %cst : f32 to vector<1232x196xf32>
    %4 = arith.maximumf %2, %3 : vector<1232x196xf32>
    %5 = arith.truncf %4 : vector<1232x196xf32> to vector<1232x196xbf16>
    %c0_3 = arith.constant 0 : index
    %c0_4 = arith.constant 0 : index
    %6 = vector.load %arg3[%c0_3, %c0_4] : memref<616x1232xbf16, #tpu.memory_space<vmem>>, vector<616x1232xbf16>
    %cst_5 = arith.constant dense<0.000000e+00> : vector<616x196xf32>
    %7 = tpu.matmul %6, %5, %cst_5 {dimension_numbers = #tpu.dot_dimension_numbers<[1], [0], [0], [1], [0, 0, 1, 1], [], []>} : vector<616x1232xbf16>, vector<1232x196xbf16>, vector<616x196xf32> -> vector<616x196xf32>
    %c0_6 = arith.constant 0 : index
    %c0_7 = arith.constant 0 : index
    %8 = vector.load %arg4[%c0_6, %c0_7] : memref<616x196xf32, #tpu.memory_space<vmem>>, vector<616x196xf32>
    tpu.vector_store %arg4[%c0_6, %c0_7], %7 {strides = array<i32>} : memref<616x196xf32, #tpu.memory_space<vmem>>, vector<616x196xf32>,
    return
  }
  func.func @transform_0(%arg0: i32) -> (i32, i32) {
    %c0_i32 = arith.constant 0 : i32
    %c0_i32_0 = arith.constant 0 : i32
    %c0_i32_1 = arith.constant 0 : i32
    return %c0_i32, %c0_i32_0 : i32, i32
  }
  func.func @transform_1(%arg0: i32) -> (i32, i32) {
    %c0_i32 = arith.constant 0 : i32
    %c0_i32_0 = arith.constant 0 : i32
    %c0_i32_1 = arith.constant 0 : i32
    return %c0_i32, %c0_i32_0 : i32, i32
  }
  func.func @transform_2(%arg0: i32) -> (i32, i32) {
    %c0_i32 = arith.constant 0 : i32
    %c0_i32_0 = arith.constant 0 : i32
    return %arg0, %c0_i32 : i32, i32
  }
  func.func @transform_3(%arg0: i32) -> (i32, i32) {
    %c0_i32 = arith.constant 0 : i32
    %c0_i32_0 = arith.constant 0 : i32
    return %arg0, %c0_i32 : i32, i32
  }
}

</mosaic_0001>

<llo_original>
// kernel: tpu_custom_call.1
$region0: #{tpu_custom_call.1}
  #allocation0 [shape = 'u32[]', space=smem, size = 0x4, offset = 0x4, fixed_abs, tag = 'smem constant byte address 0x4 - core index']
  #allocation1 [shape = 'u32[144,128]{1,0:T(1,128)}', space=vmem, size = 0x12000, scoped, tag = 'internal scratch']
  %s0 = inlined_call_operand.vmem [shape: f32[1232,196], index: 0, kind: input, shape index: {}]
  %s1 = inlined_call_operand.vmem [shape: f32[1232,196], index: 1, kind: input, shape index: {}]
  %s2 = inlined_call_operand.vmem [shape: bf16[1232,1232], index: 2, kind: input, shape index: {}]
  %s3 = inlined_call_operand.vmem [shape: f32[1232,196], index: 3, kind: output, shape index: {}]
  %s4 = sld [smem:[#allocation0]]
  $region45: #{tpu_custom_call.1} parent=0
    _
  %s6 = ssub.s32 1, %s4
  %s7 = scalar_select 0, %s6, %s4
  loop: start=0, step=1, limit=4
  $region2: #{tpu_custom_call.1} parent=0 // loop_pre_header
    _
  $region3: #{tpu_custom_call.1} parent=0 // loop_header
    %s9 = sphi 0, %s13
    %p10 = scmp.ge.s32.totalorder %s9, 4
    %s17 = sphi 0, %s17
    %s19 = sphi 0, %s17
    %s20 = sphi 0, %s19
    %s34 = sphi 0, %s20
    %s38 = sphi 0, %s38
    %s40 = sphi 0, %s38
    %s41 = sphi 0, %s40
    %s55 = sphi 0, %s41
    %s61 = sphi 0, %s63
    %s64 = sphi 0, %s61
    %s65 = sphi 0, %s64
    %s81 = sphi 0, %s65
    %s87 = sphi 0, %s89
    %s90 = sphi 0, %s87
    %s91 = sphi 0, %s90
    %s107 = sphi 0, %s91
  $region4: #{tpu_custom_call.1} parent=0 // loop_header_branch
    %12 = sbr.rel (%p10) target = $region8
  $region5: #{tpu_custom_call.1} parent=0 // loop_body
    %s14 = ssub.s32 %s9, 1
    %s15 = ssub.s32 %s9, 2
    %s16 = sadd.s32 %s9, 1
    %s18 = sadd.s32 %s17, 1
    %p21 = scmp.eq.s32.totalorder %s9, 1
    %p22 = scmp.ne.s32.totalorder %s17, %s19
    %p23 = scmp.eq.s32.totalorder %s9, 0
    %p24 = por %p22, %p23
    %p25 = scmp.ne.s32.totalorder %s17, %s19
    %p26 = scmp.eq.s32.totalorder %s14, 1
    %p27 = por %p25, %p26
    %p28 = scmp.ne.s32.totalorder %s19, %s20
    %p29 = scmp.eq.s32.totalorder %s14, 0
    %p30 = por %p28, %p29
    %p31 = scmp.ne.s32.totalorder %s19, %s20
    %p32 = scmp.eq.s32.totalorder %s15, 1
    %p33 = por %p31, %p32
    %p35 = scmp.ne.s32.totalorder %s20, %s34
    %p36 = scmp.eq.s32.totalorder %s15, 0
    %p37 = por %p35, %p36
    %s39 = sadd.s32 %s38, 1
    %p42 = scmp.eq.s32.totalorder %s9, 1
    %p43 = scmp.ne.s32.totalorder %s38, %s40
    %p44 = scmp.eq.s32.totalorder %s9, 0
    %p45 = por %p43, %p44
    %p46 = scmp.ne.s32.totalorder %s38, %s40
    %p47 = scmp.eq.s32.totalorder %s14, 1
    %p48 = por %p46, %p47
    %p49 = scmp.ne.s32.totalorder %s40, %s41
    %p50 = scmp.eq.s32.totalorder %s14, 0
    %p51 = por %p49, %p50
    %p52 = scmp.ne.s32.totalorder %s40, %s41
    %p53 = scmp.eq.s32.totalorder %s15, 1
    %p54 = por %p52, %p53
    %p56 = scmp.ne.s32.totalorder %s41, %s55
    %p57 = scmp.eq.s32.totalorder %s15, 0
    %p58 = por %p56, %p57
    %s59 = ssub.s32 %s9, %s16
    %p60 = scmp.eq.s32.totalorder %s59, 0
    %s62 = sadd.s32 %s61, 1
    %s63 = scalar_select %p60, %s61, %s62
    %p66 = pneg %p60
    %p67 = scmp.eq.s32.totalorder %s9, 1
    %p68 = por %p66, %p67
    %p69 = scmp.ne.s32.totalorder %s61, %s64
    %p70 = scmp.eq.s32.totalorder %s9, 0
    %p71 = por %p69, %p70
    %p72 = scmp.ne.s32.totalorder %s61, %s64
    %p73 = scmp.eq.s32.totalorder %s14, 1
    %p74 = por %p72, %p73
    %p75 = scmp.ne.s32.totalorder %s64, %s65
    %p76 = scmp.eq.s32.totalorder %s14, 0
    %p77 = por %p75, %p76
    %p78 = scmp.ne.s32.totalorder %s64, %s65
    %p79 = scmp.eq.s32.totalorder %s15, 1
    %p80 = por %p78, %p79
    %p82 = scmp.ne.s32.totalorder %s65, %s81
    %p83 = scmp.eq.s32.totalorder %s15, 0
    %p84 = por %p82, %p83
    %s85 = ssub.s32 %s9, %s16
    %p86 = scmp.eq.s32.totalorder %s85, 0
    %s88 = sadd.s32 %s87, 1
    %s89 = scalar_select %p86, %s87, %s88
    %p92 = pneg %p86
    %p93 = scmp.eq.s32.totalorder %s9, 1
    %p94 = por %p92, %p93
    %p95 = scmp.ne.s32.totalorder %s87, %s90
    %p96 = scmp.eq.s32.totalorder %s9, 0
    %p97 = por %p95, %p96
    %p98 = scmp.ne.s32.totalorder %s87, %s90
    %p99 = scmp.eq.s32.totalorder %s14, 1
    %p100 = por %p98, %p99
    %p101 = scmp.ne.s32.totalorder %s90, %s91
    %p102 = scmp.eq.s32.totalorder %s14, 0
    %p103 = por %p101, %p102
    %p104 = scmp.ne.s32.totalorder %s90, %s91
    %p105 = scmp.eq.s32.totalorder %s15, 1
    %p106 = por %p104, %p105
    %p108 = scmp.ne.s32.totalorder %s91, %s107
    %p109 = scmp.eq.s32.totalorder %s15, 0
    %p110 = por %p108, %p109
    %p111 = scmp.le.s32.totalorder 1, %s9
    %p112 = scmp.lt.s32.totalorder %s9, 3
    %p113 = pnand %p111, %p112
    %p114 = pneg %p113
    // Predicated region
    $region9: #{tpu_custom_call.1} parent=5 // pred_check
      _
    $region10: #{tpu_custom_call.1} parent=5 // pred_check_branch
      %116 = sbr.rel (%p113) target = $region12
    $region11: #{tpu_custom_call.1} parent=5 // pred_region
      %s117 = ssub.s32 %s9, 1
      // Predicated region
      $region13: #{tpu_custom_call.1} parent=11 // pred_check
        %p118 = pneg %p30
      $region14: #{tpu_custom_call.1} parent=11 // pred_check_branch
        %120 = sbr.rel (%p118) target = $region16
      $region15: #{tpu_custom_call.1} parent=11 // pred_region
        _
      $region16: #{tpu_custom_call.1} parent=11 // pred_fallthru
        _
      // Predicated region
      $region17: #{tpu_custom_call.1} parent=11 // pred_check
        %p121 = pneg %p51
      $region18: #{tpu_custom_call.1} parent=11 // pred_check_branch
        %123 = sbr.rel (%p121) target = $region20
      $region19: #{tpu_custom_call.1} parent=11 // pred_region
        _
      $region20: #{tpu_custom_call.1} parent=11 // pred_fallthru
        _
    $region12: #{tpu_custom_call.1} parent=5 // pred_fallthru
      _
    %p124 = scmp.lt.s32.totalorder %s9, 2
    // Predicated region
    $region21: #{tpu_custom_call.1} parent=5 // pred_check
      %p125 = pneg %p124
    $region22: #{tpu_custom_call.1} parent=5 // pred_check_branch
      %127 = sbr.rel (%p125) target = $region24
    $region23: #{tpu_custom_call.1} parent=5 // pred_region
      // Predicated region
      $region25: #{tpu_custom_call.1} parent=23 // pred_check
        %p128 = pneg %p71
      $region26: #{tpu_custom_call.1} parent=23 // pred_check_branch
        %130 = sbr.rel (%p128) target = $region28
      $region27: #{tpu_custom_call.1} parent=23 // pred_region
        %s131 = smul.u32 77, %s9
        %p132 = scmp.lt.s32.totalorder %s131, 153
        %s133 = scalar_select %p132, %s131, 153
        %s134 = smul.addr %s133, 10
        %s135 = smul.addr %s134, 4
        %s136 = scalar_lea.vmem %s2, %s135
        %s137 = smul.u32 77, %s9
      $region28: #{tpu_custom_call.1} parent=23 // pred_fallthru
        _
    $region24: #{tpu_custom_call.1} parent=5 // pred_fallthru
      _
    %p138 = scmp.le.s32.totalorder 1, %s9
    %p139 = scmp.lt.s32.totalorder %s9, 3
    %p140 = pnand %p138, %p139
    %p141 = pneg %p140
    // Predicated region
    $region29: #{tpu_custom_call.1} parent=5 // pred_check
      _
    $region30: #{tpu_custom_call.1} parent=5 // pred_check_branch
      %143 = sbr.rel (%p140) target = $region32
    $region31: #{tpu_custom_call.1} parent=5 // pred_region
      %s144 = ssub.s32 %s9, 1
      %p145 = pneg %p30
      %p146 = pneg %p27
      %p147 = pneg %p51
      %p148 = pneg %p48
      %s149 = smul.u32 77, %s14
      %p150 = scmp.lt.s32.totalorder %s149, 153
      %s151 = scalar_select %p150, %s149, 153
      %s152 = smul.addr %s151, 10
      %s153 = smul.addr %s152, 4
      %s154 = scalar_lea.vmem %s2, %s153
      %p155 = pneg %p77
      %p156 = pneg %p74
      %p157 = pneg %p103
      %p158 = pneg %p100
      %s159 = smul.u32 77, %s14
      %p160 = scmp.lt.s32.totalorder %s159, 153
      %s161 = scalar_select %p160, %s159, 153
      %s162 = smul.addr %s161, 2
      %s163 = smul.addr %s162, 8
      %s164 = scalar_lea.vmem %s3, %s163
      %s165 = smul.u32 77, %s14
      %p166 = scmp.lt.s32.totalorder %s165, 153
      %s167 = scalar_select %p166, %s165, 153
      %s168 = smul.addr %s167, 10
      %s169 = smul.addr %s168, 4
      %s170 = scalar_lea.vmem %s2, %s169
      %s171 = smul.u32 77, %s14
      %s172 = smul.u32 77, %s14
      %p173 = scmp.lt.s32.totalorder %s172, 153
      %s174 = scalar_select %p173, %s172, 153
      %s175 = smul.addr %s174, 2
      %s176 = smul.addr %s175, 8
      %s177 = scalar_lea.vmem %s3, %s176
      %s178 = smul.u32 77, %s14
      %v180 = vld [vmem:[%s0] sm:$0xff]
      %v181 = vld [vmem:[%s0 + $0x8] sm:$0xff]
      %v182 = vld [vmem:[%s0 + $0x10] sm:$0xff]
      %v183 = vld [vmem:[%s0 + $0x18] sm:$0xff]
      %v184 = vld [vmem:[%s0 + $0x20] sm:$0xff]
      %v185 = vld [vmem:[%s0 + $0x28] sm:$0xff]
      %v186 = vld [vmem:[%s0 + $0x30] sm:$0xff]
      %v187 = vld [vmem:[%s0 + $0x38] sm:$0xff]
      %v188 = vld [vmem:[%s0 + $0x40] sm:$0xff]
      %v189 = vld [vmem:[%s0 + $0x48] sm:$0xff]
      %v190 = vld [vmem:[%s0 + $0x50] sm:$0xff]
      %v191 = vld [vmem:[%s0 + $0x58] sm:$0xff]
      %v192 = vld [vmem:[%s0 + $0x60] sm:$0xff]
      %v193 = vld [vmem:[%s0 + $0x68] sm:$0xff]
      %v194 = vld [vmem:[%s0 + $0x70] sm:$0xff]
      %v195 = vld [vmem:[%s0 + $0x78] sm:$0xff]
      %v196 = vld [vmem:[%s0 + $0x80] sm:$0xff]
      %v197 = vld [vmem:[%s0 + $0x88] sm:$0xff]
      %v198 = vld [vmem:[%s0 + $0x90] sm:$0xff]
      %v199 = vld [vmem:[%s0 + $0x98] sm:$0xff]
      %v200 = vld [vmem:[%s0 + $0xa0] sm:$0xff]
      %v201 = vld [vmem:[%s0 + $0xa8] sm:$0xff]
      %v202 = vld [vmem:[%s0 + $0xb0] sm:$0xff]
      %v203 = vld [vmem:[%s0 + $0xb8] sm:$0xff]
      %v204 = vld [vmem:[%s0 + $0xc0] sm:$0xff]
      %v205 = vld [vmem:[%s0 + $0xc8] sm:$0xff]
      %v206 = vld [vmem:[%s0 + $0xd0] sm:$0xff]
      %v207 = vld [vmem:[%s0 + $0xd8] sm:$0xff]
      %v208 = vld [vmem:[%s0 + $0xe0] sm:$0xff]
      %v209 = vld [vmem:[%s0 + $0xe8] sm:$0xff]
      %v210 = vld [vmem:[%s0 + $0xf0] sm:$0xff]
      %v211 = vld [vmem:[%s0 + $0xf8] sm:$0xff]
      %v212 = vld [vmem:[%s0 + $0x100] sm:$0xff]
      %v213 = vld [vmem:[%s0 + $0x108] sm:$0xff]
      %v214 = vld [vmem:[%s0 + $0x110] sm:$0xff]
      %v215 = vld [vmem:[%s0 + $0x118] sm:$0xff]
      %v216 = vld [vmem:[%s0 + $0x120] sm:$0xff]
      %v217 = vld [vmem:[%s0 + $0x128] sm:$0xff]
      %v218 = vld [vmem:[%s0 + $0x130] sm:$0xff]
      %v219 = vld [vmem:[%s0 + $0x138] sm:$0xff]
      %v220 = vld [vmem:[%s0 + $0x140] sm:$0xff]
      %v221 = vld [vmem:[%s0 + $0x148] sm:$0xff]
      %v222 = vld [vmem:[%s0 + $0x150] sm:$0xff]
      %v223 = vld [vmem:[%s0 + $0x158] sm:$0xff]
      %v224 = vld [vmem:[%s0 + $0x160] sm:$0xff]
      %v225 = vld [vmem:[%s0 + $0x168] sm:$0xff]
      %v226 = vld [vmem:[%s0 + $0x170] sm:$0xff]
      %v227 = vld [vmem:[%s0 + $0x178] sm:$0xff]
      %v228 = vld [vmem:[%s0 + $0x180] sm:$0xff]
      %v229 = vld [vmem:[%s0 + $0x188] sm:$0xff]
      %v230 = vld [vmem:[%s0 + $0x190] sm:$0xff]
      %v231 = vld [vmem:[%s0 + $0x198] sm:$0xff]
      %v232 = vld [vmem:[%s0 + $0x1a0] sm:$0xff]
      %v233 = vld [vmem:[%s0 + $0x1a8] sm:$0xff]
      %v234 = vld [vmem:[%s0 + $0x1b0] sm:$0xff]
      %v235 = vld [vmem:[%s0 + $0x1b8] sm:$0xff]
      %v236 = vld [vmem:[%s0 + $0x1c0] sm:$0xff]
      %v237 = vld [vmem:[%s0 + $0x1c8] sm:$0xff]
      %v238 = vld [vmem:[%s0 + $0x1d0] sm:$0xff]
      %v239 = vld [vmem:[%s0 + $0x1d8] sm:$0xff]
      %v240 = vld [vmem:[%s0 + $0x1e0] sm:$0xff]
      %v241 = vld [vmem:[%s0 + $0x1e8] sm:$0xff]
      %v242 = vld [vmem:[%s0 + $0x1f0] sm:$0xff]
      %v243 = vld [vmem:[%s0 + $0x1f8] sm:$0xff]
      %v244 = vld [vmem:[%s0 + $0x200] sm:$0xff]
      %v245 = vld [vmem:[%s0 + $0x208] sm:$0xff]
      %v246 = vld [vmem:[%s0 + $0x210] sm:$0xff]
      %v247 = vld [vmem:[%s0 + $0x218] sm:$0xff]
      %v248 = vld [vmem:[%s0 + $0x220] sm:$0xff]
      %v249 = vld [vmem:[%s0 + $0x228] sm:$0xff]
      %v250 = vld [vmem:[%s0 + $0x230] sm:$0xff]
      %v251 = vld [vmem:[%s0 + $0x238] sm:$0xff]
      %v252 = vld [vmem:[%s0 + $0x240] sm:$0xff]
      %v253 = vld [vmem:[%s0 + $0x248] sm:$0xff]
      %v254 = vld [vmem:[%s0 + $0x250] sm:$0xff]
      %v255 = vld [vmem:[%s0 + $0x258] sm:$0xff]
      %v256 = vld [vmem:[%s0 + $0x260] sm:$0xff]
      %v257 = vld [vmem:[%s0 + $0x268] sm:$0xff]
      %v258 = vld [vmem:[%s0 + $0x270] sm:$0xff]
      %v259 = vld [vmem:[%s0 + $0x278] sm:$0xff]
      %v260 = vld [vmem:[%s0 + $0x280] sm:$0xff]
      %v261 = vld [vmem:[%s0 + $0x288] sm:$0xff]
      %v262 = vld [vmem:[%s0 + $0x290] sm:$0xff]
      %v263 = vld [vmem:[%s0 + $0x298] sm:$0xff]
      %v264 = vld [vmem:[%s0 + $0x2a0] sm:$0xff]
      %v265 = vld [vmem:[%s0 + $0x2a8] sm:$0xff]
      %v266 = vld [vmem:[%s0 + $0x2b0] sm:$0xff]
      %v267 = vld [vmem:[%s0 + $0x2b8] sm:$0xff]
      %v268 = vld [vmem:[%s0 + $0x2c0] sm:$0xff]
      %v269 = vld [vmem:[%s0 + $0x2c8] sm:$0xff]
      %v270 = vld [vmem:[%s0 + $0x2d0] sm:$0xff]
      %v271 = vld [vmem:[%s0 + $0x2d8] sm:$0xff]
      %v272 = vld [vmem:[%s0 + $0x2e0] sm:$0xff]
      %v273 = vld [vmem:[%s0 + $0x2e8] sm:$0xff]
      %v274 = vld [vmem:[%s0 + $0x2f0] sm:$0xff]
      %v275 = vld [vmem:[%s0 + $0x2f8] sm:$0xff]
      %v276 = vld [vmem:[%s0 + $0x300] sm:$0xff]
      %v277 = vld [vmem:[%s0 + $0x308] sm:$0xff]
      %v278 = vld [vmem:[%s0 + $0x310] sm:$0xff]
      %v279 = vld [vmem:[%s0 + $0x318] sm:$0xff]
      %v280 = vld [vmem:[%s0 + $0x320] sm:$0xff]
      %v281 = vld [vmem:[%s0 + $0x328] sm:$0xff]
      %v282 = vld [vmem:[%s0 + $0x330] sm:$0xff]
      %v283 = vld [vmem:[%s0 + $0x338] sm:$0xff]
      %v284 = vld [vmem:[%s0 + $0x340] sm:$0xff]
      %v285 = vld [vmem:[%s0 + $0x348] sm:$0xff]
      %v286 = vld [vmem:[%s0 + $0x350] sm:$0xff]
      %v287 = vld [vmem:[%s0 + $0x358] sm:$0xff]
      %v288 = vld [vmem:[%s0 + $0x360] sm:$0xff]
      %v289 = vld [vmem:[%s0 + $0x368] sm:$0xff]
      %v290 = vld [vmem:[%s0 + $0x370] sm:$0xff]
      %v291 = vld [vmem:[%s0 + $0x378] sm:$0xff]
      %v292 = vld [vmem:[%s0 + $0x380] sm:$0xff]
      %v293 = vld [vmem:[%s0 + $0x388] sm:$0xff]
      %v294 = vld [vmem:[%s0 + $0x390] sm:$0xff]
      %v295 = vld [vmem:[%s0 + $0x398] sm:$0xff]
      %v296 = vld [vmem:[%s0 + $0x3a0] sm:$0xff]
      %v297 = vld [vmem:[%s0 + $0x3a8] sm:$0xff]
      %v298 = vld [vmem:[%s0 + $0x3b0] sm:$0xff]
      %v299 = vld [vmem:[%s0 + $0x3b8] sm:$0xff]
      %v300 = vld [vmem:[%s0 + $0x3c0] sm:$0xff]
      %v301 = vld [vmem:[%s0 + $0x3c8] sm:$0xff]
      %v302 = vld [vmem:[%s0 + $0x3d0] sm:$0xff]
      %v303 = vld [vmem:[%s0 + $0x3d8] sm:$0xff]
      %v304 = vld [vmem:[%s0 + $0x3e0] sm:$0xff]
      %v305 = vld [vmem:[%s0 + $0x3e8] sm:$0xff]
      %v306 = vld [vmem:[%s0 + $0x3f0] sm:$0xff]
      %v307 = vld [vmem:[%s0 + $0x3f8] sm:$0xff]
      %v308 = vld [vmem:[%s0 + $0x400] sm:$0xff]
      %v309 = vld [vmem:[%s0 + $0x408] sm:$0xff]
      %v310 = vld [vmem:[%s0 + $0x410] sm:$0xff]
      %v311 = vld [vmem:[%s0 + $0x418] sm:$0xff]
      %v312 = vld [vmem:[%s0 + $0x420] sm:$0xff]
      %v313 = vld [vmem:[%s0 + $0x428] sm:$0xff]
      %v314 = vld [vmem:[%s0 + $0x430] sm:$0xff]
      %v315 = vld [vmem:[%s0 + $0x438] sm:$0xff]
      %v316 = vld [vmem:[%s0 + $0x440] sm:$0xff]
      %v317 = vld [vmem:[%s0 + $0x448] sm:$0xff]
      %v318 = vld [vmem:[%s0 + $0x450] sm:$0xff]
      %v319 = vld [vmem:[%s0 + $0x458] sm:$0xff]
      %v320 = vld [vmem:[%s0 + $0x460] sm:$0xff]
      %v321 = vld [vmem:[%s0 + $0x468] sm:$0xff]
      %v322 = vld [vmem:[%s0 + $0x470] sm:$0xff]
      %v323 = vld [vmem:[%s0 + $0x478] sm:$0xff]
      %v324 = vld [vmem:[%s0 + $0x480] sm:$0xff]
      %v325 = vld [vmem:[%s0 + $0x488] sm:$0xff]
      %v326 = vld [vmem:[%s0 + $0x490] sm:$0xff]
      %v327 = vld [vmem:[%s0 + $0x498] sm:$0xff]
      %v328 = vld [vmem:[%s0 + $0x4a0] sm:$0xff]
      %v329 = vld [vmem:[%s0 + $0x4a8] sm:$0xff]
      %v330 = vld [vmem:[%s0 + $0x4b0] sm:$0xff]
      %v331 = vld [vmem:[%s0 + $0x4b8] sm:$0xff]
      %v332 = vld [vmem:[%s0 + $0x4c0] sm:$0xff]
      %v333 = vld [vmem:[%s0 + $0x4c8] sm:$0xff]
      %v334 = vld [vmem:[%s0 + $0x4d0] sm:$0xff]
      %v335 = vld [vmem:[%s0 + $0x4d8] sm:$0xff]
      %v336 = vld [vmem:[%s0 + $0x4e0] sm:$0xff]
      %v337 = vld [vmem:[%s0 + $0x4e8] sm:$0xff]
      %v338 = vld [vmem:[%s0 + $0x4f0] sm:$0xff]
      %v339 = vld [vmem:[%s0 + $0x4f8] sm:$0xff]
      %v340 = vld [vmem:[%s0 + $0x500] sm:$0xff]
      %v341 = vld [vmem:[%s0 + $0x508] sm:$0xff]
      %v342 = vld [vmem:[%s0 + $0x510] sm:$0xff]
      %v343 = vld [vmem:[%s0 + $0x518] sm:$0xff]
      %v344 = vld [vmem:[%s0 + $0x520] sm:$0xff]
      %v345 = vld [vmem:[%s0 + $0x528] sm:$0xff]
      %v346 = vld [vmem:[%s0 + $0x530] sm:$0xff]
      %v347 = vld [vmem:[%s0 + $0x538] sm:$0xff]
      %v348 = vld [vmem:[%s0 + $0x540] sm:$0xff]
      %v349 = vld [vmem:[%s0 + $0x548] sm:$0xff]
      %v350 = vld [vmem:[%s0 + $0x550] sm:$0xff]
      %v351 = vld [vmem:[%s0 + $0x558] sm:$0xff]
      %v352 = vld [vmem:[%s0 + $0x560] sm:$0xff]
      %v353 = vld [vmem:[%s0 + $0x568] sm:$0xff]
      %v354 = vld [vmem:[%s0 + $0x570] sm:$0xff]
      %v355 = vld [vmem:[%s0 + $0x578] sm:$0xff]
      %v356 = vld [vmem:[%s0 + $0x580] sm:$0xff]
      %v357 = vld [vmem:[%s0 + $0x588] sm:$0xff]
      %v358 = vld [vmem:[%s0 + $0x590] sm:$0xff]
      %v359 = vld [vmem:[%s0 + $0x598] sm:$0xff]
      %v360 = vld [vmem:[%s0 + $0x5a0] sm:$0xff]
      %v361 = vld [vmem:[%s0 + $0x5a8] sm:$0xff]
      %v362 = vld [vmem:[%s0 + $0x5b0] sm:$0xff]
      %v363 = vld [vmem:[%s0 + $0x5b8] sm:$0xff]
      %v364 = vld [vmem:[%s0 + $0x5c0] sm:$0xff]
      %v365 = vld [vmem:[%s0 + $0x5c8] sm:$0xff]
      %v366 = vld [vmem:[%s0 + $0x5d0] sm:$0xff]
      %v367 = vld [vmem:[%s0 + $0x5d8] sm:$0xff]
      %v368 = vld [vmem:[%s0 + $0x5e0] sm:$0xff]
      %v369 = vld [vmem:[%s0 + $0x5e8] sm:$0xff]
      %v370 = vld [vmem:[%s0 + $0x5f0] sm:$0xff]
      %v371 = vld [vmem:[%s0 + $0x5f8] sm:$0xff]
      %v372 = vld [vmem:[%s0 + $0x600] sm:$0xff]
      %v373 = vld [vmem:[%s0 + $0x608] sm:$0xff]
      %v374 = vld [vmem:[%s0 + $0x610] sm:$0xff]
      %v375 = vld [vmem:[%s0 + $0x618] sm:$0xff]
      %v376 = vld [vmem:[%s0 + $0x620] sm:$0xff]
      %v377 = vld [vmem:[%s0 + $0x628] sm:$0xff]
      %v378 = vld [vmem:[%s0 + $0x630] sm:$0xff]
      %v379 = vld [vmem:[%s0 + $0x638] sm:$0xff]
      %v380 = vld [vmem:[%s0 + $0x640] sm:$0xff]
      %v381 = vld [vmem:[%s0 + $0x648] sm:$0xff]
      %v382 = vld [vmem:[%s0 + $0x650] sm:$0xff]
      %v383 = vld [vmem:[%s0 + $0x658] sm:$0xff]
      %v384 = vld [vmem:[%s0 + $0x660] sm:$0xff]
      %v385 = vld [vmem:[%s0 + $0x668] sm:$0xff]
      %v386 = vld [vmem:[%s0 + $0x670] sm:$0xff]
      %v387 = vld [vmem:[%s0 + $0x678] sm:$0xff]
      %v388 = vld [vmem:[%s0 + $0x680] sm:$0xff]
      %v389 = vld [vmem:[%s0 + $0x688] sm:$0xff]
      %v390 = vld [vmem:[%s0 + $0x690] sm:$0xff]
      %v391 = vld [vmem:[%s0 + $0x698] sm:$0xff]
      %v392 = vld [vmem:[%s0 + $0x6a0] sm:$0xff]
      %v393 = vld [vmem:[%s0 + $0x6a8] sm:$0xff]
      %v394 = vld [vmem:[%s0 + $0x6b0] sm:$0xff]
      %v395 = vld [vmem:[%s0 + $0x6b8] sm:$0xff]
      %v396 = vld [vmem:[%s0 + $0x6c0] sm:$0xff]
      %v397 = vld [vmem:[%s0 + $0x6c8] sm:$0xff]
      %v398 = vld [vmem:[%s0 + $0x6d0] sm:$0xff]
      %v399 = vld [vmem:[%s0 + $0x6d8] sm:$0xff]
      %v400 = vld [vmem:[%s0 + $0x6e0] sm:$0xff]
      %v401 = vld [vmem:[%s0 + $0x6e8] sm:$0xff]
      %v402 = vld [vmem:[%s0 + $0x6f0] sm:$0xff]
      %v403 = vld [vmem:[%s0 + $0x6f8] sm:$0xff]
      %v404 = vld [vmem:[%s0 + $0x700] sm:$0xff]
      %v405 = vld [vmem:[%s0 + $0x708] sm:$0xff]
      %v406 = vld [vmem:[%s0 + $0x710] sm:$0xff]
      %v407 = vld [vmem:[%s0 + $0x718] sm:$0xff]
      %v408 = vld [vmem:[%s0 + $0x720] sm:$0xff]
      %v409 = vld [vmem:[%s0 + $0x728] sm:$0xff]
      %v410 = vld [vmem:[%s0 + $0x730] sm:$0xff]
      %v411 = vld [vmem:[%s0 + $0x738] sm:$0xff]
      %v412 = vld [vmem:[%s0 + $0x740] sm:$0xff]
      %v413 = vld [vmem:[%s0 + $0x748] sm:$0xff]
      %v414 = vld [vmem:[%s0 + $0x750] sm:$0xff]
      %v415 = vld [vmem:[%s0 + $0x758] sm:$0xff]
      %v416 = vld [vmem:[%s0 + $0x760] sm:$0xff]
      %v417 = vld [vmem:[%s0 + $0x768] sm:$0xff]
      %v418 = vld [vmem:[%s0 + $0x770] sm:$0xff]
      %v419 = vld [vmem:[%s0 + $0x778] sm:$0xff]
      %v420 = vld [vmem:[%s0 + $0x780] sm:$0xff]
      %v421 = vld [vmem:[%s0 + $0x788] sm:$0xff]
      %v422 = vld [vmem:[%s0 + $0x790] sm:$0xff]
      %v423 = vld [vmem:[%s0 + $0x798] sm:$0xff]
      %v424 = vld [vmem:[%s0 + $0x7a0] sm:$0xff]
      %v425 = vld [vmem:[%s0 + $0x7a8] sm:$0xff]
      %v426 = vld [vmem:[%s0 + $0x7b0] sm:$0xff]
      %v427 = vld [vmem:[%s0 + $0x7b8] sm:$0xff]
      %v428 = vld [vmem:[%s0 + $0x7c0] sm:$0xff]
      %v429 = vld [vmem:[%s0 + $0x7c8] sm:$0xff]
      %v430 = vld [vmem:[%s0 + $0x7d0] sm:$0xff]
      %v431 = vld [vmem:[%s0 + $0x7d8] sm:$0xff]
      %v432 = vld [vmem:[%s0 + $0x7e0] sm:$0xff]
      %v433 = vld [vmem:[%s0 + $0x7e8] sm:$0xff]
      %v434 = vld [vmem:[%s0 + $0x7f0] sm:$0xff]
      %v435 = vld [vmem:[%s0 + $0x7f8] sm:$0xff]
      %v436 = vld [vmem:[%s0 + $0x800] sm:$0xff]
      %v437 = vld [vmem:[%s0 + $0x808] sm:$0xff]
      %v438 = vld [vmem:[%s0 + $0x810] sm:$0xff]
      %v439 = vld [vmem:[%s0 + $0x818] sm:$0xff]
      %v440 = vld [vmem:[%s0 + $0x820] sm:$0xff]
      %v441 = vld [vmem:[%s0 + $0x828] sm:$0xff]
      %v442 = vld [vmem:[%s0 + $0x830] sm:$0xff]
      %v443 = vld [vmem:[%s0 + $0x838] sm:$0xff]
      %v444 = vld [vmem:[%s0 + $0x840] sm:$0xff]
      %v445 = vld [vmem:[%s0 + $0x848] sm:$0xff]
      %v446 = vld [vmem:[%s0 + $0x850] sm:$0xff]
      %v447 = vld [vmem:[%s0 + $0x858] sm:$0xff]
      %v448 = vld [vmem:[%s0 + $0x860] sm:$0xff]
      %v449 = vld [vmem:[%s0 + $0x868] sm:$0xff]
      %v450 = vld [vmem:[%s0 + $0x870] sm:$0xff]
      %v451 = vld [vmem:[%s0 + $0x878] sm:$0xff]
      %v452 = vld [vmem:[%s0 + $0x880] sm:$0xff]
      %v453 = vld [vmem:[%s0 + $0x888] sm:$0xff]
      %v454 = vld [vmem:[%s0 + $0x890] sm:$0xff]
      %v455 = vld [vmem:[%s0 + $0x898] sm:$0xff]
      %v456 = vld [vmem:[%s0 + $0x8a0] sm:$0xff]
      %v457 = vld [vmem:[%s0 + $0x8a8] sm:$0xff]
      %v458 = vld [vmem:[%s0 + $0x8b0] sm:$0xff]
      %v459 = vld [vmem:[%s0 + $0x8b8] sm:$0xff]
      %v460 = vld [vmem:[%s0 + $0x8c0] sm:$0xff]
      %v461 = vld [vmem:[%s0 + $0x8c8] sm:$0xff]
      %v462 = vld [vmem:[%s0 + $0x8d0] sm:$0xff]
      %v463 = vld [vmem:[%s0 + $0x8d8] sm:$0xff]
      %v464 = vld [vmem:[%s0 + $0x8e0] sm:$0xff]
      %v465 = vld [vmem:[%s0 + $0x8e8] sm:$0xff]
      %v466 = vld [vmem:[%s0 + $0x8f0] sm:$0xff]
      %v467 = vld [vmem:[%s0 + $0x8f8] sm:$0xff]
      %v468 = vld [vmem:[%s0 + $0x900] sm:$0xff]
      %v469 = vld [vmem:[%s0 + $0x908] sm:$0xff]
      %v470 = vld [vmem:[%s0 + $0x910] sm:$0xff]
      %v471 = vld [vmem:[%s0 + $0x918] sm:$0xff]
      %v472 = vld [vmem:[%s0 + $0x920] sm:$0xff]
      %v473 = vld [vmem:[%s0 + $0x928] sm:$0xff]
      %v474 = vld [vmem:[%s0 + $0x930] sm:$0xff]
      %v475 = vld [vmem:[%s0 + $0x938] sm:$0xff]
      %v476 = vld [vmem:[%s0 + $0x940] sm:$0xff]
      %v477 = vld [vmem:[%s0 + $0x948] sm:$0xff]
      %v478 = vld [vmem:[%s0 + $0x950] sm:$0xff]
      %v479 = vld [vmem:[%s0 + $0x958] sm:$0xff]
      %v480 = vld [vmem:[%s0 + $0x960] sm:$0xff]
      %v481 = vld [vmem:[%s0 + $0x968] sm:$0xff]
      %v482 = vld [vmem:[%s0 + $0x970] sm:$0xff]
      %v483 = vld [vmem:[%s0 + $0x978] sm:$0xff]
      %v484 = vld [vmem:[%s0 + $0x980] sm:$0xff]
      %v485 = vld [vmem:[%s0 + $0x988] sm:$0xff]
      %v486 = vld [vmem:[%s0 + $0x990] sm:$0xff]
      %v487 = vld [vmem:[%s0 + $0x998] sm:$0xff]
      %v488 = vld [vmem:[%s1] sm:$0xff]
      %v489 = vld [vmem:[%s1 + $0x8] sm:$0xff]
      %v490 = vld [vmem:[%s1 + $0x10] sm:$0xff]
      %v491 = vld [vmem:[%s1 + $0x18] sm:$0xff]
      %v492 = vld [vmem:[%s1 + $0x20] sm:$0xff]
      %v493 = vld [vmem:[%s1 + $0x28] sm:$0xff]
      %v494 = vld [vmem:[%s1 + $0x30] sm:$0xff]
      %v495 = vld [vmem:[%s1 + $0x38] sm:$0xff]
      %v496 = vld [vmem:[%s1 + $0x40] sm:$0xff]
      %v497 = vld [vmem:[%s1 + $0x48] sm:$0xff]
      %v498 = vld [vmem:[%s1 + $0x50] sm:$0xff]
      %v499 = vld [vmem:[%s1 + $0x58] sm:$0xff]
      %v500 = vld [vmem:[%s1 + $0x60] sm:$0xff]
      %v501 = vld [vmem:[%s1 + $0x68] sm:$0xff]
      %v502 = vld [vmem:[%s1 + $0x70] sm:$0xff]
      %v503 = vld [vmem:[%s1 + $0x78] sm:$0xff]
      %v504 = vld [vmem:[%s1 + $0x80] sm:$0xff]
      %v505 = vld [vmem:[%s1 + $0x88] sm:$0xff]
      %v506 = vld [vmem:[%s1 + $0x90] sm:$0xff]
      %v507 = vld [vmem:[%s1 + $0x98] sm:$0xff]
      %v508 = vld [vmem:[%s1 + $0xa0] sm:$0xff]
      %v509 = vld [vmem:[%s1 + $0xa8] sm:$0xff]
      %v510 = vld [vmem:[%s1 + $0xb0] sm:$0xff]
      %v511 = vld [vmem:[%s1 + $0xb8] sm:$0xff]
      %v512 = vld [vmem:[%s1 + $0xc0] sm:$0xff]
      %v513 = vld [vmem:[%s1 + $0xc8] sm:$0xff]
      %v514 = vld [vmem:[%s1 + $0xd0] sm:$0xff]
      %v515 = vld [vmem:[%s1 + $0xd8] sm:$0xff]
      %v516 = vld [vmem:[%s1 + $0xe0] sm:$0xff]
      %v517 = vld [vmem:[%s1 + $0xe8] sm:$0xff]
      %v518 = vld [vmem:[%s1 + $0xf0] sm:$0xff]
      %v519 = vld [vmem:[%s1 + $0xf8] sm:$0xff]
      %v520 = vld [vmem:[%s1 + $0x100] sm:$0xff]
      %v521 = vld [vmem:[%s1 + $0x108] sm:$0xff]
      %v522 = vld [vmem:[%s1 + $0x110] sm:$0xff]
      %v523 = vld [vmem:[%s1 + $0x118] sm:$0xff]
      %v524 = vld [vmem:[%s1 + $0x120] sm:$0xff]
      %v525 = vld [vmem:[%s1 + $0x128] sm:$0xff]
      %v526 = vld [vmem:[%s1 + $0x130] sm:$0xff]
      %v527 = vld [vmem:[%s1 + $0x138] sm:$0xff]
      %v528 = vld [vmem:[%s1 + $0x140] sm:$0xff]
      %v529 = vld [vmem:[%s1 + $0x148] sm:$0xff]
      %v530 = vld [vmem:[%s1 + $0x150] sm:$0xff]
      %v531 = vld [vmem:[%s1 + $0x158] sm:$0xff]
      %v532 = vld [vmem:[%s1 + $0x160] sm:$0xff]
      %v533 = vld [vmem:[%s1 + $0x168] sm:$0xff]
      %v534 = vld [vmem:[%s1 + $0x170] sm:$0xff]
      %v535 = vld [vmem:[%s1 + $0x178] sm:$0xff]
      %v536 = vld [vmem:[%s1 + $0x180] sm:$0xff]
      %v537 = vld [vmem:[%s1 + $0x188] sm:$0xff]
      %v538 = vld [vmem:[%s1 + $0x190] sm:$0xff]
      %v539 = vld [vmem:[%s1 + $0x198] sm:$0xff]
      %v540 = vld [vmem:[%s1 + $0x1a0] sm:$0xff]
      %v541 = vld [vmem:[%s1 + $0x1a8] sm:$0xff]
      %v542 = vld [vmem:[%s1 + $0x1b0] sm:$0xff]
      %v543 = vld [vmem:[%s1 + $0x1b8] sm:$0xff]
      %v544 = vld [vmem:[%s1 + $0x1c0] sm:$0xff]
      %v545 = vld [vmem:[%s1 + $0x1c8] sm:$0xff]
      %v546 = vld [vmem:[%s1 + $0x1d0] sm:$0xff]
      %v547 = vld [vmem:[%s1 + $0x1d8] sm:$0xff]
      %v548 = vld [vmem:[%s1 + $0x1e0] sm:$0xff]
      %v549 = vld [vmem:[%s1 + $0x1e8] sm:$0xff]
      %v550 = vld [vmem:[%s1 + $0x1f0] sm:$0xff]
      %v551 = vld [vmem:[%s1 + $0x1f8] sm:$0xff]
      %v552 = vld [vmem:[%s1 + $0x200] sm:$0xff]
      %v553 = vld [vmem:[%s1 + $0x208] sm:$0xff]
      %v554 = vld [vmem:[%s1 + $0x210] sm:$0xff]
      %v555 = vld [vmem:[%s1 + $0x218] sm:$0xff]
      %v556 = vld [vmem:[%s1 + $0x220] sm:$0xff]
      %v557 = vld [vmem:[%s1 + $0x228] sm:$0xff]
      %v558 = vld [vmem:[%s1 + $0x230] sm:$0xff]
      %v559 = vld [vmem:[%s1 + $0x238] sm:$0xff]
      %v560 = vld [vmem:[%s1 + $0x240] sm:$0xff]
      %v561 = vld [vmem:[%s1 + $0x248] sm:$0xff]
      %v562 = vld [vmem:[%s1 + $0x250] sm:$0xff]
      %v563 = vld [vmem:[%s1 + $0x258] sm:$0xff]
      %v564 = vld [vmem:[%s1 + $0x260] sm:$0xff]
      %v565 = vld [vmem:[%s1 + $0x268] sm:$0xff]
      %v566 = vld [vmem:[%s1 + $0x270] sm:$0xff]
      %v567 = vld [vmem:[%s1 + $0x278] sm:$0xff]
      %v568 = vld [vmem:[%s1 + $0x280] sm:$0xff]
      %v569 = vld [vmem:[%s1 + $0x288] sm:$0xff]
      %v570 = vld [vmem:[%s1 + $0x290] sm:$0xff]
      %v571 = vld [vmem:[%s1 + $0x298] sm:$0xff]
      %v572 = vld [vmem:[%s1 + $0x2a0] sm:$0xff]
      %v573 = vld [vmem:[%s1 + $0x2a8] sm:$0xff]
      %v574 = vld [vmem:[%s1 + $0x2b0] sm:$0xff]
      %v575 = vld [vmem:[%s1 + $0x2b8] sm:$0xff]
      %v576 = vld [vmem:[%s1 + $0x2c0] sm:$0xff]
      %v577 = vld [vmem:[%s1 + $0x2c8] sm:$0xff]
      %v578 = vld [vmem:[%s1 + $0x2d0] sm:$0xff]
      %v579 = vld [vmem:[%s1 + $0x2d8] sm:$0xff]
      %v580 = vld [vmem:[%s1 + $0x2e0] sm:$0xff]
      %v581 = vld [vmem:[%s1 + $0x2e8] sm:$0xff]
      %v582 = vld [vmem:[%s1 + $0x2f0] sm:$0xff]
      %v583 = vld [vmem:[%s1 + $0x2f8] sm:$0xff]
      %v584 = vld [vmem:[%s1 + $0x300] sm:$0xff]
      %v585 = vld [vmem:[%s1 + $0x308] sm:$0xff]
      %v586 = vld [vmem:[%s1 + $0x310] sm:$0xff]
      %v587 = vld [vmem:[%s1 + $0x318] sm:$0xff]
      %v588 = vld [vmem:[%s1 + $0x320] sm:$0xff]
      %v589 = vld [vmem:[%s1 + $0x328] sm:$0xff]
      %v590 = vld [vmem:[%s1 + $0x330] sm:$0xff]
      %v591 = vld [vmem:[%s1 + $0x338] sm:$0xff]
      %v592 = vld [vmem:[%s1 + $0x340] sm:$0xff]
      %v593 = vld [vmem:[%s1 + $0x348] sm:$0xff]
      %v594 = vld [vmem:[%s1 + $0x350] sm:$0xff]
      %v595 = vld [vmem:[%s1 + $0x358] sm:$0xff]
      %v596 = vld [vmem:[%s1 + $0x360] sm:$0xff]
      %v597 = vld [vmem:[%s1 + $0x368] sm:$0xff]
      %v598 = vld [vmem:[%s1 + $0x370] sm:$0xff]
      %v599 = vld [vmem:[%s1 + $0x378] sm:$0xff]
      %v600 = vld [vmem:[%s1 + $0x380] sm:$0xff]
      %v601 = vld [vmem:[%s1 + $0x388] sm:$0xff]
      %v602 = vld [vmem:[%s1 + $0x390] sm:$0xff]
      %v603 = vld [vmem:[%s1 + $0x398] sm:$0xff]
      %v604 = vld [vmem:[%s1 + $0x3a0] sm:$0xff]
      %v605 = vld [vmem:[%s1 + $0x3a8] sm:$0xff]
      %v606 = vld [vmem:[%s1 + $0x3b0] sm:$0xff]
      %v607 = vld [vmem:[%s1 + $0x3b8] sm:$0xff]
      %v608 = vld [vmem:[%s1 + $0x3c0] sm:$0xff]
      %v609 = vld [vmem:[%s1 + $0x3c8] sm:$0xff]
      %v610 = vld [vmem:[%s1 + $0x3d0] sm:$0xff]
      %v611 = vld [vmem:[%s1 + $0x3d8] sm:$0xff]
      %v612 = vld [vmem:[%s1 + $0x3e0] sm:$0xff]
      %v613 = vld [vmem:[%s1 + $0x3e8] sm:$0xff]
      %v614 = vld [vmem:[%s1 + $0x3f0] sm:$0xff]
      %v615 = vld [vmem:[%s1 + $0x3f8] sm:$0xff]
      %v616 = vld [vmem:[%s1 + $0x400] sm:$0xff]
      %v617 = vld [vmem:[%s1 + $0x408] sm:$0xff]
      %v618 = vld [vmem:[%s1 + $0x410] sm:$0xff]
      %v619 = vld [vmem:[%s1 + $0x418] sm:$0xff]
      %v620 = vld [vmem:[%s1 + $0x420] sm:$0xff]
      %v621 = vld [vmem:[%s1 + $0x428] sm:$0xff]
      %v622 = vld [vmem:[%s1 + $0x430] sm:$0xff]
      %v623 = vld [vmem:[%s1 + $0x438] sm:$0xff]
      %v624 = vld [vmem:[%s1 + $0x440] sm:$0xff]
      %v625 = vld [vmem:[%s1 + $0x448] sm:$0xff]
      %v626 = vld [vmem:[%s1 + $0x450] sm:$0xff]
      %v627 = vld [vmem:[%s1 + $0x458] sm:$0xff]
      %v628 = vld [vmem:[%s1 + $0x460] sm:$0xff]
      %v629 = vld [vmem:[%s1 + $0x468] sm:$0xff]
      %v630 = vld [vmem:[%s1 + $0x470] sm:$0xff]
      %v631 = vld [vmem:[%s1 + $0x478] sm:$0xff]
      %v632 = vld [vmem:[%s1 + $0x480] sm:$0xff]
      %v633 = vld [vmem:[%s1 + $0x488] sm:$0xff]
      %v634 = vld [vmem:[%s1 + $0x490] sm:$0xff]
      %v635 = vld [vmem:[%s1 + $0x498] sm:$0xff]
      %v636 = vld [vmem:[%s1 + $0x4a0] sm:$0xff]
      %v637 = vld [vmem:[%s1 + $0x4a8] sm:$0xff]
      %v638 = vld [vmem:[%s1 + $0x4b0] sm:$0xff]
      %v639 = vld [vmem:[%s1 + $0x4b8] sm:$0xff]
      %v640 = vld [vmem:[%s1 + $0x4c0] sm:$0xff]
      %v641 = vld [vmem:[%s1 + $0x4c8] sm:$0xff]
      %v642 = vld [vmem:[%s1 + $0x4d0] sm:$0xff]
      %v643 = vld [vmem:[%s1 + $0x4d8] sm:$0xff]
      %v644 = vld [vmem:[%s1 + $0x4e0] sm:$0xff]
      %v645 = vld [vmem:[%s1 + $0x4e8] sm:$0xff]
      %v646 = vld [vmem:[%s1 + $0x4f0] sm:$0xff]
      %v647 = vld [vmem:[%s1 + $0x4f8] sm:$0xff]
      %v648 = vld [vmem:[%s1 + $0x500] sm:$0xff]
      %v649 = vld [vmem:[%s1 + $0x508] sm:$0xff]
      %v650 = vld [vmem:[%s1 + $0x510] sm:$0xff]
      %v651 = vld [vmem:[%s1 + $0x518] sm:$0xff]
      %v652 = vld [vmem:[%s1 + $0x520] sm:$0xff]
      %v653 = vld [vmem:[%s1 + $0x528] sm:$0xff]
      %v654 = vld [vmem:[%s1 + $0x530] sm:$0xff]
      %v655 = vld [vmem:[%s1 + $0x538] sm:$0xff]
      %v656 = vld [vmem:[%s1 + $0x540] sm:$0xff]
      %v657 = vld [vmem:[%s1 + $0x548] sm:$0xff]
      %v658 = vld [vmem:[%s1 + $0x550] sm:$0xff]
      %v659 = vld [vmem:[%s1 + $0x558] sm:$0xff]
      %v660 = vld [vmem:[%s1 + $0x560] sm:$0xff]
      %v661 = vld [vmem:[%s1 + $0x568] sm:$0xff]
      %v662 = vld [vmem:[%s1 + $0x570] sm:$0xff]
      %v663 = vld [vmem:[%s1 + $0x578] sm:$0xff]
      %v664 = vld [vmem:[%s1 + $0x580] sm:$0xff]
      %v665 = vld [vmem:[%s1 + $0x588] sm:$0xff]
      %v666 = vld [vmem:[%s1 + $0x590] sm:$0xff]
      %v667 = vld [vmem:[%s1 + $0x598] sm:$0xff]
      %v668 = vld [vmem:[%s1 + $0x5a0] sm:$0xff]
      %v669 = vld [vmem:[%s1 + $0x5a8] sm:$0xff]
      %v670 = vld [vmem:[%s1 + $0x5b0] sm:$0xff]
      %v671 = vld [vmem:[%s1 + $0x5b8] sm:$0xff]
      %v672 = vld [vmem:[%s1 + $0x5c0] sm:$0xff]
      %v673 = vld [vmem:[%s1 + $0x5c8] sm:$0xff]
      %v674 = vld [vmem:[%s1 + $0x5d0] sm:$0xff]
      %v675 = vld [vmem:[%s1 + $0x5d8] sm:$0xff]
      %v676 = vld [vmem:[%s1 + $0x5e0] sm:$0xff]
      %v677 = vld [vmem:[%s1 + $0x5e8] sm:$0xff]
      %v678 = vld [vmem:[%s1 + $0x5f0] sm:$0xff]
      %v679 = vld [vmem:[%s1 + $0x5f8] sm:$0xff]
      %v680 = vld [vmem:[%s1 + $0x600] sm:$0xff]
      %v681 = vld [vmem:[%s1 + $0x608] sm:$0xff]
      %v682 = vld [vmem:[%s1 + $0x610] sm:$0xff]
      %v683 = vld [vmem:[%s1 + $0x618] sm:$0xff]
      %v684 = vld [vmem:[%s1 + $0x620] sm:$0xff]
      %v685 = vld [vmem:[%s1 + $0x628] sm:$0xff]
      %v686 = vld [vmem:[%s1 + $0x630] sm:$0xff]
      %v687 = vld [vmem:[%s1 + $0x638] sm:$0xff]
      %v688 = vld [vmem:[%s1 + $0x640] sm:$0xff]
      %v689 = vld [vmem:[%s1 + $0x648] sm:$0xff]
      %v690 = vld [vmem:[%s1 + $0x650] sm:$0xff]
      %v691 = vld [vmem:[%s1 + $0x658] sm:$0xff]
      %v692 = vld [vmem:[%s1 + $0x660] sm:$0xff]
      %v693 = vld [vmem:[%s1 + $0x668] sm:$0xff]
      %v694 = vld [vmem:[%s1 + $0x670] sm:$0xff]
      %v695 = vld [vmem:[%s1 + $0x678] sm:$0xff]
      %v696 = vld [vmem:[%s1 + $0x680] sm:$0xff]
      %v697 = vld [vmem:[%s1 + $0x688] sm:$0xff]
      %v698 = vld [vmem:[%s1 + $0x690] sm:$0xff]
      %v699 = vld [vmem:[%s1 + $0x698] sm:$0xff]
      %v700 = vld [vmem:[%s1 + $0x6a0] sm:$0xff]
      %v701 = vld [vmem:[%s1 + $0x6a8] sm:$0xff]
      %v702 = vld [vmem:[%s1 + $0x6b0] sm:$0xff]
      %v703 = vld [vmem:[%s1 + $0x6b8] sm:$0xff]
      %v704 = vld [vmem:[%s1 + $0x6c0] sm:$0xff]
      %v705 = vld [vmem:[%s1 + $0x6c8] sm:$0xff]
      %v706 = vld [vmem:[%s1 + $0x6d0] sm:$0xff]
      %v707 = vld [vmem:[%s1 + $0x6d8] sm:$0xff]
      %v708 = vld [vmem:[%s1 + $0x6e0] sm:$0xff]
      %v709 = vld [vmem:[%s1 + $0x6e8] sm:$0xff]
      %v710 = vld [vmem:[%s1 + $0x6f0] sm:$0xff]
      %v711 = vld [vmem:[%s1 + $0x6f8] sm:$0xff]
      %v712 = vld [vmem:[%s1 + $0x700] sm:$0xff]
      %v713 = vld [vmem:[%s1 + $0x708] sm:$0xff]
      %v714 = vld [vmem:[%s1 + $0x710] sm:$0xff]
      %v715 = vld [vmem:[%s1 + $0x718] sm:$0xff]
      %v716 = vld [vmem:[%s1 + $0x720] sm:$0xff]
      %v717 = vld [vmem:[%s1 + $0x728] sm:$0xff]
      %v718 = vld [vmem:[%s1 + $0x730] sm:$0xff]
      %v719 = vld [vmem:[%s1 + $0x738] sm:$0xff]
      %v720 = vld [vmem:[%s1 + $0x740] sm:$0xff]
      %v721 = vld [vmem:[%s1 + $0x748] sm:$0xff]
      %v722 = vld [vmem:[%s1 + $0x750] sm:$0xff]
      %v723 = vld [vmem:[%s1 + $0x758] sm:$0xff]
      %v724 = vld [vmem:[%s1 + $0x760] sm:$0xff]
      %v725 = vld [vmem:[%s1 + $0x768] sm:$0xff]
      %v726 = vld [vmem:[%s1 + $0x770] sm:$0xff]
      %v727 = vld [vmem:[%s1 + $0x778] sm:$0xff]
      %v728 = vld [vmem:[%s1 + $0x780] sm:$0xff]
      %v729 = vld [vmem:[%s1 + $0x788] sm:$0xff]
      %v730 = vld [vmem:[%s1 + $0x790] sm:$0xff]
      %v731 = vld [vmem:[%s1 + $0x798] sm:$0xff]
      %v732 = vld [vmem:[%s1 + $0x7a0] sm:$0xff]
      %v733 = vld [vmem:[%s1 + $0x7a8] sm:$0xff]
      %v734 = vld [vmem:[%s1 + $0x7b0] sm:$0xff]
      %v735 = vld [vmem:[%s1 + $0x7b8] sm:$0xff]
      %v736 = vld [vmem:[%s1 + $0x7c0] sm:$0xff]
      %v737 = vld [vmem:[%s1 + $0x7c8] sm:$0xff]
      %v738 = vld [vmem:[%s1 + $0x7d0] sm:$0xff]
      %v739 = vld [vmem:[%s1 + $0x7d8] sm:$0xff]
      %v740 = vld [vmem:[%s1 + $0x7e0] sm:$0xff]
      %v741 = vld [vmem:[%s1 + $0x7e8] sm:$0xff]
      %v742 = vld [vmem:[%s1 + $0x7f0] sm:$0xff]
      %v743 = vld [vmem:[%s1 + $0x7f8] sm:$0xff]
      %v744 = vld [vmem:[%s1 + $0x800] sm:$0xff]
      %v745 = vld [vmem:[%s1 + $0x808] sm:$0xff]
      %v746 = vld [vmem:[%s1 + $0x810] sm:$0xff]
      %v747 = vld [vmem:[%s1 + $0x818] sm:$0xff]
      %v748 = vld [vmem:[%s1 + $0x820] sm:$0xff]
      %v749 = vld [vmem:[%s1 + $0x828] sm:$0xff]
      %v750 = vld [vmem:[%s1 + $0x830] sm:$0xff]
      %v751 = vld [vmem:[%s1 + $0x838] sm:$0xff]
      %v752 = vld [vmem:[%s1 + $0x840] sm:$0xff]
      %v753 = vld [vmem:[%s1 + $0x848] sm:$0xff]
      %v754 = vld [vmem:[%s1 + $0x850] sm:$0xff]
      %v755 = vld [vmem:[%s1 + $0x858] sm:$0xff]
      %v756 = vld [vmem:[%s1 + $0x860] sm:$0xff]
      %v757 = vld [vmem:[%s1 + $0x868] sm:$0xff]
      %v758 = vld [vmem:[%s1 + $0x870] sm:$0xff]
      %v759 = vld [vmem:[%s1 + $0x878] sm:$0xff]
      %v760 = vld [vmem:[%s1 + $0x880] sm:$0xff]
      %v761 = vld [vmem:[%s1 + $0x888] sm:$0xff]
      %v762 = vld [vmem:[%s1 + $0x890] sm:$0xff]
      %v763 = vld [vmem:[%s1 + $0x898] sm:$0xff]
      %v764 = vld [vmem:[%s1 + $0x8a0] sm:$0xff]
      %v765 = vld [vmem:[%s1 + $0x8a8] sm:$0xff]
      %v766 = vld [vmem:[%s1 + $0x8b0] sm:$0xff]
      %v767 = vld [vmem:[%s1 + $0x8b8] sm:$0xff]
      %v768 = vld [vmem:[%s1 + $0x8c0] sm:$0xff]
      %v769 = vld [vmem:[%s1 + $0x8c8] sm:$0xff]
      %v770 = vld [vmem:[%s1 + $0x8d0] sm:$0xff]
      %v771 = vld [vmem:[%s1 + $0x8d8] sm:$0xff]
      %v772 = vld [vmem:[%s1 + $0x8e0] sm:$0xff]
      %v773 = vld [vmem:[%s1 + $0x8e8] sm:$0xff]
      %v774 = vld [vmem:[%s1 + $0x8f0] sm:$0xff]
      %v775 = vld [vmem:[%s1 + $0x8f8] sm:$0xff]
      %v776 = vld [vmem:[%s1 + $0x900] sm:$0xff]
      %v777 = vld [vmem:[%s1 + $0x908] sm:$0xff]
      %v778 = vld [vmem:[%s1 + $0x910] sm:$0xff]
      %v779 = vld [vmem:[%s1 + $0x918] sm:$0xff]
      %v780 = vld [vmem:[%s1 + $0x920] sm:$0xff]
      %v781 = vld [vmem:[%s1 + $0x928] sm:$0xff]
      %v782 = vld [vmem:[%s1 + $0x930] sm:$0xff]
      %v783 = vld [vmem:[%s1 + $0x938] sm:$0xff]
      %v784 = vld [vmem:[%s1 + $0x940] sm:$0xff]
      %v785 = vld [vmem:[%s1 + $0x948] sm:$0xff]
      %v786 = vld [vmem:[%s1 + $0x950] sm:$0xff]
      %v787 = vld [vmem:[%s1 + $0x958] sm:$0xff]
      %v788 = vld [vmem:[%s1 + $0x960] sm:$0xff]
      %v789 = vld [vmem:[%s1 + $0x968] sm:$0xff]
      %v790 = vld [vmem:[%s1 + $0x970] sm:$0xff]
      %v791 = vld [vmem:[%s1 + $0x978] sm:$0xff]
      %v792 = vld [vmem:[%s1 + $0x980] sm:$0xff]
      %v793 = vld [vmem:[%s1 + $0x988] sm:$0xff]
      %v794 = vld [vmem:[%s1 + $0x990] sm:$0xff]
      %v795 = vld [vmem:[%s1 + $0x998] sm:$0xff]
      %v796 = vadd.f32 %v180, %v488
      %v797 = vadd.f32 %v181, %v489
      %v798 = vadd.f32 %v182, %v490
      %v799 = vadd.f32 %v183, %v491
      %v800 = vadd.f32 %v184, %v492
      %v801 = vadd.f32 %v185, %v493
      %v802 = vadd.f32 %v186, %v494
      %v803 = vadd.f32 %v187, %v495
      %v804 = vadd.f32 %v188, %v496
      %v805 = vadd.f32 %v189, %v497
      %v806 = vadd.f32 %v190, %v498
      %v807 = vadd.f32 %v191, %v499
      %v808 = vadd.f32 %v192, %v500
      %v809 = vadd.f32 %v193, %v501
      %v810 = vadd.f32 %v194, %v502
      %v811 = vadd.f32 %v195, %v503
      %v812 = vadd.f32 %v196, %v504
      %v813 = vadd.f32 %v197, %v505
      %v814 = vadd.f32 %v198, %v506
      %v815 = vadd.f32 %v199, %v507
      %v816 = vadd.f32 %v200, %v508
      %v817 = vadd.f32 %v201, %v509
      %v818 = vadd.f32 %v202, %v510
      %v819 = vadd.f32 %v203, %v511
      %v820 = vadd.f32 %v204, %v512
      %v821 = vadd.f32 %v205, %v513
      %v822 = vadd.f32 %v206, %v514
      %v823 = vadd.f32 %v207, %v515
      %v824 = vadd.f32 %v208, %v516
      %v825 = vadd.f32 %v209, %v517
      %v826 = vadd.f32 %v210, %v518
      %v827 = vadd.f32 %v211, %v519
      %v828 = vadd.f32 %v212, %v520
      %v829 = vadd.f32 %v213, %v521
      %v830 = vadd.f32 %v214, %v522
      %v831 = vadd.f32 %v215, %v523
      %v832 = vadd.f32 %v216, %v524
      %v833 = vadd.f32 %v217, %v525
      %v834 = vadd.f32 %v218, %v526
      %v835 = vadd.f32 %v219, %v527
      %v836 = vadd.f32 %v220, %v528
      %v837 = vadd.f32 %v221, %v529
      %v838 = vadd.f32 %v222, %v530
      %v839 = vadd.f32 %v223, %v531
      %v840 = vadd.f32 %v224, %v532
      %v841 = vadd.f32 %v225, %v533
      %v842 = vadd.f32 %v226, %v534
      %v843 = vadd.f32 %v227, %v535
      %v844 = vadd.f32 %v228, %v536
      %v845 = vadd.f32 %v229, %v537
      %v846 = vadd.f32 %v230, %v538
      %v847 = vadd.f32 %v231, %v539
      %v848 = vadd.f32 %v232, %v540
      %v849 = vadd.f32 %v233, %v541
      %v850 = vadd.f32 %v234, %v542
      %v851 = vadd.f32 %v235, %v543
      %v852 = vadd.f32 %v236, %v544
      %v853 = vadd.f32 %v237, %v545
      %v854 = vadd.f32 %v238, %v546
      %v855 = vadd.f32 %v239, %v547
      %v856 = vadd.f32 %v240, %v548
      %v857 = vadd.f32 %v241, %v549
      %v858 = vadd.f32 %v242, %v550
      %v859 = vadd.f32 %v243, %v551
      %v860 = vadd.f32 %v244, %v552
      %v861 = vadd.f32 %v245, %v553
      %v862 = vadd.f32 %v246, %v554
      %v863 = vadd.f32 %v247, %v555
      %v864 = vadd.f32 %v248, %v556
      %v865 = vadd.f32 %v249, %v557
      %v866 = vadd.f32 %v250, %v558
      %v867 = vadd.f32 %v251, %v559
      %v868 = vadd.f32 %v252, %v560
      %v869 = vadd.f32 %v253, %v561
      %v870 = vadd.f32 %v254, %v562
      %v871 = vadd.f32 %v255, %v563
      %v872 = vadd.f32 %v256, %v564
      %v873 = vadd.f32 %v257, %v565
      %v874 = vadd.f32 %v258, %v566
      %v875 = vadd.f32 %v259, %v567
      %v876 = vadd.f32 %v260, %v568
      %v877 = vadd.f32 %v261, %v569
      %v878 = vadd.f32 %v262, %v570
      %v879 = vadd.f32 %v263, %v571
      %v880 = vadd.f32 %v264, %v572
      %v881 = vadd.f32 %v265, %v573
      %v882 = vadd.f32 %v266, %v574
      %v883 = vadd.f32 %v267, %v575
      %v884 = vadd.f32 %v268, %v576
      %v885 = vadd.f32 %v269, %v577
      %v886 = vadd.f32 %v270, %v578
      %v887 = vadd.f32 %v271, %v579
      %v888 = vadd.f32 %v272, %v580
      %v889 = vadd.f32 %v273, %v581
      %v890 = vadd.f32 %v274, %v582
      %v891 = vadd.f32 %v275, %v583
      %v892 = vadd.f32 %v276, %v584
      %v893 = vadd.f32 %v277, %v585
      %v894 = vadd.f32 %v278, %v586
      %v895 = vadd.f32 %v279, %v587
      %v896 = vadd.f32 %v280, %v588
      %v897 = vadd.f32 %v281, %v589
      %v898 = vadd.f32 %v282, %v590
      %v899 = vadd.f32 %v283, %v591
      %v900 = vadd.f32 %v284, %v592
      %v901 = vadd.f32 %v285, %v593
      %v902 = vadd.f32 %v286, %v594
      %v903 = vadd.f32 %v287, %v595
      %v904 = vadd.f32 %v288, %v596
      %v905 = vadd.f32 %v289, %v597
      %v906 = vadd.f32 %v290, %v598
      %v907 = vadd.f32 %v291, %v599
      %v908 = vadd.f32 %v292, %v600
      %v909 = vadd.f32 %v293, %v601
      %v910 = vadd.f32 %v294, %v602
      %v911 = vadd.f32 %v295, %v603
      %v912 = vadd.f32 %v296, %v604
      %v913 = vadd.f32 %v297, %v605
      %v914 = vadd.f32 %v298, %v606
      %v915 = vadd.f32 %v299, %v607
      %v916 = vadd.f32 %v300, %v608
      %v917 = vadd.f32 %v301, %v609
      %v918 = vadd.f32 %v302, %v610
      %v919 = vadd.f32 %v303, %v611
      %v920 = vadd.f32 %v304, %v612
      %v921 = vadd.f32 %v305, %v613
      %v922 = vadd.f32 %v306, %v614
      %v923 = vadd.f32 %v307, %v615
      %v924 = vadd.f32 %v308, %v616
      %v925 = vadd.f32 %v309, %v617
      %v926 = vadd.f32 %v310, %v618
      %v927 = vadd.f32 %v311, %v619
      %v928 = vadd.f32 %v312, %v620
      %v929 = vadd.f32 %v313, %v621
      %v930 = vadd.f32 %v314, %v622
      %v931 = vadd.f32 %v315, %v623
      %v932 = vadd.f32 %v316, %v624
      %v933 = vadd.f32 %v317, %v625
      %v934 = vadd.f32 %v318, %v626
      %v935 = vadd.f32 %v319, %v627
      %v936 = vadd.f32 %v320, %v628
      %v937 = vadd.f32 %v321, %v629
      %v938 = vadd.f32 %v322, %v630
      %v939 = vadd.f32 %v323, %v631
      %v940 = vadd.f32 %v324, %v632
      %v941 = vadd.f32 %v325, %v633
      %v942 = vadd.f32 %v326, %v634
      %v943 = vadd.f32 %v327, %v635
      %v944 = vadd.f32 %v328, %v636
      %v945 = vadd.f32 %v329, %v637
      %v946 = vadd.f32 %v330, %v638
      %v947 = vadd.f32 %v331, %v639
      %v948 = vadd.f32 %v332, %v640
      %v949 = vadd.f32 %v333, %v641
      %v950 = vadd.f32 %v334, %v642
      %v951 = vadd.f32 %v335, %v643
      %v952 = vadd.f32 %v336, %v644
      %v953 = vadd.f32 %v337, %v645
      %v954 = vadd.f32 %v338, %v646
      %v955 = vadd.f32 %v339, %v647
      %v956 = vadd.f32 %v340, %v648
      %v957 = vadd.f32 %v341, %v649
      %v958 = vadd.f32 %v342, %v650
      %v959 = vadd.f32 %v343, %v651
      %v960 = vadd.f32 %v344, %v652
      %v961 = vadd.f32 %v345, %v653
      %v962 = vadd.f32 %v346, %v654
      %v963 = vadd.f32 %v347, %v655
      %v964 = vadd.f32 %v348, %v656
      %v965 = vadd.f32 %v349, %v657
      %v966 = vadd.f32 %v350, %v658
      %v967 = vadd.f32 %v351, %v659
      %v968 = vadd.f32 %v352, %v660
      %v969 = vadd.f32 %v353, %v661
      %v970 = vadd.f32 %v354, %v662
      %v971 = vadd.f32 %v355, %v663
      %v972 = vadd.f32 %v356, %v664
      %v973 = vadd.f32 %v357, %v665
      %v974 = vadd.f32 %v358, %v666
      %v975 = vadd.f32 %v359, %v667
      %v976 = vadd.f32 %v360, %v668
      %v977 = vadd.f32 %v361, %v669
      %v978 = vadd.f32 %v362, %v670
      %v979 = vadd.f32 %v363, %v671
      %v980 = vadd.f32 %v364, %v672
      %v981 = vadd.f32 %v365, %v673
      %v982 = vadd.f32 %v366, %v674
      %v983 = vadd.f32 %v367, %v675
      %v984 = vadd.f32 %v368, %v676
      %v985 = vadd.f32 %v369, %v677
      %v986 = vadd.f32 %v370, %v678
      %v987 = vadd.f32 %v371, %v679
      %v988 = vadd.f32 %v372, %v680
      %v989 = vadd.f32 %v373, %v681
      %v990 = vadd.f32 %v374, %v682
      %v991 = vadd.f32 %v375, %v683
      %v992 = vadd.f32 %v376, %v684
      %v993 = vadd.f32 %v377, %v685
      %v994 = vadd.f32 %v378, %v686
      %v995 = vadd.f32 %v379, %v687
      %v996 = vadd.f32 %v380, %v688
      %v997 = vadd.f32 %v381, %v689
      %v998 = vadd.f32 %v382, %v690
      %v999 = vadd.f32 %v383, %v691
      %v1000 = vadd.f32 %v384, %v692
      %v1001 = vadd.f32 %v385, %v693
      %v1002 = vadd.f32 %v386, %v694
      %v1003 = vadd.f32 %v387, %v695
      %v1004 = vadd.f32 %v388, %v696
      %v1005 = vadd.f32 %v389, %v697
      %v1006 = vadd.f32 %v390, %v698
      %v1007 = vadd.f32 %v391, %v699
      %v1008 = vadd.f32 %v392, %v700
      %v1009 = vadd.f32 %v393, %v701
      %v1010 = vadd.f32 %v394, %v702
      %v1011 = vadd.f32 %v395, %v703
      %v1012 = vadd.f32 %v396, %v704
      %v1013 = vadd.f32 %v397, %v705
      %v1014 = vadd.f32 %v398, %v706
      %v1015 = vadd.f32 %v399, %v707
      %v1016 = vadd.f32 %v400, %v708
      %v1017 = vadd.f32 %v401, %v709
      %v1018 = vadd.f32 %v402, %v710
      %v1019 = vadd.f32 %v403, %v711
      %v1020 = vadd.f32 %v404, %v712
      %v1021 = vadd.f32 %v405, %v713
      %v1022 = vadd.f32 %v406, %v714
      %v1023 = vadd.f32 %v407, %v715
      %v1024 = vadd.f32 %v408, %v716
      %v1025 = vadd.f32 %v409, %v717
      %v1026 = vadd.f32 %v410, %v718
      %v1027 = vadd.f32 %v411, %v719
      %v1028 = vadd.f32 %v412, %v720
      %v1029 = vadd.f32 %v413, %v721
      %v1030 = vadd.f32 %v414, %v722
      %v1031 = vadd.f32 %v415, %v723
      %v1032 = vadd.f32 %v416, %v724
      %v1033 = vadd.f32 %v417, %v725
      %v1034 = vadd.f32 %v418, %v726
      %v1035 = vadd.f32 %v419, %v727
      %v1036 = vadd.f32 %v420, %v728
      %v1037 = vadd.f32 %v421, %v729
      %v1038 = vadd.f32 %v422, %v730
      %v1039 = vadd.f32 %v423, %v731
      %v1040 = vadd.f32 %v424, %v732
      %v1041 = vadd.f32 %v425, %v733
      %v1042 = vadd.f32 %v426, %v734
      %v1043 = vadd.f32 %v427, %v735
      %v1044 = vadd.f32 %v428, %v736
      %v1045 = vadd.f32 %v429, %v737
      %v1046 = vadd.f32 %v430, %v738
      %v1047 = vadd.f32 %v431, %v739
      %v1048 = vadd.f32 %v432, %v740
      %v1049 = vadd.f32 %v433, %v741
      %v1050 = vadd.f32 %v434, %v742
      %v1051 = vadd.f32 %v435, %v743
      %v1052 = vadd.f32 %v436, %v744
      %v1053 = vadd.f32 %v437, %v745
      %v1054 = vadd.f32 %v438, %v746
      %v1055 = vadd.f32 %v439, %v747
      %v1056 = vadd.f32 %v440, %v748
      %v1057 = vadd.f32 %v441, %v749
      %v1058 = vadd.f32 %v442, %v750
      %v1059 = vadd.f32 %v443, %v751
      %v1060 = vadd.f32 %v444, %v752
      %v1061 = vadd.f32 %v445, %v753
      %v1062 = vadd.f32 %v446, %v754
      %v1063 = vadd.f32 %v447, %v755
      %v1064 = vadd.f32 %v448, %v756
      %v1065 = vadd.f32 %v449, %v757
      %v1066 = vadd.f32 %v450, %v758
      %v1067 = vadd.f32 %v451, %v759
      %v1068 = vadd.f32 %v452, %v760
      %v1069 = vadd.f32 %v453, %v761
      %v1070 = vadd.f32 %v454, %v762
      %v1071 = vadd.f32 %v455, %v763
      %v1072 = vadd.f32 %v456, %v764
      %v1073 = vadd.f32 %v457, %v765
      %v1074 = vadd.f32 %v458, %v766
      %v1075 = vadd.f32 %v459, %v767
      %v1076 = vadd.f32 %v460, %v768
      %v1077 = vadd.f32 %v461, %v769
      %v1078 = vadd.f32 %v462, %v770
      %v1079 = vadd.f32 %v463, %v771
      %v1080 = vadd.f32 %v464, %v772
      %v1081 = vadd.f32 %v465, %v773
      %v1082 = vadd.f32 %v466, %v774
      %v1083 = vadd.f32 %v467, %v775
      %v1084 = vadd.f32 %v468, %v776
      %v1085 = vadd.f32 %v469, %v777
      %v1086 = vadd.f32 %v470, %v778
      %v1087 = vadd.f32 %v471, %v779
      %v1088 = vadd.f32 %v472, %v780
      %v1089 = vadd.f32 %v473, %v781
      %v1090 = vadd.f32 %v474, %v782
      %v1091 = vadd.f32 %v475, %v783
      %v1092 = vadd.f32 %v476, %v784
      %v1093 = vadd.f32 %v477, %v785
      %v1094 = vadd.f32 %v478, %v786
      %v1095 = vadd.f32 %v479, %v787
      %v1096 = vadd.f32 %v480, %v788
      %v1097 = vadd.f32 %v481, %v789
      %v1098 = vadd.f32 %v482, %v790
      %v1099 = vadd.f32 %v483, %v791
      %v1100 = vadd.f32 %v484, %v792
      %v1101 = vadd.f32 %v485, %v793
      %v1102 = vadd.f32 %v486, %v794
      %v1103 = vadd.f32 %v487, %v795
      %v1104 = vmax.f32 %v796, 0.0
      %v1105 = vmax.f32 %v797, 0.0
      %v1106 = vmax.f32 %v798, 0.0
      %v1107 = vmax.f32 %v799, 0.0
      %v1108 = vmax.f32 %v800, 0.0
      %v1109 = vmax.f32 %v801, 0.0
      %v1110 = vmax.f32 %v802, 0.0
      %v1111 = vmax.f32 %v803, 0.0
      %v1112 = vmax.f32 %v804, 0.0
      %v1113 = vmax.f32 %v805, 0.0
      %v1114 = vmax.f32 %v806, 0.0
      %v1115 = vmax.f32 %v807, 0.0
      %v1116 = vmax.f32 %v808, 0.0
      %v1117 = vmax.f32 %v809, 0.0
      %v1118 = vmax.f32 %v810, 0.0
      %v1119 = vmax.f32 %v811, 0.0
      %v1120 = vmax.f32 %v812, 0.0
      %v1121 = vmax.f32 %v813, 0.0
      %v1122 = vmax.f32 %v814, 0.0
      %v1123 = vmax.f32 %v815, 0.0
      %v1124 = vmax.f32 %v816, 0.0
      %v1125 = vmax.f32 %v817, 0.0
      %v1126 = vmax.f32 %v818, 0.0
      %v1127 = vmax.f32 %v819, 0.0
      %v1128 = vmax.f32 %v820, 0.0
      %v1129 = vmax.f32 %v821, 0.0
      %v1130 = vmax.f32 %v822, 0.0
      %v1131 = vmax.f32 %v823, 0.0
      %v1132 = vmax.f32 %v824, 0.0
      %v1133 = vmax.f32 %v825, 0.0
      %v1134 = vmax.f32 %v826, 0.0
      %v1135 = vmax.f32 %v827, 0.0
      %v1136 = vmax.f32 %v828, 0.0
      %v1137 = vmax.f32 %v829, 0.0
      %v1138 = vmax.f32 %v830, 0.0
      %v1139 = vmax.f32 %v831, 0.0
      %v1140 = vmax.f32 %v832, 0.0
      %v1141 = vmax.f32 %v833, 0.0
      %v1142 = vmax.f32 %v834, 0.0
      %v1143 = vmax.f32 %v835, 0.0
      %v1144 = vmax.f32 %v836, 0.0
      %v1145 = vmax.f32 %v837, 0.0
      %v1146 = vmax.f32 %v838, 0.0
      %v1147 = vmax.f32 %v839, 0.0
      %v1148 = vmax.f32 %v840, 0.0
      %v1149 = vmax.f32 %v841, 0.0
      %v1150 = vmax.f32 %v842, 0.0
      %v1151 = vmax.f32 %v843, 0.0
      %v1152 = vmax.f32 %v844, 0.0
      %v1153 = vmax.f32 %v845, 0.0
      %v1154 = vmax.f32 %v846, 0.0
      %v1155 = vmax.f32 %v847, 0.0
      %v1156 = vmax.f32 %v848, 0.0
      %v1157 = vmax.f32 %v849, 0.0
      %v1158 = vmax.f32 %v850, 0.0
      %v1159 = vmax.f32 %v851, 0.0
      %v1160 = vmax.f32 %v852, 0.0
      %v1161 = vmax.f32 %v853, 0.0
      %v1162 = vmax.f32 %v854, 0.0
      %v1163 = vmax.f32 %v855, 0.0
      %v1164 = vmax.f32 %v856, 0.0
      %v1165 = vmax.f32 %v857, 0.0
      %v1166 = vmax.f32 %v858, 0.0
      %v1167 = vmax.f32 %v859, 0.0
      %v1168 = vmax.f32 %v860, 0.0
      %v1169 = vmax.f32 %v861, 0.0
      %v1170 = vmax.f32 %v862, 0.0
      %v1171 = vmax.f32 %v863, 0.0
      %v1172 = vmax.f32 %v864, 0.0
      %v1173 = vmax.f32 %v865, 0.0
      %v1174 = vmax.f32 %v866, 0.0
      %v1175 = vmax.f32 %v867, 0.0
      %v1176 = vmax.f32 %v868, 0.0
      %v1177 = vmax.f32 %v869, 0.0
      %v1178 = vmax.f32 %v870, 0.0
      %v1179 = vmax.f32 %v871, 0.0
      %v1180 = vmax.f32 %v872, 0.0
      %v1181 = vmax.f32 %v873, 0.0
      %v1182 = vmax.f32 %v874, 0.0
      %v1183 = vmax.f32 %v875, 0.0
      %v1184 = vmax.f32 %v876, 0.0
      %v1185 = vmax.f32 %v877, 0.0
      %v1186 = vmax.f32 %v878, 0.0
      %v1187 = vmax.f32 %v879, 0.0
      %v1188 = vmax.f32 %v880, 0.0
      %v1189 = vmax.f32 %v881, 0.0
      %v1190 = vmax.f32 %v882, 0.0
      %v1191 = vmax.f32 %v883, 0.0
      %v1192 = vmax.f32 %v884, 0.0
      %v1193 = vmax.f32 %v885, 0.0
      %v1194 = vmax.f32 %v886, 0.0
      %v1195 = vmax.f32 %v887, 0.0
      %v1196 = vmax.f32 %v888, 0.0
      %v1197 = vmax.f32 %v889, 0.0
      %v1198 = vmax.f32 %v890, 0.0
      %v1199 = vmax.f32 %v891, 0.0
      %v1200 = vmax.f32 %v892, 0.0
      %v1201 = vmax.f32 %v893, 0.0
      %v1202 = vmax.f32 %v894, 0.0
      %v1203 = vmax.f32 %v895, 0.0
      %v1204 = vmax.f32 %v896, 0.0
      %v1205 = vmax.f32 %v897, 0.0
      %v1206 = vmax.f32 %v898, 0.0
      %v1207 = vmax.f32 %v899, 0.0
      %v1208 = vmax.f32 %v900, 0.0
      %v1209 = vmax.f32 %v901, 0.0
      %v1210 = vmax.f32 %v902, 0.0
      %v1211 = vmax.f32 %v903, 0.0
      %v1212 = vmax.f32 %v904, 0.0
      %v1213 = vmax.f32 %v905, 0.0
      %v1214 = vmax.f32 %v906, 0.0
      %v1215 = vmax.f32 %v907, 0.0
      %v1216 = vmax.f32 %v908, 0.0
      %v1217 = vmax.f32 %v909, 0.0
      %v1218 = vmax.f32 %v910, 0.0
      %v1219 = vmax.f32 %v911, 0.0
      %v1220 = vmax.f32 %v912, 0.0
      %v1221 = vmax.f32 %v913, 0.0
      %v1222 = vmax.f32 %v914, 0.0
      %v1223 = vmax.f32 %v915, 0.0
      %v1224 = vmax.f32 %v916, 0.0
      %v1225 = vmax.f32 %v917, 0.0
      %v1226 = vmax.f32 %v918, 0.0
      %v1227 = vmax.f32 %v919, 0.0
      %v1228 = vmax.f32 %v920, 0.0
      %v1229 = vmax.f32 %v921, 0.0
      %v1230 = vmax.f32 %v922, 0.0
      %v1231 = vmax.f32 %v923, 0.0
      %v1232 = vmax.f32 %v924, 0.0
      %v1233 = vmax.f32 %v925, 0.0
      %v1234 = vmax.f32 %v926, 0.0
      %v1235 = vmax.f32 %v927, 0.0
      %v1236 = vmax.f32 %v928, 0.0
      %v1237 = vmax.f32 %v929, 0.0
      %v1238 = vmax.f32 %v930, 0.0
      %v1239 = vmax.f32 %v931, 0.0
      %v1240 = vmax.f32 %v932, 0.0
      %v1241 = vmax.f32 %v933, 0.0
      %v1242 = vmax.f32 %v934, 0.0
      %v1243 = vmax.f32 %v935, 0.0
      %v1244 = vmax.f32 %v936, 0.0
      %v1245 = vmax.f32 %v937, 0.0
      %v1246 = vmax.f32 %v938, 0.0
      %v1247 = vmax.f32 %v939, 0.0
      %v1248 = vmax.f32 %v940, 0.0
      %v1249 = vmax.f32 %v941, 0.0
      %v1250 = vmax.f32 %v942, 0.0
      %v1251 = vmax.f32 %v943, 0.0
      %v1252 = vmax.f32 %v944, 0.0
      %v1253 = vmax.f32 %v945, 0.0
      %v1254 = vmax.f32 %v946, 0.0
      %v1255 = vmax.f32 %v947, 0.0
      %v1256 = vmax.f32 %v948, 0.0
      %v1257 = vmax.f32 %v949, 0.0
      %v1258 = vmax.f32 %v950, 0.0
      %v1259 = vmax.f32 %v951, 0.0
      %v1260 = vmax.f32 %v952, 0.0
      %v1261 = vmax.f32 %v953, 0.0
      %v1262 = vmax.f32 %v954, 0.0
      %v1263 = vmax.f32 %v955, 0.0
      %v1264 = vmax.f32 %v956, 0.0
      %v1265 = vmax.f32 %v957, 0.0
      %v1266 = vmax.f32 %v958, 0.0
      %v1267 = vmax.f32 %v959, 0.0
      %v1268 = vmax.f32 %v960, 0.0
      %v1269 = vmax.f32 %v961, 0.0
      %v1270 = vmax.f32 %v962, 0.0
      %v1271 = vmax.f32 %v963, 0.0
      %v1272 = vmax.f32 %v964, 0.0
      %v1273 = vmax.f32 %v965, 0.0
      %v1274 = vmax.f32 %v966, 0.0
      %v1275 = vmax.f32 %v967, 0.0
      %v1276 = vmax.f32 %v968, 0.0
      %v1277 = vmax.f32 %v969, 0.0
      %v1278 = vmax.f32 %v970, 0.0
      %v1279 = vmax.f32 %v971, 0.0
      %v1280 = vmax.f32 %v972, 0.0
      %v1281 = vmax.f32 %v973, 0.0
      %v1282 = vmax.f32 %v974, 0.0
      %v1283 = vmax.f32 %v975, 0.0
      %v1284 = vmax.f32 %v976, 0.0
      %v1285 = vmax.f32 %v977, 0.0
      %v1286 = vmax.f32 %v978, 0.0
      %v1287 = vmax.f32 %v979, 0.0
      %v1288 = vmax.f32 %v980, 0.0
      %v1289 = vmax.f32 %v981, 0.0
      %v1290 = vmax.f32 %v982, 0.0
      %v1291 = vmax.f32 %v983, 0.0
      %v1292 = vmax.f32 %v984, 0.0
      %v1293 = vmax.f32 %v985, 0.0
      %v1294 = vmax.f32 %v986, 0.0
      %v1295 = vmax.f32 %v987, 0.0
      %v1296 = vmax.f32 %v988, 0.0
      %v1297 = vmax.f32 %v989, 0.0
      %v1298 = vmax.f32 %v990, 0.0
      %v1299 = vmax.f32 %v991, 0.0
      %v1300 = vmax.f32 %v992, 0.0
      %v1301 = vmax.f32 %v993, 0.0
      %v1302 = vmax.f32 %v994, 0.0
      %v1303 = vmax.f32 %v995, 0.0
      %v1304 = vmax.f32 %v996, 0.0
      %v1305 = vmax.f32 %v997, 0.0
      %v1306 = vmax.f32 %v998, 0.0
      %v1307 = vmax.f32 %v999, 0.0
      %v1308 = vmax.f32 %v1000, 0.0
      %v1309 = vmax.f32 %v1001, 0.0
      %v1310 = vmax.f32 %v1002, 0.0
      %v1311 = vmax.f32 %v1003, 0.0
      %v1312 = vmax.f32 %v1004, 0.0
      %v1313 = vmax.f32 %v1005, 0.0
      %v1314 = vmax.f32 %v1006, 0.0
      %v1315 = vmax.f32 %v1007, 0.0
      %v1316 = vmax.f32 %v1008, 0.0
      %v1317 = vmax.f32 %v1009, 0.0
      %v1318 = vmax.f32 %v1010, 0.0
      %v1319 = vmax.f32 %v1011, 0.0
      %v1320 = vmax.f32 %v1012, 0.0
      %v1321 = vmax.f32 %v1013, 0.0
      %v1322 = vmax.f32 %v1014, 0.0
      %v1323 = vmax.f32 %v1015, 0.0
      %v1324 = vmax.f32 %v1016, 0.0
      %v1325 = vmax.f32 %v1017, 0.0
      %v1326 = vmax.f32 %v1018, 0.0
      %v1327 = vmax.f32 %v1019, 0.0
      %v1328 = vmax.f32 %v1020, 0.0
      %v1329 = vmax.f32 %v1021, 0.0
      %v1330 = vmax.f32 %v1022, 0.0
      %v1331 = vmax.f32 %v1023, 0.0
      %v1332 = vmax.f32 %v1024, 0.0
      %v1333 = vmax.f32 %v1025, 0.0
      %v1334 = vmax.f32 %v1026, 0.0
      %v1335 = vmax.f32 %v1027, 0.0
      %v1336 = vmax.f32 %v1028, 0.0
      %v1337 = vmax.f32 %v1029, 0.0
      %v1338 = vmax.f32 %v1030, 0.0
      %v1339 = vmax.f32 %v1031, 0.0
      %v1340 = vmax.f32 %v1032, 0.0
      %v1341 = vmax.f32 %v1033, 0.0
      %v1342 = vmax.f32 %v1034, 0.0
      %v1343 = vmax.f32 %v1035, 0.0
      %v1344 = vmax.f32 %v1036, 0.0
      %v1345 = vmax.f32 %v1037, 0.0
      %v1346 = vmax.f32 %v1038, 0.0
      %v1347 = vmax.f32 %v1039, 0.0
      %v1348 = vmax.f32 %v1040, 0.0
      %v1349 = vmax.f32 %v1041, 0.0
      %v1350 = vmax.f32 %v1042, 0.0
      %v1351 = vmax.f32 %v1043, 0.0
      %v1352 = vmax.f32 %v1044, 0.0
      %v1353 = vmax.f32 %v1045, 0.0
      %v1354 = vmax.f32 %v1046, 0.0
      %v1355 = vmax.f32 %v1047, 0.0
      %v1356 = vmax.f32 %v1048, 0.0
      %v1357 = vmax.f32 %v1049, 0.0
      %v1358 = vmax.f32 %v1050, 0.0
      %v1359 = vmax.f32 %v1051, 0.0
      %v1360 = vmax.f32 %v1052, 0.0
      %v1361 = vmax.f32 %v1053, 0.0
      %v1362 = vmax.f32 %v1054, 0.0
      %v1363 = vmax.f32 %v1055, 0.0
      %v1364 = vmax.f32 %v1056, 0.0
      %v1365 = vmax.f32 %v1057, 0.0
      %v1366 = vmax.f32 %v1058, 0.0
      %v1367 = vmax.f32 %v1059, 0.0
      %v1368 = vmax.f32 %v1060, 0.0
      %v1369 = vmax.f32 %v1061, 0.0
      %v1370 = vmax.f32 %v1062, 0.0
      %v1371 = vmax.f32 %v1063, 0.0
      %v1372 = vmax.f32 %v1064, 0.0
      %v1373 = vmax.f32 %v1065, 0.0
      %v1374 = vmax.f32 %v1066, 0.0
      %v1375 = vmax.f32 %v1067, 0.0
      %v1376 = vmax.f32 %v1068, 0.0
      %v1377 = vmax.f32 %v1069, 0.0
      %v1378 = vmax.f32 %v1070, 0.0
      %v1379 = vmax.f32 %v1071, 0.0
      %v1380 = vmax.f32 %v1072, 0.0
      %v1381 = vmax.f32 %v1073, 0.0
      %v1382 = vmax.f32 %v1074, 0.0
      %v1383 = vmax.f32 %v1075, 0.0
      %v1384 = vmax.f32 %v1076, 0.0
      %v1385 = vmax.f32 %v1077, 0.0
      %v1386 = vmax.f32 %v1078, 0.0
      %v1387 = vmax.f32 %v1079, 0.0
      %v1388 = vmax.f32 %v1080, 0.0
      %v1389 = vmax.f32 %v1081, 0.0
      %v1390 = vmax.f32 %v1082, 0.0
      %v1391 = vmax.f32 %v1083, 0.0
      %v1392 = vmax.f32 %v1084, 0.0
      %v1393 = vmax.f32 %v1085, 0.0
      %v1394 = vmax.f32 %v1086, 0.0
      %v1395 = vmax.f32 %v1087, 0.0
      %v1396 = vmax.f32 %v1088, 0.0
      %v1397 = vmax.f32 %v1089, 0.0
      %v1398 = vmax.f32 %v1090, 0.0
      %v1399 = vmax.f32 %v1091, 0.0
      %v1400 = vmax.f32 %v1092, 0.0
      %v1401 = vmax.f32 %v1093, 0.0
      %v1402 = vmax.f32 %v1094, 0.0
      %v1403 = vmax.f32 %v1095, 0.0
      %v1404 = vmax.f32 %v1096, 0.0
      %v1405 = vmax.f32 %v1097, 0.0
      %v1406 = vmax.f32 %v1098, 0.0
      %v1407 = vmax.f32 %v1099, 0.0
      %v1408 = vmax.f32 %v1100, 0.0
      %v1409 = vmax.f32 %v1101, 0.0
      %v1410 = vmax.f32 %v1102, 0.0
      %v1411 = vmax.f32 %v1103, 0.0
      %v1412 = vpack.c.bf16 %v1106, %v1104
      %v1413 = vpack.c.bf16 %v1107, %v1105
      %v1414 = vpack.c.bf16 %v1110, %v1108
      %v1415 = vpack.c.bf16 %v1111, %v1109
      %v1416 = vpack.c.bf16 %v1114, %v1112
      %v1417 = vpack.c.bf16 %v1115, %v1113
      %v1418 = vpack.c.bf16 %v1118, %v1116
      %v1419 = vpack.c.bf16 %v1119, %v1117
      %v1420 = vpack.c.bf16 %v1122, %v1120
      %v1421 = vpack.c.bf16 %v1123, %v1121
      %v1422 = vpack.c.bf16 %v1126, %v1124
      %v1423 = vpack.c.bf16 %v1127, %v1125
      %v1424 = vpack.c.bf16 %v1130, %v1128
      %v1425 = vpack.c.bf16 %v1131, %v1129
      %v1426 = vpack.c.bf16 %v1134, %v1132
      %v1427 = vpack.c.bf16 %v1135, %v1133
      %v1428 = vpack.c.bf16 %v1138, %v1136
      %v1429 = vpack.c.bf16 %v1139, %v1137
      %v1430 = vpack.c.bf16 %v1142, %v1140
      %v1431 = vpack.c.bf16 %v1143, %v1141
      %v1432 = vpack.c.bf16 %v1146, %v1144
      %v1433 = vpack.c.bf16 %v1147, %v1145
      %v1434 = vpack.c.bf16 %v1150, %v1148
      %v1435 = vpack.c.bf16 %v1151, %v1149
      %v1436 = vpack.c.bf16 %v1154, %v1152
      %v1437 = vpack.c.bf16 %v1155, %v1153
      %v1438 = vpack.c.bf16 %v1158, %v1156
      %v1439 = vpack.c.bf16 %v1159, %v1157
      %v1440 = vpack.c.bf16 %v1162, %v1160
      %v1441 = vpack.c.bf16 %v1163, %v1161
      %v1442 = vpack.c.bf16 %v1166, %v1164
      %v1443 = vpack.c.bf16 %v1167, %v1165
      %v1444 = vpack.c.bf16 %v1170, %v1168
      %v1445 = vpack.c.bf16 %v1171, %v1169
      %v1446 = vpack.c.bf16 %v1174, %v1172
      %v1447 = vpack.c.bf16 %v1175, %v1173
      %v1448 = vpack.c.bf16 %v1178, %v1176
      %v1449 = vpack.c.bf16 %v1179, %v1177
      %v1450 = vpack.c.bf16 %v1182, %v1180
      %v1451 = vpack.c.bf16 %v1183, %v1181
      %v1452 = vpack.c.bf16 %v1186, %v1184
      %v1453 = vpack.c.bf16 %v1187, %v1185
      %v1454 = vpack.c.bf16 %v1190, %v1188
      %v1455 = vpack.c.bf16 %v1191, %v1189
      %v1456 = vpack.c.bf16 %v1194, %v1192
      %v1457 = vpack.c.bf16 %v1195, %v1193
      %v1458 = vpack.c.bf16 %v1198, %v1196
      %v1459 = vpack.c.bf16 %v1199, %v1197
      %v1460 = vpack.c.bf16 %v1202, %v1200
      %v1461 = vpack.c.bf16 %v1203, %v1201
      %v1462 = vpack.c.bf16 %v1206, %v1204
      %v1463 = vpack.c.bf16 %v1207, %v1205
      %v1464 = vpack.c.bf16 %v1210, %v1208
      %v1465 = vpack.c.bf16 %v1211, %v1209
      %v1466 = vpack.c.bf16 %v1214, %v1212
      %v1467 = vpack.c.bf16 %v1215, %v1213
      %v1468 = vpack.c.bf16 %v1218, %v1216
      %v1469 = vpack.c.bf16 %v1219, %v1217
      %v1470 = vpack.c.bf16 %v1222, %v1220
      %v1471 = vpack.c.bf16 %v1223, %v1221
      %v1472 = vpack.c.bf16 %v1226, %v1224
      %v1473 = vpack.c.bf16 %v1227, %v1225
      %v1474 = vpack.c.bf16 %v1230, %v1228
      %v1475 = vpack.c.bf16 %v1231, %v1229
      %v1476 = vpack.c.bf16 %v1234, %v1232
      %v1477 = vpack.c.bf16 %v1235, %v1233
      %v1478 = vpack.c.bf16 %v1238, %v1236
      %v1479 = vpack.c.bf16 %v1239, %v1237
      %v1480 = vpack.c.bf16 %v1242, %v1240
      %v1481 = vpack.c.bf16 %v1243, %v1241
      %v1482 = vpack.c.bf16 %v1246, %v1244
      %v1483 = vpack.c.bf16 %v1247, %v1245
      %v1484 = vpack.c.bf16 %v1250, %v1248
      %v1485 = vpack.c.bf16 %v1251, %v1249
      %v1486 = vpack.c.bf16 %v1254, %v1252
      %v1487 = vpack.c.bf16 %v1255, %v1253
      %v1488 = vpack.c.bf16 %v1258, %v1256
      %v1489 = vpack.c.bf16 %v1259, %v1257
      %v1490 = vpack.c.bf16 %v1262, %v1260
      %v1491 = vpack.c.bf16 %v1263, %v1261
      %v1492 = vpack.c.bf16 %v1266, %v1264
      %v1493 = vpack.c.bf16 %v1267, %v1265
      %v1494 = vpack.c.bf16 %v1270, %v1268
      %v1495 = vpack.c.bf16 %v1271, %v1269
      %v1496 = vpack.c.bf16 %v1274, %v1272
      %v1497 = vpack.c.bf16 %v1275, %v1273
      %v1498 = vpack.c.bf16 %v1278, %v1276
      %v1499 = vpack.c.bf16 %v1279, %v1277
      %v1500 = vpack.c.bf16 %v1282, %v1280
      %v1501 = vpack.c.bf16 %v1283, %v1281
      %v1502 = vpack.c.bf16 %v1286, %v1284
      %v1503 = vpack.c.bf16 %v1287, %v1285
      %v1504 = vpack.c.bf16 %v1290, %v1288
      %v1505 = vpack.c.bf16 %v1291, %v1289
      %v1506 = vpack.c.bf16 %v1294, %v1292
      %v1507 = vpack.c.bf16 %v1295, %v1293
      %v1508 = vpack.c.bf16 %v1298, %v1296
      %v1509 = vpack.c.bf16 %v1299, %v1297
      %v1510 = vpack.c.bf16 %v1302, %v1300
      %v1511 = vpack.c.bf16 %v1303, %v1301
      %v1512 = vpack.c.bf16 %v1306, %v1304
      %v1513 = vpack.c.bf16 %v1307, %v1305
      %v1514 = vpack.c.bf16 %v1310, %v1308
      %v1515 = vpack.c.bf16 %v1311, %v1309
      %v1516 = vpack.c.bf16 %v1314, %v1312
      %v1517 = vpack.c.bf16 %v1315, %v1313
      %v1518 = vpack.c.bf16 %v1318, %v1316
      %v1519 = vpack.c.bf16 %v1319, %v1317
      %v1520 = vpack.c.bf16 %v1322, %v1320
      %v1521 = vpack.c.bf16 %v1323, %v1321
      %v1522 = vpack.c.bf16 %v1326, %v1324
      %v1523 = vpack.c.bf16 %v1327, %v1325
      %v1524 = vpack.c.bf16 %v1330, %v1328
      %v1525 = vpack.c.bf16 %v1331, %v1329
      %v1526 = vpack.c.bf16 %v1334, %v1332
      %v1527 = vpack.c.bf16 %v1335, %v1333
      %v1528 = vpack.c.bf16 %v1338, %v1336
      %v1529 = vpack.c.bf16 %v1339, %v1337
      %v1530 = vpack.c.bf16 %v1342, %v1340
      %v1531 = vpack.c.bf16 %v1343, %v1341
      %v1532 = vpack.c.bf16 %v1346, %v1344
      %v1533 = vpack.c.bf16 %v1347, %v1345
      %v1534 = vpack.c.bf16 %v1350, %v1348
      %v1535 = vpack.c.bf16 %v1351, %v1349
      %v1536 = vpack.c.bf16 %v1354, %v1352
      %v1537 = vpack.c.bf16 %v1355, %v1353
      %v1538 = vpack.c.bf16 %v1358, %v1356
      %v1539 = vpack.c.bf16 %v1359, %v1357
      %v1540 = vpack.c.bf16 %v1362, %v1360
      %v1541 = vpack.c.bf16 %v1363, %v1361
      %v1542 = vpack.c.bf16 %v1366, %v1364
      %v1543 = vpack.c.bf16 %v1367, %v1365
      %v1544 = vpack.c.bf16 %v1370, %v1368
      %v1545 = vpack.c.bf16 %v1371, %v1369
      %v1546 = vpack.c.bf16 %v1374, %v1372
      %v1547 = vpack.c.bf16 %v1375, %v1373
      %v1548 = vpack.c.bf16 %v1378, %v1376
      %v1549 = vpack.c.bf16 %v1379, %v1377
      %v1550 = vpack.c.bf16 %v1382, %v1380
      %v1551 = vpack.c.bf16 %v1383, %v1381
      %v1552 = vpack.c.bf16 %v1386, %v1384
      %v1553 = vpack.c.bf16 %v1387, %v1385
      %v1554 = vpack.c.bf16 %v1390, %v1388
      %v1555 = vpack.c.bf16 %v1391, %v1389
      %v1556 = vpack.c.bf16 %v1394, %v1392
      %v1557 = vpack.c.bf16 %v1395, %v1393
      %v1558 = vpack.c.bf16 %v1398, %v1396
      %v1559 = vpack.c.bf16 %v1399, %v1397
      %v1560 = vpack.c.bf16 %v1402, %v1400
      %v1561 = vpack.c.bf16 %v1403, %v1401
      %v1562 = vpack.c.bf16 %v1406, %v1404
      %v1563 = vpack.c.bf16 %v1407, %v1405
      %v1564 = vpack.c.bf16 %v1410, %v1408
      %v1565 = vpack.c.bf16 %v1411, %v1409
      %v1566 = vld [vmem:[%s170] sm:$0xff]
      %v1567 = vld [vmem:[%s170 + $0x8] sm:$0xff]
      %v1568 = vld [vmem:[%s170 + $0x10] sm:$0xff]
      %v1569 = vld [vmem:[%s170 + $0x18] sm:$0xff]
      %v1570 = vld [vmem:[%s170 + $0x20] sm:$0xff]
      %v1571 = vld [vmem:[%s170 + $0x28] sm:$0xff]
      %v1572 = vld [vmem:[%s170 + $0x30] sm:$0xff]
      %v1573 = vld [vmem:[%s170 + $0x38] sm:$0xff]
      %v1574 = vld [vmem:[%s170 + $0x40] sm:$0xff]
      %v1575 = vld [vmem:[%s170 + $0x48] sm:$0xff]
      %v1576 = vld [vmem:[%s170 + $0x50] sm:$0xff]
      %v1577 = vld [vmem:[%s170 + $0x58] sm:$0xff]
      %v1578 = vld [vmem:[%s170 + $0x60] sm:$0xff]
      %v1579 = vld [vmem:[%s170 + $0x68] sm:$0xff]
      %v1580 = vld [vmem:[%s170 + $0x70] sm:$0xff]
      %v1581 = vld [vmem:[%s170 + $0x78] sm:$0xff]
      %v1582 = vld [vmem:[%s170 + $0x80] sm:$0xff]
      %v1583 = vld [vmem:[%s170 + $0x88] sm:$0xff]
      %v1584 = vld [vmem:[%s170 + $0x90] sm:$0xff]
      %v1585 = vld [vmem:[%s170 + $0x98] sm:$0xff]
      %v1586 = vld [vmem:[%s170 + $0xa0] sm:$0xff]
      %v1587 = vld [vmem:[%s170 + $0xa8] sm:$0xff]
      %v1588 = vld [vmem:[%s170 + $0xb0] sm:$0xff]
      %v1589 = vld [vmem:[%s170 + $0xb8] sm:$0xff]
      %v1590 = vld [vmem:[%s170 + $0xc0] sm:$0xff]
      %v1591 = vld [vmem:[%s170 + $0xc8] sm:$0xff]
      %v1592 = vld [vmem:[%s170 + $0xd0] sm:$0xff]
      %v1593 = vld [vmem:[%s170 + $0xd8] sm:$0xff]
      %v1594 = vld [vmem:[%s170 + $0xe0] sm:$0xff]
      %v1595 = vld [vmem:[%s170 + $0xe8] sm:$0xff]
      %v1596 = vld [vmem:[%s170 + $0xf0] sm:$0xff]
      %v1597 = vld [vmem:[%s170 + $0xf8] sm:$0xff]
      %v1598 = vld [vmem:[%s170 + $0x100] sm:$0xff]
      %v1599 = vld [vmem:[%s170 + $0x108] sm:$0xff]
      %v1600 = vld [vmem:[%s170 + $0x110] sm:$0xff]
      %v1601 = vld [vmem:[%s170 + $0x118] sm:$0xff]
      %v1602 = vld [vmem:[%s170 + $0x120] sm:$0xff]
      %v1603 = vld [vmem:[%s170 + $0x128] sm:$0xff]
      %v1604 = vld [vmem:[%s170 + $0x130] sm:$0xff]
      %v1605 = vld [vmem:[%s170 + $0x138] sm:$0xff]
      %v1606 = vld [vmem:[%s170 + $0x140] sm:$0xff]
      %v1607 = vld [vmem:[%s170 + $0x148] sm:$0xff]
      %v1608 = vld [vmem:[%s170 + $0x150] sm:$0xff]
      %v1609 = vld [vmem:[%s170 + $0x158] sm:$0xff]
      %v1610 = vld [vmem:[%s170 + $0x160] sm:$0xff]
      %v1611 = vld [vmem:[%s170 + $0x168] sm:$0xff]
      %v1612 = vld [vmem:[%s170 + $0x170] sm:$0xff]
      %v1613 = vld [vmem:[%s170 + $0x178] sm:$0xff]
      %v1614 = vld [vmem:[%s170 + $0x180] sm:$0xff]
      %v1615 = vld [vmem:[%s170 + $0x188] sm:$0xff]
      %v1616 = vld [vmem:[%s170 + $0x190] sm:$0xff]
      %v1617 = vld [vmem:[%s170 + $0x198] sm:$0xff]
      %v1618 = vld [vmem:[%s170 + $0x1a0] sm:$0xff]
      %v1619 = vld [vmem:[%s170 + $0x1a8] sm:$0xff]
      %v1620 = vld [vmem:[%s170 + $0x1b0] sm:$0xff]
      %v1621 = vld [vmem:[%s170 + $0x1b8] sm:$0xff]
      %v1622 = vld [vmem:[%s170 + $0x1c0] sm:$0xff]
      %v1623 = vld [vmem:[%s170 + $0x1c8] sm:$0xff]
      %v1624 = vld [vmem:[%s170 + $0x1d0] sm:$0xff]
      %v1625 = vld [vmem:[%s170 + $0x1d8] sm:$0xff]
      %v1626 = vld [vmem:[%s170 + $0x1e0] sm:$0xff]
      %v1627 = vld [vmem:[%s170 + $0x1e8] sm:$0xff]
      %v1628 = vld [vmem:[%s170 + $0x1f0] sm:$0xff]
      %v1629 = vld [vmem:[%s170 + $0x1f8] sm:$0xff]
      %v1630 = vld [vmem:[%s170 + $0x200] sm:$0xff]
      %v1631 = vld [vmem:[%s170 + $0x208] sm:$0xff]
      %v1632 = vld [vmem:[%s170 + $0x210] sm:$0xff]
      %v1633 = vld [vmem:[%s170 + $0x218] sm:$0xff]
      %v1634 = vld [vmem:[%s170 + $0x220] sm:$0xff]
      %v1635 = vld [vmem:[%s170 + $0x228] sm:$0xff]
      %v1636 = vld [vmem:[%s170 + $0x230] sm:$0xff]
      %v1637 = vld [vmem:[%s170 + $0x238] sm:$0xff]
      %v1638 = vld [vmem:[%s170 + $0x240] sm:$0xff]
      %v1639 = vld [vmem:[%s170 + $0x248] sm:$0xff]
      %v1640 = vld [vmem:[%s170 + $0x250] sm:$0xff]
      %v1641 = vld [vmem:[%s170 + $0x258] sm:$0xff]
      %v1642 = vld [vmem:[%s170 + $0x260] sm:$0xff]
      %v1643 = vld [vmem:[%s170 + $0x268] sm:$0xff]
      %v1644 = vld [vmem:[%s170 + $0x270] sm:$0xff]
      %v1645 = vld [vmem:[%s170 + $0x278] sm:$0xff]
      %v1646 = vld [vmem:[%s170 + $0x280] sm:$0xff]
      %v1647 = vld [vmem:[%s170 + $0x288] sm:$0xff]
      %v1648 = vld [vmem:[%s170 + $0x290] sm:$0xff]
      %v1649 = vld [vmem:[%s170 + $0x298] sm:$0xff]
      %v1650 = vld [vmem:[%s170 + $0x2a0] sm:$0xff]
      %v1651 = vld [vmem:[%s170 + $0x2a8] sm:$0xff]
      %v1652 = vld [vmem:[%s170 + $0x2b0] sm:$0xff]
      %v1653 = vld [vmem:[%s170 + $0x2b8] sm:$0xff]
      %v1654 = vld [vmem:[%s170 + $0x2c0] sm:$0xff]
      %v1655 = vld [vmem:[%s170 + $0x2c8] sm:$0xff]
      %v1656 = vld [vmem:[%s170 + $0x2d0] sm:$0xff]
      %v1657 = vld [vmem:[%s170 + $0x2d8] sm:$0xff]
      %v1658 = vld [vmem:[%s170 + $0x2e0] sm:$0xff]
      %v1659 = vld [vmem:[%s170 + $0x2e8] sm:$0xff]
      %v1660 = vld [vmem:[%s170 + $0x2f0] sm:$0xff]
      %v1661 = vld [vmem:[%s170 + $0x2f8] sm:$0xff]
      %v1662 = vld [vmem:[%s170 + $0x300] sm:$0xff]
      %v1663 = vld [vmem:[%s170 + $0x308] sm:$0xff]
      %v1664 = vld [vmem:[%s170 + $0x310] sm:$0xff]
      %v1665 = vld [vmem:[%s170 + $0x318] sm:$0xff]
      %v1666 = vld [vmem:[%s170 + $0x320] sm:$0xff]
      %v1667 = vld [vmem:[%s170 + $0x328] sm:$0xff]
      %v1668 = vld [vmem:[%s170 + $0x330] sm:$0xff]
      %v1669 = vld [vmem:[%s170 + $0x338] sm:$0xff]
      %v1670 = vld [vmem:[%s170 + $0x340] sm:$0xff]
      %v1671 = vld [vmem:[%s170 + $0x348] sm:$0xff]
      %v1672 = vld [vmem:[%s170 + $0x350] sm:$0xff]
      %v1673 = vld [vmem:[%s170 + $0x358] sm:$0xff]
      %v1674 = vld [vmem:[%s170 + $0x360] sm:$0xff]
      %v1675 = vld [vmem:[%s170 + $0x368] sm:$0xff]
      %v1676 = vld [vmem:[%s170 + $0x370] sm:$0xff]
      %v1677 = vld [vmem:[%s170 + $0x378] sm:$0xff]
      %v1678 = vld [vmem:[%s170 + $0x380] sm:$0xff]
      %v1679 = vld [vmem:[%s170 + $0x388] sm:$0xff]
      %v1680 = vld [vmem:[%s170 + $0x390] sm:$0xff]
      %v1681 = vld [vmem:[%s170 + $0x398] sm:$0xff]
      %v1682 = vld [vmem:[%s170 + $0x3a0] sm:$0xff]
      %v1683 = vld [vmem:[%s170 + $0x3a8] sm:$0xff]
      %v1684 = vld [vmem:[%s170 + $0x3b0] sm:$0xff]
      %v1685 = vld [vmem:[%s170 + $0x3b8] sm:$0xff]
      %v1686 = vld [vmem:[%s170 + $0x3c0] sm:$0xff]
      %v1687 = vld [vmem:[%s170 + $0x3c8] sm:$0xff]
      %v1688 = vld [vmem:[%s170 + $0x3d0] sm:$0xff]
      %v1689 = vld [vmem:[%s170 + $0x3d8] sm:$0xff]
      %v1690 = vld [vmem:[%s170 + $0x3e0] sm:$0xff]
      %v1691 = vld [vmem:[%s170 + $0x3e8] sm:$0xff]
      %v1692 = vld [vmem:[%s170 + $0x3f0] sm:$0xff]
      %v1693 = vld [vmem:[%s170 + $0x3f8] sm:$0xff]
      %v1694 = vld [vmem:[%s170 + $0x400] sm:$0xff]
      %v1695 = vld [vmem:[%s170 + $0x408] sm:$0xff]
      %v1696 = vld [vmem:[%s170 + $0x410] sm:$0xff]
      %v1697 = vld [vmem:[%s170 + $0x418] sm:$0xff]
      %v1698 = vld [vmem:[%s170 + $0x420] sm:$0xff]
      %v1699 = vld [vmem:[%s170 + $0x428] sm:$0xff]
      %v1700 = vld [vmem:[%s170 + $0x430] sm:$0xff]
      %v1701 = vld [vmem:[%s170 + $0x438] sm:$0xff]
      %v1702 = vld [vmem:[%s170 + $0x440] sm:$0xff]
      %v1703 = vld [vmem:[%s170 + $0x448] sm:$0xff]
      %v1704 = vld [vmem:[%s170 + $0x450] sm:$0xff]
      %v1705 = vld [vmem:[%s170 + $0x458] sm:$0xff]
      %v1706 = vld [vmem:[%s170 + $0x460] sm:$0xff]
      %v1707 = vld [vmem:[%s170 + $0x468] sm:$0xff]
      %v1708 = vld [vmem:[%s170 + $0x470] sm:$0xff]
      %v1709 = vld [vmem:[%s170 + $0x478] sm:$0xff]
      %v1710 = vld [vmem:[%s170 + $0x480] sm:$0xff]
      %v1711 = vld [vmem:[%s170 + $0x488] sm:$0xff]
      %v1712 = vld [vmem:[%s170 + $0x490] sm:$0xff]
      %v1713 = vld [vmem:[%s170 + $0x498] sm:$0xff]
      %v1714 = vld [vmem:[%s170 + $0x4a0] sm:$0xff]
      %v1715 = vld [vmem:[%s170 + $0x4a8] sm:$0xff]
      %v1716 = vld [vmem:[%s170 + $0x4b0] sm:$0xff]
      %v1717 = vld [vmem:[%s170 + $0x4b8] sm:$0xff]
      %v1718 = vld [vmem:[%s170 + $0x4c0] sm:$0xff]
      %v1719 = vld [vmem:[%s170 + $0x4c8] sm:$0xff]
      %v1720 = vld [vmem:[%s170 + $0x4d0] sm:$0xff]
      %v1721 = vld [vmem:[%s170 + $0x4d8] sm:$0xff]
      %v1722 = vld [vmem:[%s170 + $0x4e0] sm:$0xff]
      %v1723 = vld [vmem:[%s170 + $0x4e8] sm:$0xff]
      %v1724 = vld [vmem:[%s170 + $0x4f0] sm:$0xff]
      %v1725 = vld [vmem:[%s170 + $0x4f8] sm:$0xff]
      %v1726 = vld [vmem:[%s170 + $0x500] sm:$0xff]
      %v1727 = vld [vmem:[%s170 + $0x508] sm:$0xff]
      %v1728 = vld [vmem:[%s170 + $0x510] sm:$0xff]
      %v1729 = vld [vmem:[%s170 + $0x518] sm:$0xff]
      %v1730 = vld [vmem:[%s170 + $0x520] sm:$0xff]
      %v1731 = vld [vmem:[%s170 + $0x528] sm:$0xff]
      %v1732 = vld [vmem:[%s170 + $0x530] sm:$0xff]
      %v1733 = vld [vmem:[%s170 + $0x538] sm:$0xff]
      %v1734 = vld [vmem:[%s170 + $0x540] sm:$0xff]
      %v1735 = vld [vmem:[%s170 + $0x548] sm:$0xff]
      %v1736 = vld [vmem:[%s170 + $0x550] sm:$0xff]
      %v1737 = vld [vmem:[%s170 + $0x558] sm:$0xff]
      %v1738 = vld [vmem:[%s170 + $0x560] sm:$0xff]
      %v1739 = vld [vmem:[%s170 + $0x568] sm:$0xff]
      %v1740 = vld [vmem:[%s170 + $0x570] sm:$0xff]
      %v1741 = vld [vmem:[%s170 + $0x578] sm:$0xff]
      %v1742 = vld [vmem:[%s170 + $0x580] sm:$0xff]
      %v1743 = vld [vmem:[%s170 + $0x588] sm:$0xff]
      %v1744 = vld [vmem:[%s170 + $0x590] sm:$0xff]
      %v1745 = vld [vmem:[%s170 + $0x598] sm:$0xff]
      %v1746 = vld [vmem:[%s170 + $0x5a0] sm:$0xff]
      %v1747 = vld [vmem:[%s170 + $0x5a8] sm:$0xff]
      %v1748 = vld [vmem:[%s170 + $0x5b0] sm:$0xff]
      %v1749 = vld [vmem:[%s170 + $0x5b8] sm:$0xff]
      %v1750 = vld [vmem:[%s170 + $0x5c0] sm:$0xff]
      %v1751 = vld [vmem:[%s170 + $0x5c8] sm:$0xff]
      %v1752 = vld [vmem:[%s170 + $0x5d0] sm:$0xff]
      %v1753 = vld [vmem:[%s170 + $0x5d8] sm:$0xff]
      %v1754 = vld [vmem:[%s170 + $0x5e0] sm:$0xff]
      %v1755 = vld [vmem:[%s170 + $0x5e8] sm:$0xff]
      %v1756 = vld [vmem:[%s170 + $0x5f0] sm:$0xff]
      %v1757 = vld [vmem:[%s170 + $0x5f8] sm:$0xff]
      %v1758 = vld [vmem:[%s170 + $0x600] sm:$0xff]
      %v1759 = vld [vmem:[%s170 + $0x608] sm:$0xff]
      %v1760 = vld [vmem:[%s170 + $0x610] sm:$0xff]
      %v1761 = vld [vmem:[%s170 + $0x618] sm:$0xff]
      %v1762 = vld [vmem:[%s170 + $0x620] sm:$0xff]
      %v1763 = vld [vmem:[%s170 + $0x628] sm:$0xff]
      %v1764 = vld [vmem:[%s170 + $0x630] sm:$0xff]
      %v1765 = vld [vmem:[%s170 + $0x638] sm:$0xff]
      %v1766 = vld [vmem:[%s170 + $0x640] sm:$0xff]
      %v1767 = vld [vmem:[%s170 + $0x648] sm:$0xff]
      %v1768 = vld [vmem:[%s170 + $0x650] sm:$0xff]
      %v1769 = vld [vmem:[%s170 + $0x658] sm:$0xff]
      %v1770 = vld [vmem:[%s170 + $0x660] sm:$0xff]
      %v1771 = vld [vmem:[%s170 + $0x668] sm:$0xff]
      %v1772 = vld [vmem:[%s170 + $0x670] sm:$0xff]
      %v1773 = vld [vmem:[%s170 + $0x678] sm:$0xff]
      %v1774 = vld [vmem:[%s170 + $0x680] sm:$0xff]
      %v1775 = vld [vmem:[%s170 + $0x688] sm:$0xff]
      %v1776 = vld [vmem:[%s170 + $0x690] sm:$0xff]
      %v1777 = vld [vmem:[%s170 + $0x698] sm:$0xff]
      %v1778 = vld [vmem:[%s170 + $0x6a0] sm:$0xff]
      %v1779 = vld [vmem:[%s170 + $0x6a8] sm:$0xff]
      %v1780 = vld [vmem:[%s170 + $0x6b0] sm:$0xff]
      %v1781 = vld [vmem:[%s170 + $0x6b8] sm:$0xff]
      %v1782 = vld [vmem:[%s170 + $0x6c0] sm:$0xff]
      %v1783 = vld [vmem:[%s170 + $0x6c8] sm:$0xff]
      %v1784 = vld [vmem:[%s170 + $0x6d0] sm:$0xff]
      %v1785 = vld [vmem:[%s170 + $0x6d8] sm:$0xff]
      %v1786 = vld [vmem:[%s170 + $0x6e0] sm:$0xff]
      %v1787 = vld [vmem:[%s170 + $0x6e8] sm:$0xff]
      %v1788 = vld [vmem:[%s170 + $0x6f0] sm:$0xff]
      %v1789 = vld [vmem:[%s170 + $0x6f8] sm:$0xff]
      %v1790 = vld [vmem:[%s170 + $0x700] sm:$0xff]
      %v1791 = vld [vmem:[%s170 + $0x708] sm:$0xff]
      %v1792 = vld [vmem:[%s170 + $0x710] sm:$0xff]
      %v1793 = vld [vmem:[%s170 + $0x718] sm:$0xff]
      %v1794 = vld [vmem:[%s170 + $0x720] sm:$0xff]
      %v1795 = vld [vmem:[%s170 + $0x728] sm:$0xff]
      %v1796 = vld [vmem:[%s170 + $0x730] sm:$0xff]
      %v1797 = vld [vmem:[%s170 + $0x738] sm:$0xff]
      %v1798 = vld [vmem:[%s170 + $0x740] sm:$0xff]
      %v1799 = vld [vmem:[%s170 + $0x748] sm:$0xff]
      %v1800 = vld [vmem:[%s170 + $0x750] sm:$0xff]
      %v1801 = vld [vmem:[%s170 + $0x758] sm:$0xff]
      %v1802 = vld [vmem:[%s170 + $0x760] sm:$0xff]
      %v1803 = vld [vmem:[%s170 + $0x768] sm:$0xff]
      %v1804 = vld [vmem:[%s170 + $0x770] sm:$0xff]
      %v1805 = vld [vmem:[%s170 + $0x778] sm:$0xff]
      %v1806 = vld [vmem:[%s170 + $0x780] sm:$0xff]
      %v1807 = vld [vmem:[%s170 + $0x788] sm:$0xff]
      %v1808 = vld [vmem:[%s170 + $0x790] sm:$0xff]
      %v1809 = vld [vmem:[%s170 + $0x798] sm:$0xff]
      %v1810 = vld [vmem:[%s170 + $0x7a0] sm:$0xff]
      %v1811 = vld [vmem:[%s170 + $0x7a8] sm:$0xff]
      %v1812 = vld [vmem:[%s170 + $0x7b0] sm:$0xff]
      %v1813 = vld [vmem:[%s170 + $0x7b8] sm:$0xff]
      %v1814 = vld [vmem:[%s170 + $0x7c0] sm:$0xff]
      %v1815 = vld [vmem:[%s170 + $0x7c8] sm:$0xff]
      %v1816 = vld [vmem:[%s170 + $0x7d0] sm:$0xff]
      %v1817 = vld [vmem:[%s170 + $0x7d8] sm:$0xff]
      %v1818 = vld [vmem:[%s170 + $0x7e0] sm:$0xff]
      %v1819 = vld [vmem:[%s170 + $0x7e8] sm:$0xff]
      %v1820 = vld [vmem:[%s170 + $0x7f0] sm:$0xff]
      %v1821 = vld [vmem:[%s170 + $0x7f8] sm:$0xff]
      %v1822 = vld [vmem:[%s170 + $0x800] sm:$0xff]
      %v1823 = vld [vmem:[%s170 + $0x808] sm:$0xff]
      %v1824 = vld [vmem:[%s170 + $0x810] sm:$0xff]
      %v1825 = vld [vmem:[%s170 + $0x818] sm:$0xff]
      %v1826 = vld [vmem:[%s170 + $0x820] sm:$0xff]
      %v1827 = vld [vmem:[%s170 + $0x828] sm:$0xff]
      %v1828 = vld [vmem:[%s170 + $0x830] sm:$0xff]
      %v1829 = vld [vmem:[%s170 + $0x838] sm:$0xff]
      %v1830 = vld [vmem:[%s170 + $0x840] sm:$0xff]
      %v1831 = vld [vmem:[%s170 + $0x848] sm:$0xff]
      %v1832 = vld [vmem:[%s170 + $0x850] sm:$0xff]
      %v1833 = vld [vmem:[%s170 + $0x858] sm:$0xff]
      %v1834 = vld [vmem:[%s170 + $0x860] sm:$0xff]
      %v1835 = vld [vmem:[%s170 + $0x868] sm:$0xff]
      %v1836 = vld [vmem:[%s170 + $0x870] sm:$0xff]
      %v1837 = vld [vmem:[%s170 + $0x878] sm:$0xff]
      %v1838 = vld [vmem:[%s170 + $0x880] sm:$0xff]
      %v1839 = vld [vmem:[%s170 + $0x888] sm:$0xff]
      %v1840 = vld [vmem:[%s170 + $0x890] sm:$0xff]
      %v1841 = vld [vmem:[%s170 + $0x898] sm:$0xff]
      %v1842 = vld [vmem:[%s170 + $0x8a0] sm:$0xff]
      %v1843 = vld [vmem:[%s170 + $0x8a8] sm:$0xff]
      %v1844 = vld [vmem:[%s170 + $0x8b0] sm:$0xff]
      %v1845 = vld [vmem:[%s170 + $0x8b8] sm:$0xff]
      %v1846 = vld [vmem:[%s170 + $0x8c0] sm:$0xff]
      %v1847 = vld [vmem:[%s170 + $0x8c8] sm:$0xff]
      %v1848 = vld [vmem:[%s170 + $0x8d0] sm:$0xff]
      %v1849 = vld [vmem:[%s170 + $0x8d8] sm:$0xff]
      %v1850 = vld [vmem:[%s170 + $0x8e0] sm:$0xff]
      %v1851 = vld [vmem:[%s170 + $0x8e8] sm:$0xff]
      %v1852 = vld [vmem:[%s170 + $0x8f0] sm:$0xff]
      %v1853 = vld [vmem:[%s170 + $0x8f8] sm:$0xff]
      %v1854 = vld [vmem:[%s170 + $0x900] sm:$0xff]
      %v1855 = vld [vmem:[%s170 + $0x908] sm:$0xff]
      %v1856 = vld [vmem:[%s170 + $0x910] sm:$0xff]
      %v1857 = vld [vmem:[%s170 + $0x918] sm:$0xff]
      %v1858 = vld [vmem:[%s170 + $0x920] sm:$0xff]
      %v1859 = vld [vmem:[%s170 + $0x928] sm:$0xff]
      %v1860 = vld [vmem:[%s170 + $0x930] sm:$0xff]
      %v1861 = vld [vmem:[%s170 + $0x938] sm:$0xff]
      %v1862 = vld [vmem:[%s170 + $0x940] sm:$0xff]
      %v1863 = vld [vmem:[%s170 + $0x948] sm:$0xff]
      %v1864 = vld [vmem:[%s170 + $0x950] sm:$0xff]
      %v1865 = vld [vmem:[%s170 + $0x958] sm:$0xff]
      %v1866 = vld [vmem:[%s170 + $0x960] sm:$0xff]
      %v1867 = vld [vmem:[%s170 + $0x968] sm:$0xff]
      %v1868 = vld [vmem:[%s170 + $0x970] sm:$0xff]
      %v1869 = vld [vmem:[%s170 + $0x978] sm:$0xff]
      %v1870 = vld [vmem:[%s170 + $0x980] sm:$0xff]
      %v1871 = vld [vmem:[%s170 + $0x988] sm:$0xff]
      %v1872 = vld [vmem:[%s170 + $0x990] sm:$0xff]
      %v1873 = vld [vmem:[%s170 + $0x998] sm:$0xff]
      %v1874 = vld [vmem:[%s170 + $0x9a0] sm:$0xff]
      %v1875 = vld [vmem:[%s170 + $0x9a8] sm:$0xff]
      %v1876 = vld [vmem:[%s170 + $0x9b0] sm:$0xff]
      %v1877 = vld [vmem:[%s170 + $0x9b8] sm:$0xff]
      %v1878 = vld [vmem:[%s170 + $0x9c0] sm:$0xff]
      %v1879 = vld [vmem:[%s170 + $0x9c8] sm:$0xff]
      %v1880 = vld [vmem:[%s170 + $0x9d0] sm:$0xff]
      %v1881 = vld [vmem:[%s170 + $0x9d8] sm:$0xff]
      %v1882 = vld [vmem:[%s170 + $0x9e0] sm:$0xff]
      %v1883 = vld [vmem:[%s170 + $0x9e8] sm:$0xff]
      %v1884 = vld [vmem:[%s170 + $0x9f0] sm:$0xff]
      %v1885 = vld [vmem:[%s170 + $0x9f8] sm:$0xff]
      %v1886 = vld [vmem:[%s170 + $0xa00] sm:$0xff]
      %v1887 = vld [vmem:[%s170 + $0xa08] sm:$0xff]
      %v1888 = vld [vmem:[%s170 + $0xa10] sm:$0xff]
      %v1889 = vld [vmem:[%s170 + $0xa18] sm:$0xff]
      %v1890 = vld [vmem:[%s170 + $0xa20] sm:$0xff]
      %v1891 = vld [vmem:[%s170 + $0xa28] sm:$0xff]
      %v1892 = vld [vmem:[%s170 + $0xa30] sm:$0xff]
      %v1893 = vld [vmem:[%s170 + $0xa38] sm:$0xff]
      %v1894 = vld [vmem:[%s170 + $0xa40] sm:$0xff]
      %v1895 = vld [vmem:[%s170 + $0xa48] sm:$0xff]
      %v1896 = vld [vmem:[%s170 + $0xa50] sm:$0xff]
      %v1897 = vld [vmem:[%s170 + $0xa58] sm:$0xff]
      %v1898 = vld [vmem:[%s170 + $0xa60] sm:$0xff]
      %v1899 = vld [vmem:[%s170 + $0xa68] sm:$0xff]
      %v1900 = vld [vmem:[%s170 + $0xa70] sm:$0xff]
      %v1901 = vld [vmem:[%s170 + $0xa78] sm:$0xff]
      %v1902 = vld [vmem:[%s170 + $0xa80] sm:$0xff]
      %v1903 = vld [vmem:[%s170 + $0xa88] sm:$0xff]
      %v1904 = vld [vmem:[%s170 + $0xa90] sm:$0xff]
      %v1905 = vld [vmem:[%s170 + $0xa98] sm:$0xff]
      %v1906 = vld [vmem:[%s170 + $0xaa0] sm:$0xff]
      %v1907 = vld [vmem:[%s170 + $0xaa8] sm:$0xff]
      %v1908 = vld [vmem:[%s170 + $0xab0] sm:$0xff]
      %v1909 = vld [vmem:[%s170 + $0xab8] sm:$0xff]
      %v1910 = vld [vmem:[%s170 + $0xac0] sm:$0xff]
      %v1911 = vld [vmem:[%s170 + $0xac8] sm:$0xff]
      %v1912 = vld [vmem:[%s170 + $0xad0] sm:$0xff]
      %v1913 = vld [vmem:[%s170 + $0xad8] sm:$0xff]
      %v1914 = vld [vmem:[%s170 + $0xae0] sm:$0xff]
      %v1915 = vld [vmem:[%s170 + $0xae8] sm:$0xff]
      %v1916 = vld [vmem:[%s170 + $0xaf0] sm:$0xff]
      %v1917 = vld [vmem:[%s170 + $0xaf8] sm:$0xff]
      %v1918 = vld [vmem:[%s170 + $0xb00] sm:$0xff]
      %v1919 = vld [vmem:[%s170 + $0xb08] sm:$0xff]
      %v1920 = vld [vmem:[%s170 + $0xb10] sm:$0xff]
      %v1921 = vld [vmem:[%s170 + $0xb18] sm:$0xff]
      %v1922 = vld [vmem:[%s170 + $0xb20] sm:$0xff]
      %v1923 = vld [vmem:[%s170 + $0xb28] sm:$0xff]
      %v1924 = vld [vmem:[%s170 + $0xb30] sm:$0xff]
      %v1925 = vld [vmem:[%s170 + $0xb38] sm:$0xff]
      %v1926 = vld [vmem:[%s170 + $0xb40] sm:$0xff]
      %v1927 = vld [vmem:[%s170 + $0xb48] sm:$0xff]
      %v1928 = vld [vmem:[%s170 + $0xb50] sm:$0xff]
      %v1929 = vld [vmem:[%s170 + $0xb58] sm:$0xff]
      %v1930 = vld [vmem:[%s170 + $0xb60] sm:$0xff]
      %v1931 = vld [vmem:[%s170 + $0xb68] sm:$0xff]
      %v1932 = vld [vmem:[%s170 + $0xb70] sm:$0xff]
      %v1933 = vld [vmem:[%s170 + $0xb78] sm:$0xff]
      %v1934 = vld [vmem:[%s170 + $0xb80] sm:$0xff]
      %v1935 = vld [vmem:[%s170 + $0xb88] sm:$0xff]
      %v1936 = vld [vmem:[%s170 + $0xb90] sm:$0xff]
      %v1937 = vld [vmem:[%s170 + $0xb98] sm:$0xff]
      %v1938 = vld [vmem:[%s170 + $0xba0] sm:$0xff]
      %v1939 = vld [vmem:[%s170 + $0xba8] sm:$0xff]
      %v1940 = vld [vmem:[%s170 + $0xbb0] sm:$0xff]
      %v1941 = vld [vmem:[%s170 + $0xbb8] sm:$0xff]
      %v1942 = vld [vmem:[%s170 + $0xbc0] sm:$0xff]
      %v1943 = vld [vmem:[%s170 + $0xbc8] sm:$0xff]
      %v1944 = vld [vmem:[%s170 + $0xbd0] sm:$0xff]
      %v1945 = vld [vmem:[%s170 + $0xbd8] sm:$0xff]
      %v1946 = vld [vmem:[%s170 + $0xbe0] sm:$0xff]
      %v1947 = vld [vmem:[%s170 + $0xbe8] sm:$0xff]
      %v1948 = vld [vmem:[%s170 + $0xbf0] sm:$0xff]
      %v1949 = vld [vmem:[%s170 + $0xbf8] sm:$0xff]
      %v1950 = vld [vmem:[%s170 + $0xc00] sm:$0xff]
      %v2336 = vunpack.c.l.b16 %v1566
      %v2337 = vunpack.c.h.b16 %v1566
      %v2338 = vunpack.c.l.b16 %v1567
      %v2339 = vunpack.c.h.b16 %v1567
      %v2340 = vunpack.c.l.b16 %v1568
      %v2341 = vunpack.c.h.b16 %v1568
      %v2342 = vunpack.c.l.b16 %v1569
      %v2343 = vunpack.c.h.b16 %v1569
      %v2344 = vunpack.c.l.b16 %v1570
      %v2345 = vunpack.c.h.b16 %v1570
      %v2346 = vunpack.c.l.b16 %v1571
      %v2347 = vunpack.c.h.b16 %v1571
      %v2348 = vunpack.c.l.b16 %v1572
      %v2349 = vunpack.c.h.b16 %v1572
      %v2350 = vunpack.c.l.b16 %v1573
      %v2351 = vunpack.c.h.b16 %v1573
      %v2352 = vunpack.c.l.b16 %v1574
      %v2353 = vunpack.c.h.b16 %v1574
      %v2354 = vunpack.c.l.b16 %v1575
      %v2355 = vunpack.c.h.b16 %v1575
      %v2356 = vunpack.c.l.b16 %v1576
      %v2357 = vunpack.c.h.b16 %v1576
      %v2358 = vunpack.c.l.b16 %v1577
      %v2359 = vunpack.c.h.b16 %v1577
      %v2360 = vunpack.c.l.b16 %v1578
      %v2361 = vunpack.c.h.b16 %v1578
      %v2362 = vunpack.c.l.b16 %v1579
      %v2363 = vunpack.c.h.b16 %v1579
      %v2364 = vunpack.c.l.b16 %v1580
      %v2365 = vunpack.c.h.b16 %v1580
      %v2366 = vunpack.c.l.b16 %v1581
      %v2367 = vunpack.c.h.b16 %v1581
      %v2368 = vunpack.c.l.b16 %v1582
      %v2369 = vunpack.c.h.b16 %v1582
      %v2370 = vunpack.c.l.b16 %v1583
      %v2371 = vunpack.c.h.b16 %v1583
      %v2372 = vunpack.c.l.b16 %v1584
      %v2373 = vunpack.c.h.b16 %v1584
      %v2374 = vunpack.c.l.b16 %v1585
      %v2375 = vunpack.c.h.b16 %v1585
      %v2376 = vunpack.c.l.b16 %v1586
      %v2377 = vunpack.c.h.b16 %v1586
      %v2378 = vunpack.c.l.b16 %v1587
      %v2379 = vunpack.c.h.b16 %v1587
      %v2380 = vunpack.c.l.b16 %v1588
      %v2381 = vunpack.c.h.b16 %v1588
      %v2382 = vunpack.c.l.b16 %v1589
      %v2383 = vunpack.c.h.b16 %v1589
      %v2384 = vunpack.c.l.b16 %v1590
      %v2385 = vunpack.c.h.b16 %v1590
      %v2386 = vunpack.c.l.b16 %v1591
      %v2387 = vunpack.c.h.b16 %v1591
      %v2388 = vunpack.c.l.b16 %v1592
      %v2389 = vunpack.c.h.b16 %v1592
      %v2390 = vunpack.c.l.b16 %v1593
      %v2391 = vunpack.c.h.b16 %v1593
      %v2392 = vunpack.c.l.b16 %v1594
      %v2393 = vunpack.c.h.b16 %v1594
      %v2394 = vunpack.c.l.b16 %v1595
      %v2395 = vunpack.c.h.b16 %v1595
      %v2396 = vunpack.c.l.b16 %v1596
      %v2397 = vunpack.c.h.b16 %v1596
      %v2398 = vunpack.c.l.b16 %v1597
      %v2399 = vunpack.c.h.b16 %v1597
      %v2400 = vunpack.c.l.b16 %v1598
      %v2401 = vunpack.c.h.b16 %v1598
      %v2402 = vunpack.c.l.b16 %v1599
      %v2403 = vunpack.c.h.b16 %v1599
      %v2404 = vunpack.c.l.b16 %v1600
      %v2405 = vunpack.c.h.b16 %v1600
      %v2406 = vunpack.c.l.b16 %v1601
      %v2407 = vunpack.c.h.b16 %v1601
      %v2408 = vunpack.c.l.b16 %v1602
      %v2409 = vunpack.c.h.b16 %v1602
      %v2410 = vunpack.c.l.b16 %v1603
      %v2411 = vunpack.c.h.b16 %v1603
      %v2412 = vunpack.c.l.b16 %v1604
      %v2413 = vunpack.c.h.b16 %v1604
      %v2414 = vunpack.c.l.b16 %v1605
      %v2415 = vunpack.c.h.b16 %v1605
      %v2416 = vunpack.c.l.b16 %v1606
      %v2417 = vunpack.c.h.b16 %v1606
      %v2418 = vunpack.c.l.b16 %v1607
      %v2419 = vunpack.c.h.b16 %v1607
      %v2420 = vunpack.c.l.b16 %v1608
      %v2421 = vunpack.c.h.b16 %v1608
      %v2422 = vunpack.c.l.b16 %v1609
      %v2423 = vunpack.c.h.b16 %v1609
      %v2424 = vunpack.c.l.b16 %v1610
      %v2425 = vunpack.c.h.b16 %v1610
      %v2426 = vunpack.c.l.b16 %v1611
      %v2427 = vunpack.c.h.b16 %v1611
      %v2428 = vunpack.c.l.b16 %v1612
      %v2429 = vunpack.c.h.b16 %v1612
      %v2430 = vunpack.c.l.b16 %v1613
      %v2431 = vunpack.c.h.b16 %v1613
      %v2432 = vunpack.c.l.b16 %v1614
      %v2433 = vunpack.c.h.b16 %v1614
      %v2434 = vunpack.c.l.b16 %v1615
      %v2435 = vunpack.c.h.b16 %v1615
      %v2436 = vunpack.c.l.b16 %v1616
      %v2437 = vunpack.c.h.b16 %v1616
      %v2438 = vunpack.c.l.b16 %v1617
      %v2439 = vunpack.c.h.b16 %v1617
      %v2440 = vunpack.c.l.b16 %v1618
      %v2441 = vunpack.c.h.b16 %v1618
      %v2442 = vunpack.c.l.b16 %v1619
      %v2443 = vunpack.c.h.b16 %v1619
      %v2444 = vunpack.c.l.b16 %v1620
      %v2445 = vunpack.c.h.b16 %v1620
      %v2446 = vunpack.c.l.b16 %v1621
      %v2447 = vunpack.c.h.b16 %v1621
      %v2448 = vunpack.c.l.b16 %v1622
      %v2449 = vunpack.c.h.b16 %v1622
      %v2450 = vunpack.c.l.b16 %v1623
      %v2451 = vunpack.c.h.b16 %v1623
      %v2452 = vunpack.c.l.b16 %v1624
      %v2453 = vunpack.c.h.b16 %v1624
      %v2454 = vunpack.c.l.b16 %v1625
      %v2455 = vunpack.c.h.b16 %v1625
      %v2456 = vunpack.c.l.b16 %v1626
      %v2457 = vunpack.c.h.b16 %v1626
      %v2458 = vunpack.c.l.b16 %v1627
      %v2459 = vunpack.c.h.b16 %v1627
      %v2460 = vunpack.c.l.b16 %v1628
      %v2461 = vunpack.c.h.b16 %v1628
      %v2462 = vunpack.c.l.b16 %v1629
      %v2463 = vunpack.c.h.b16 %v1629
      %v2464 = vunpack.c.l.b16 %v1630
      %v2465 = vunpack.c.h.b16 %v1630
      %v2466 = vunpack.c.l.b16 %v1631
      %v2467 = vunpack.c.h.b16 %v1631
      %v2468 = vunpack.c.l.b16 %v1632
      %v2469 = vunpack.c.h.b16 %v1632
      %v2470 = vunpack.c.l.b16 %v1633
      %v2471 = vunpack.c.h.b16 %v1633
      %v2472 = vunpack.c.l.b16 %v1634
      %v2473 = vunpack.c.h.b16 %v1634
      %v2474 = vunpack.c.l.b16 %v1635
      %v2475 = vunpack.c.h.b16 %v1635
      %v2476 = vunpack.c.l.b16 %v1636
      %v2477 = vunpack.c.h.b16 %v1636
      %v2478 = vunpack.c.l.b16 %v1637
      %v2479 = vunpack.c.h.b16 %v1637
      %v2480 = vunpack.c.l.b16 %v1638
      %v2481 = vunpack.c.h.b16 %v1638
      %v2482 = vunpack.c.l.b16 %v1639
      %v2483 = vunpack.c.h.b16 %v1639
      %v2484 = vunpack.c.l.b16 %v1640
      %v2485 = vunpack.c.h.b16 %v1640
      %v2486 = vunpack.c.l.b16 %v1641
      %v2487 = vunpack.c.h.b16 %v1641
      %v2488 = vunpack.c.l.b16 %v1642
      %v2489 = vunpack.c.h.b16 %v1642
      %v2490 = vunpack.c.l.b16 %v1643
      %v2491 = vunpack.c.h.b16 %v1643
      %v2492 = vunpack.c.l.b16 %v1644
      %v2493 = vunpack.c.h.b16 %v1644
      %v2494 = vunpack.c.l.b16 %v1645
      %v2495 = vunpack.c.h.b16 %v1645
      %v2496 = vunpack.c.l.b16 %v1646
      %v2497 = vunpack.c.h.b16 %v1646
      %v2498 = vunpack.c.l.b16 %v1647
      %v2499 = vunpack.c.h.b16 %v1647
      %v2500 = vunpack.c.l.b16 %v1648
      %v2501 = vunpack.c.h.b16 %v1648
      %v2502 = vunpack.c.l.b16 %v1649
      %v2503 = vunpack.c.h.b16 %v1649
      %v2504 = vunpack.c.l.b16 %v1650
      %v2505 = vunpack.c.h.b16 %v1650
      %v2506 = vunpack.c.l.b16 %v1651
      %v2507 = vunpack.c.h.b16 %v1651
      %v2508 = vunpack.c.l.b16 %v1652
      %v2509 = vunpack.c.h.b16 %v1652
      %v2510 = vunpack.c.l.b16 %v1653
      %v2511 = vunpack.c.h.b16 %v1653
      %v2512 = vunpack.c.l.b16 %v1654
      %v2513 = vunpack.c.h.b16 %v1654
      %v2514 = vunpack.c.l.b16 %v1655
      %v2515 = vunpack.c.h.b16 %v1655
      %v2516 = vunpack.c.l.b16 %v1656
      %v2517 = vunpack.c.h.b16 %v1656
      %v2518 = vunpack.c.l.b16 %v1657
      %v2519 = vunpack.c.h.b16 %v1657
      %v2520 = vunpack.c.l.b16 %v1658
      %v2521 = vunpack.c.h.b16 %v1658
      %v2522 = vunpack.c.l.b16 %v1659
      %v2523 = vunpack.c.h.b16 %v1659
      %v2524 = vunpack.c.l.b16 %v1660
      %v2525 = vunpack.c.h.b16 %v1660
      %v2526 = vunpack.c.l.b16 %v1661
      %v2527 = vunpack.c.h.b16 %v1661
      %v2528 = vunpack.c.l.b16 %v1662
      %v2529 = vunpack.c.h.b16 %v1662
      %v2530 = vunpack.c.l.b16 %v1663
      %v2531 = vunpack.c.h.b16 %v1663
      %v2532 = vunpack.c.l.b16 %v1664
      %v2533 = vunpack.c.h.b16 %v1664
      %v2534 = vunpack.c.l.b16 %v1665
      %v2535 = vunpack.c.h.b16 %v1665
      %v2536 = vunpack.c.l.b16 %v1666
      %v2537 = vunpack.c.h.b16 %v1666
      %v2538 = vunpack.c.l.b16 %v1667
      %v2539 = vunpack.c.h.b16 %v1667
      %v2540 = vunpack.c.l.b16 %v1668
      %v2541 = vunpack.c.h.b16 %v1668
      %v2542 = vunpack.c.l.b16 %v1669
      %v2543 = vunpack.c.h.b16 %v1669
      %v2544 = vunpack.c.l.b16 %v1670
      %v2545 = vunpack.c.h.b16 %v1670
      %v2546 = vunpack.c.l.b16 %v1671
      %v2547 = vunpack.c.h.b16 %v1671
      %v2548 = vunpack.c.l.b16 %v1672
      %v2549 = vunpack.c.h.b16 %v1672
      %v2550 = vunpack.c.l.b16 %v1673
      %v2551 = vunpack.c.h.b16 %v1673
      %v2552 = vunpack.c.l.b16 %v1674
      %v2553 = vunpack.c.h.b16 %v1674
      %v2554 = vunpack.c.l.b16 %v1675
      %v2555 = vunpack.c.h.b16 %v1675
      %v2556 = vunpack.c.l.b16 %v1676
      %v2557 = vunpack.c.h.b16 %v1676
      %v2558 = vunpack.c.l.b16 %v1677
      %v2559 = vunpack.c.h.b16 %v1677
      %v2560 = vunpack.c.l.b16 %v1678
      %v2561 = vunpack.c.h.b16 %v1678
      %v2562 = vunpack.c.l.b16 %v1679
      %v2563 = vunpack.c.h.b16 %v1679
      %v2564 = vunpack.c.l.b16 %v1680
      %v2565 = vunpack.c.h.b16 %v1680
      %v2566 = vunpack.c.l.b16 %v1681
      %v2567 = vunpack.c.h.b16 %v1681
      %v2568 = vunpack.c.l.b16 %v1682
      %v2569 = vunpack.c.h.b16 %v1682
      %v2570 = vunpack.c.l.b16 %v1683
      %v2571 = vunpack.c.h.b16 %v1683
      %v2572 = vunpack.c.l.b16 %v1684
      %v2573 = vunpack.c.h.b16 %v1684
      %v2574 = vunpack.c.l.b16 %v1685
      %v2575 = vunpack.c.h.b16 %v1685
      %v2576 = vunpack.c.l.b16 %v1686
      %v2577 = vunpack.c.h.b16 %v1686
      %v2578 = vunpack.c.l.b16 %v1687
      %v2579 = vunpack.c.h.b16 %v1687
      %v2580 = vunpack.c.l.b16 %v1688
      %v2581 = vunpack.c.h.b16 %v1688
      %v2582 = vunpack.c.l.b16 %v1689
      %v2583 = vunpack.c.h.b16 %v1689
      %v2584 = vunpack.c.l.b16 %v1690
      %v2585 = vunpack.c.h.b16 %v1690
      %v2586 = vunpack.c.l.b16 %v1691
      %v2587 = vunpack.c.h.b16 %v1691
      %v2588 = vunpack.c.l.b16 %v1692
      %v2589 = vunpack.c.h.b16 %v1692
      %v2590 = vunpack.c.l.b16 %v1693
      %v2591 = vunpack.c.h.b16 %v1693
      %v2592 = vunpack.c.l.b16 %v1694
      %v2593 = vunpack.c.h.b16 %v1694
      %v2594 = vunpack.c.l.b16 %v1695
      %v2595 = vunpack.c.h.b16 %v1695
      %v2596 = vunpack.c.l.b16 %v1696
      %v2597 = vunpack.c.h.b16 %v1696
      %v2598 = vunpack.c.l.b16 %v1697
      %v2599 = vunpack.c.h.b16 %v1697
      %v2600 = vunpack.c.l.b16 %v1698
      %v2601 = vunpack.c.h.b16 %v1698
      %v2602 = vunpack.c.l.b16 %v1699
      %v2603 = vunpack.c.h.b16 %v1699
      %v2604 = vunpack.c.l.b16 %v1700
      %v2605 = vunpack.c.h.b16 %v1700
      %v2606 = vunpack.c.l.b16 %v1701
      %v2607 = vunpack.c.h.b16 %v1701
      %v2608 = vunpack.c.l.b16 %v1702
      %v2609 = vunpack.c.h.b16 %v1702
      %v2610 = vunpack.c.l.b16 %v1703
      %v2611 = vunpack.c.h.b16 %v1703
      %v2612 = vunpack.c.l.b16 %v1704
      %v2613 = vunpack.c.h.b16 %v1704
      %v2614 = vunpack.c.l.b16 %v1705
      %v2615 = vunpack.c.h.b16 %v1705
      %v2616 = vunpack.c.l.b16 %v1706
      %v2617 = vunpack.c.h.b16 %v1706
      %v2618 = vunpack.c.l.b16 %v1707
      %v2619 = vunpack.c.h.b16 %v1707
      %v2620 = vunpack.c.l.b16 %v1708
      %v2621 = vunpack.c.h.b16 %v1708
      %v2622 = vunpack.c.l.b16 %v1709
      %v2623 = vunpack.c.h.b16 %v1709
      %v2624 = vunpack.c.l.b16 %v1710
      %v2625 = vunpack.c.h.b16 %v1710
      %v2626 = vunpack.c.l.b16 %v1711
      %v2627 = vunpack.c.h.b16 %v1711
      %v2628 = vunpack.c.l.b16 %v1712
      %v2629 = vunpack.c.h.b16 %v1712
      %v2630 = vunpack.c.l.b16 %v1713
      %v2631 = vunpack.c.h.b16 %v1713
      %v2632 = vunpack.c.l.b16 %v1714
      %v2633 = vunpack.c.h.b16 %v1714
      %v2634 = vunpack.c.l.b16 %v1715
      %v2635 = vunpack.c.h.b16 %v1715
      %v2636 = vunpack.c.l.b16 %v1716
      %v2637 = vunpack.c.h.b16 %v1716
      %v2638 = vunpack.c.l.b16 %v1717
      %v2639 = vunpack.c.h.b16 %v1717
      %v2640 = vunpack.c.l.b16 %v1718
      %v2641 = vunpack.c.h.b16 %v1718
      %v2642 = vunpack.c.l.b16 %v1719
      %v2643 = vunpack.c.h.b16 %v1719
      %v2644 = vunpack.c.l.b16 %v1720
      %v2645 = vunpack.c.h.b16 %v1720
      %v2646 = vunpack.c.l.b16 %v1721
      %v2647 = vunpack.c.h.b16 %v1721
      %v2648 = vunpack.c.l.b16 %v1722
      %v2649 = vunpack.c.h.b16 %v1722
      %v2650 = vunpack.c.l.b16 %v1723
      %v2651 = vunpack.c.h.b16 %v1723
      %v2652 = vunpack.c.l.b16 %v1724
      %v2653 = vunpack.c.h.b16 %v1724
      %v2654 = vunpack.c.l.b16 %v1725
      %v2655 = vunpack.c.h.b16 %v1725
      %v2656 = vunpack.c.l.b16 %v1726
      %v2657 = vunpack.c.h.b16 %v1726
      %v2658 = vunpack.c.l.b16 %v1727
      %v2659 = vunpack.c.h.b16 %v1727
      %v2660 = vunpack.c.l.b16 %v1728
      %v2661 = vunpack.c.h.b16 %v1728
      %v2662 = vunpack.c.l.b16 %v1729
      %v2663 = vunpack.c.h.b16 %v1729
      %v2664 = vunpack.c.l.b16 %v1730
      %v2665 = vunpack.c.h.b16 %v1730
      %v2666 = vunpack.c.l.b16 %v1731
      %v2667 = vunpack.c.h.b16 %v1731
      %v2668 = vunpack.c.l.b16 %v1732
      %v2669 = vunpack.c.h.b16 %v1732
      %v2670 = vunpack.c.l.b16 %v1733
      %v2671 = vunpack.c.h.b16 %v1733
      %v2672 = vunpack.c.l.b16 %v1734
      %v2673 = vunpack.c.h.b16 %v1734
      %v2674 = vunpack.c.l.b16 %v1735
      %v2675 = vunpack.c.h.b16 %v1735
      %v2676 = vunpack.c.l.b16 %v1736
      %v2677 = vunpack.c.h.b16 %v1736
      %v2678 = vunpack.c.l.b16 %v1737
      %v2679 = vunpack.c.h.b16 %v1737
      %v2680 = vunpack.c.l.b16 %v1738
      %v2681 = vunpack.c.h.b16 %v1738
      %v2682 = vunpack.c.l.b16 %v1739
      %v2683 = vunpack.c.h.b16 %v1739
      %v2684 = vunpack.c.l.b16 %v1740
      %v2685 = vunpack.c.h.b16 %v1740
      %v2686 = vunpack.c.l.b16 %v1741
      %v2687 = vunpack.c.h.b16 %v1741
      %v2688 = vunpack.c.l.b16 %v1742
      %v2689 = vunpack.c.h.b16 %v1742
      %v2690 = vunpack.c.l.b16 %v1743
      %v2691 = vunpack.c.h.b16 %v1743
      %v2692 = vunpack.c.l.b16 %v1744
      %v2693 = vunpack.c.h.b16 %v1744
      %v2694 = vunpack.c.l.b16 %v1745
      %v2695 = vunpack.c.h.b16 %v1745
      %v2696 = vunpack.c.l.b16 %v1746
      %v2697 = vunpack.c.h.b16 %v1746
      %v2698 = vunpack.c.l.b16 %v1747
      %v2699 = vunpack.c.h.b16 %v1747
      %v2700 = vunpack.c.l.b16 %v1748
      %v2701 = vunpack.c.h.b16 %v1748
      %v2702 = vunpack.c.l.b16 %v1749
      %v2703 = vunpack.c.h.b16 %v1749
      %v2704 = vunpack.c.l.b16 %v1750
      %v2705 = vunpack.c.h.b16 %v1750
      %v2706 = vunpack.c.l.b16 %v1751
      %v2707 = vunpack.c.h.b16 %v1751
      %v2708 = vunpack.c.l.b16 %v1752
      %v2709 = vunpack.c.h.b16 %v1752
      %v2710 = vunpack.c.l.b16 %v1753
      %v2711 = vunpack.c.h.b16 %v1753
      %v2712 = vunpack.c.l.b16 %v1754
      %v2713 = vunpack.c.h.b16 %v1754
      %v2714 = vunpack.c.l.b16 %v1755
      %v2715 = vunpack.c.h.b16 %v1755
      %v2716 = vunpack.c.l.b16 %v1756
      %v2717 = vunpack.c.h.b16 %v1756
      %v2718 = vunpack.c.l.b16 %v1757
      %v2719 = vunpack.c.h.b16 %v1757
      %v2720 = vunpack.c.l.b16 %v1758
      %v2721 = vunpack.c.h.b16 %v1758
      %v2722 = vunpack.c.l.b16 %v1759
      %v2723 = vunpack.c.h.b16 %v1759
      %v2724 = vunpack.c.l.b16 %v1760
      %v2725 = vunpack.c.h.b16 %v1760
      %v2726 = vunpack.c.l.b16 %v1761
      %v2727 = vunpack.c.h.b16 %v1761
      %v2728 = vunpack.c.l.b16 %v1762
      %v2729 = vunpack.c.h.b16 %v1762
      %v2730 = vunpack.c.l.b16 %v1763
      %v2731 = vunpack.c.h.b16 %v1763
      %v2732 = vunpack.c.l.b16 %v1764
      %v2733 = vunpack.c.h.b16 %v1764
      %v2734 = vunpack.c.l.b16 %v1765
      %v2735 = vunpack.c.h.b16 %v1765
      %v2736 = vunpack.c.l.b16 %v1766
      %v2737 = vunpack.c.h.b16 %v1766
      %v2738 = vunpack.c.l.b16 %v1767
      %v2739 = vunpack.c.h.b16 %v1767
      %v2740 = vunpack.c.l.b16 %v1768
      %v2741 = vunpack.c.h.b16 %v1768
      %v2742 = vunpack.c.l.b16 %v1769
      %v2743 = vunpack.c.h.b16 %v1769
      %v2744 = vunpack.c.l.b16 %v1770
      %v2745 = vunpack.c.h.b16 %v1770
      %v2746 = vunpack.c.l.b16 %v1771
      %v2747 = vunpack.c.h.b16 %v1771
      %v2748 = vunpack.c.l.b16 %v1772
      %v2749 = vunpack.c.h.b16 %v1772
      %v2750 = vunpack.c.l.b16 %v1773
      %v2751 = vunpack.c.h.b16 %v1773
      %v2752 = vunpack.c.l.b16 %v1774
      %v2753 = vunpack.c.h.b16 %v1774
      %v2754 = vunpack.c.l.b16 %v1775
      %v2755 = vunpack.c.h.b16 %v1775
      %v2756 = vunpack.c.l.b16 %v1776
      %v2757 = vunpack.c.h.b16 %v1776
      %v2758 = vunpack.c.l.b16 %v1777
      %v2759 = vunpack.c.h.b16 %v1777
      %v2760 = vunpack.c.l.b16 %v1778
      %v2761 = vunpack.c.h.b16 %v1778
      %v2762 = vunpack.c.l.b16 %v1779
      %v2763 = vunpack.c.h.b16 %v1779
      %v2764 = vunpack.c.l.b16 %v1780
      %v2765 = vunpack.c.h.b16 %v1780
      %v2766 = vunpack.c.l.b16 %v1781
      %v2767 = vunpack.c.h.b16 %v1781
      %v2768 = vunpack.c.l.b16 %v1782
      %v2769 = vunpack.c.h.b16 %v1782
      %v2770 = vunpack.c.l.b16 %v1783
      %v2771 = vunpack.c.h.b16 %v1783
      %v2772 = vunpack.c.l.b16 %v1784
      %v2773 = vunpack.c.h.b16 %v1784
      %v2774 = vunpack.c.l.b16 %v1785
      %v2775 = vunpack.c.h.b16 %v1785
      %v2776 = vunpack.c.l.b16 %v1786
      %v2777 = vunpack.c.h.b16 %v1786
      %v2778 = vunpack.c.l.b16 %v1787
      %v2779 = vunpack.c.h.b16 %v1787
      %v2780 = vunpack.c.l.b16 %v1788
      %v2781 = vunpack.c.h.b16 %v1788
      %v2782 = vunpack.c.l.b16 %v1789
      %v2783 = vunpack.c.h.b16 %v1789
      %v2784 = vunpack.c.l.b16 %v1790
      %v2785 = vunpack.c.h.b16 %v1790
      %v2786 = vunpack.c.l.b16 %v1791
      %v2787 = vunpack.c.h.b16 %v1791
      %v2788 = vunpack.c.l.b16 %v1792
      %v2789 = vunpack.c.h.b16 %v1792
      %v2790 = vunpack.c.l.b16 %v1793
      %v2791 = vunpack.c.h.b16 %v1793
      %v2792 = vunpack.c.l.b16 %v1794
      %v2793 = vunpack.c.h.b16 %v1794
      %v2794 = vunpack.c.l.b16 %v1795
      %v2795 = vunpack.c.h.b16 %v1795
      %v2796 = vunpack.c.l.b16 %v1796
      %v2797 = vunpack.c.h.b16 %v1796
      %v2798 = vunpack.c.l.b16 %v1797
      %v2799 = vunpack.c.h.b16 %v1797
      %v2800 = vunpack.c.l.b16 %v1798
      %v2801 = vunpack.c.h.b16 %v1798
      %v2802 = vunpack.c.l.b16 %v1799
      %v2803 = vunpack.c.h.b16 %v1799
      %v2804 = vunpack.c.l.b16 %v1800
      %v2805 = vunpack.c.h.b16 %v1800
      %v2806 = vunpack.c.l.b16 %v1801
      %v2807 = vunpack.c.h.b16 %v1801
      %v2808 = vunpack.c.l.b16 %v1802
      %v2809 = vunpack.c.h.b16 %v1802
      %v2810 = vunpack.c.l.b16 %v1803
      %v2811 = vunpack.c.h.b16 %v1803
      %v2812 = vunpack.c.l.b16 %v1804
      %v2813 = vunpack.c.h.b16 %v1804
      %v2814 = vunpack.c.l.b16 %v1805
      %v2815 = vunpack.c.h.b16 %v1805
      %v2816 = vunpack.c.l.b16 %v1806
      %v2817 = vunpack.c.h.b16 %v1806
      %v2818 = vunpack.c.l.b16 %v1807
      %v2819 = vunpack.c.h.b16 %v1807
      %v2820 = vunpack.c.l.b16 %v1808
      %v2821 = vunpack.c.h.b16 %v1808
      %v2822 = vunpack.c.l.b16 %v1809
      %v2823 = vunpack.c.h.b16 %v1809
      %v2824 = vunpack.c.l.b16 %v1810
      %v2825 = vunpack.c.h.b16 %v1810
      %v2826 = vunpack.c.l.b16 %v1811
      %v2827 = vunpack.c.h.b16 %v1811
      %v2828 = vunpack.c.l.b16 %v1812
      %v2829 = vunpack.c.h.b16 %v1812
      %v2830 = vunpack.c.l.b16 %v1813
      %v2831 = vunpack.c.h.b16 %v1813
      %v2832 = vunpack.c.l.b16 %v1814
      %v2833 = vunpack.c.h.b16 %v1814
      %v2834 = vunpack.c.l.b16 %v1815
      %v2835 = vunpack.c.h.b16 %v1815
      %v2836 = vunpack.c.l.b16 %v1816
      %v2837 = vunpack.c.h.b16 %v1816
      %v2838 = vunpack.c.l.b16 %v1817
      %v2839 = vunpack.c.h.b16 %v1817
      %v2840 = vunpack.c.l.b16 %v1818
      %v2841 = vunpack.c.h.b16 %v1818
      %v2842 = vunpack.c.l.b16 %v1819
      %v2843 = vunpack.c.h.b16 %v1819
      %v2844 = vunpack.c.l.b16 %v1820
      %v2845 = vunpack.c.h.b16 %v1820
      %v2846 = vunpack.c.l.b16 %v1821
      %v2847 = vunpack.c.h.b16 %v1821
      %v2848 = vunpack.c.l.b16 %v1822
      %v2849 = vunpack.c.h.b16 %v1822
      %v2850 = vunpack.c.l.b16 %v1823
      %v2851 = vunpack.c.h.b16 %v1823
      %v2852 = vunpack.c.l.b16 %v1824
      %v2853 = vunpack.c.h.b16 %v1824
      %v2854 = vunpack.c.l.b16 %v1825
      %v2855 = vunpack.c.h.b16 %v1825
      %v2856 = vunpack.c.l.b16 %v1826
      %v2857 = vunpack.c.h.b16 %v1826
      %v2858 = vunpack.c.l.b16 %v1827
      %v2859 = vunpack.c.h.b16 %v1827
      %v2860 = vunpack.c.l.b16 %v1828
      %v2861 = vunpack.c.h.b16 %v1828
      %v2862 = vunpack.c.l.b16 %v1829
      %v2863 = vunpack.c.h.b16 %v1829
      %v2864 = vunpack.c.l.b16 %v1830
      %v2865 = vunpack.c.h.b16 %v1830
      %v2866 = vunpack.c.l.b16 %v1831
      %v2867 = vunpack.c.h.b16 %v1831
      %v2868 = vunpack.c.l.b16 %v1832
      %v2869 = vunpack.c.h.b16 %v1832
      %v2870 = vunpack.c.l.b16 %v1833
      %v2871 = vunpack.c.h.b16 %v1833
      %v2872 = vunpack.c.l.b16 %v1834
      %v2873 = vunpack.c.h.b16 %v1834
      %v2874 = vunpack.c.l.b16 %v1835
      %v2875 = vunpack.c.h.b16 %v1835
      %v2876 = vunpack.c.l.b16 %v1836
      %v2877 = vunpack.c.h.b16 %v1836
      %v2878 = vunpack.c.l.b16 %v1837
      %v2879 = vunpack.c.h.b16 %v1837
      %v2880 = vunpack.c.l.b16 %v1838
      %v2881 = vunpack.c.h.b16 %v1838
      %v2882 = vunpack.c.l.b16 %v1839
      %v2883 = vunpack.c.h.b16 %v1839
      %v2884 = vunpack.c.l.b16 %v1840
      %v2885 = vunpack.c.h.b16 %v1840
      %v2886 = vunpack.c.l.b16 %v1841
      %v2887 = vunpack.c.h.b16 %v1841
      %v2888 = vunpack.c.l.b16 %v1842
      %v2889 = vunpack.c.h.b16 %v1842
      %v2890 = vunpack.c.l.b16 %v1843
      %v2891 = vunpack.c.h.b16 %v1843
      %v2892 = vunpack.c.l.b16 %v1844
      %v2893 = vunpack.c.h.b16 %v1844
      %v2894 = vunpack.c.l.b16 %v1845
      %v2895 = vunpack.c.h.b16 %v1845
      %v2896 = vunpack.c.l.b16 %v1846
      %v2897 = vunpack.c.h.b16 %v1846
      %v2898 = vunpack.c.l.b16 %v1847
      %v2899 = vunpack.c.h.b16 %v1847
      %v2900 = vunpack.c.l.b16 %v1848
      %v2901 = vunpack.c.h.b16 %v1848
      %v2902 = vunpack.c.l.b16 %v1849
      %v2903 = vunpack.c.h.b16 %v1849
      %v2904 = vunpack.c.l.b16 %v1850
      %v2905 = vunpack.c.h.b16 %v1850
      %v2906 = vunpack.c.l.b16 %v1851
      %v2907 = vunpack.c.h.b16 %v1851
      %v2908 = vunpack.c.l.b16 %v1852
      %v2909 = vunpack.c.h.b16 %v1852
      %v2910 = vunpack.c.l.b16 %v1853
      %v2911 = vunpack.c.h.b16 %v1853
      %v2912 = vunpack.c.l.b16 %v1854
      %v2913 = vunpack.c.h.b16 %v1854
      %v2914 = vunpack.c.l.b16 %v1855
      %v2915 = vunpack.c.h.b16 %v1855
      %v2916 = vunpack.c.l.b16 %v1856
      %v2917 = vunpack.c.h.b16 %v1856
      %v2918 = vunpack.c.l.b16 %v1857
      %v2919 = vunpack.c.h.b16 %v1857
      %v2920 = vunpack.c.l.b16 %v1858
      %v2921 = vunpack.c.h.b16 %v1858
      %v2922 = vunpack.c.l.b16 %v1859
      %v2923 = vunpack.c.h.b16 %v1859
      %v2924 = vunpack.c.l.b16 %v1860
      %v2925 = vunpack.c.h.b16 %v1860
      %v2926 = vunpack.c.l.b16 %v1861
      %v2927 = vunpack.c.h.b16 %v1861
      %v2928 = vunpack.c.l.b16 %v1862
      %v2929 = vunpack.c.h.b16 %v1862
      %v2930 = vunpack.c.l.b16 %v1863
      %v2931 = vunpack.c.h.b16 %v1863
      %v2932 = vunpack.c.l.b16 %v1864
      %v2933 = vunpack.c.h.b16 %v1864
      %v2934 = vunpack.c.l.b16 %v1865
      %v2935 = vunpack.c.h.b16 %v1865
      %v2936 = vunpack.c.l.b16 %v1866
      %v2937 = vunpack.c.h.b16 %v1866
      %v2938 = vunpack.c.l.b16 %v1867
      %v2939 = vunpack.c.h.b16 %v1867
      %v2940 = vunpack.c.l.b16 %v1868
      %v2941 = vunpack.c.h.b16 %v1868
      %v2942 = vunpack.c.l.b16 %v1869
      %v2943 = vunpack.c.h.b16 %v1869
      %v2944 = vunpack.c.l.b16 %v1870
      %v2945 = vunpack.c.h.b16 %v1870
      %v2946 = vunpack.c.l.b16 %v1871
      %v2947 = vunpack.c.h.b16 %v1871
      %v2948 = vunpack.c.l.b16 %v1872
      %v2949 = vunpack.c.h.b16 %v1872
      %v2950 = vunpack.c.l.b16 %v1873
      %v2951 = vunpack.c.h.b16 %v1873
      %v2952 = vunpack.c.l.b16 %v1874
      %v2953 = vunpack.c.h.b16 %v1874
      %v2954 = vunpack.c.l.b16 %v1875
      %v2955 = vunpack.c.h.b16 %v1875
      %v2956 = vunpack.c.l.b16 %v1876
      %v2957 = vunpack.c.h.b16 %v1876
      %v2958 = vunpack.c.l.b16 %v1877
      %v2959 = vunpack.c.h.b16 %v1877
      %v2960 = vunpack.c.l.b16 %v1878
      %v2961 = vunpack.c.h.b16 %v1878
      %v2962 = vunpack.c.l.b16 %v1879
      %v2963 = vunpack.c.h.b16 %v1879
      %v2964 = vunpack.c.l.b16 %v1880
      %v2965 = vunpack.c.h.b16 %v1880
      %v2966 = vunpack.c.l.b16 %v1881
      %v2967 = vunpack.c.h.b16 %v1881
      %v2968 = vunpack.c.l.b16 %v1882
      %v2969 = vunpack.c.h.b16 %v1882
      %v2970 = vunpack.c.l.b16 %v1883
      %v2971 = vunpack.c.h.b16 %v1883
      %v2972 = vunpack.c.l.b16 %v1884
      %v2973 = vunpack.c.h.b16 %v1884
      %v2974 = vunpack.c.l.b16 %v1885
      %v2975 = vunpack.c.h.b16 %v1885
      %v2976 = vunpack.c.l.b16 %v1886
      %v2977 = vunpack.c.h.b16 %v1886
      %v2978 = vunpack.c.l.b16 %v1887
      %v2979 = vunpack.c.h.b16 %v1887
      %v2980 = vunpack.c.l.b16 %v1888
      %v2981 = vunpack.c.h.b16 %v1888
      %v2982 = vunpack.c.l.b16 %v1889
      %v2983 = vunpack.c.h.b16 %v1889
      %v2984 = vunpack.c.l.b16 %v1890
      %v2985 = vunpack.c.h.b16 %v1890
      %v2986 = vunpack.c.l.b16 %v1891
      %v2987 = vunpack.c.h.b16 %v1891
      %v2988 = vunpack.c.l.b16 %v1892
      %v2989 = vunpack.c.h.b16 %v1892
      %v2990 = vunpack.c.l.b16 %v1893
      %v2991 = vunpack.c.h.b16 %v1893
      %v2992 = vunpack.c.l.b16 %v1894
      %v2993 = vunpack.c.h.b16 %v1894
      %v2994 = vunpack.c.l.b16 %v1895
      %v2995 = vunpack.c.h.b16 %v1895
      %v2996 = vunpack.c.l.b16 %v1896
      %v2997 = vunpack.c.h.b16 %v1896
      %v2998 = vunpack.c.l.b16 %v1897
      %v2999 = vunpack.c.h.b16 %v1897
      %v3000 = vunpack.c.l.b16 %v1898
      %v3001 = vunpack.c.h.b16 %v1898
      %v3002 = vunpack.c.l.b16 %v1899
      %v3003 = vunpack.c.h.b16 %v1899
      %v3004 = vunpack.c.l.b16 %v1900
      %v3005 = vunpack.c.h.b16 %v1900
      %v3006 = vunpack.c.l.b16 %v1901
      %v3007 = vunpack.c.h.b16 %v1901
      %v3008 = vunpack.c.l.b16 %v1902
      %v3009 = vunpack.c.h.b16 %v1902
      %v3010 = vunpack.c.l.b16 %v1903
      %v3011 = vunpack.c.h.b16 %v1903
      %v3012 = vunpack.c.l.b16 %v1904
      %v3013 = vunpack.c.h.b16 %v1904
      %v3014 = vunpack.c.l.b16 %v1905
      %v3015 = vunpack.c.h.b16 %v1905
      %v3016 = vunpack.c.l.b16 %v1906
      %v3017 = vunpack.c.h.b16 %v1906
      %v3018 = vunpack.c.l.b16 %v1907
      %v3019 = vunpack.c.h.b16 %v1907
      %v3020 = vunpack.c.l.b16 %v1908
      %v3021 = vunpack.c.h.b16 %v1908
      %v3022 = vunpack.c.l.b16 %v1909
      %v3023 = vunpack.c.h.b16 %v1909
      %v3024 = vunpack.c.l.b16 %v1910
      %v3025 = vunpack.c.h.b16 %v1910
      %v3026 = vunpack.c.l.b16 %v1911
      %v3027 = vunpack.c.h.b16 %v1911
      %v3028 = vunpack.c.l.b16 %v1912
      %v3029 = vunpack.c.h.b16 %v1912
      %v3030 = vunpack.c.l.b16 %v1913
      %v3031 = vunpack.c.h.b16 %v1913
      %v3032 = vunpack.c.l.b16 %v1914
      %v3033 = vunpack.c.h.b16 %v1914
      %v3034 = vunpack.c.l.b16 %v1915
      %v3035 = vunpack.c.h.b16 %v1915
      %v3036 = vunpack.c.l.b16 %v1916
      %v3037 = vunpack.c.h.b16 %v1916
      %v3038 = vunpack.c.l.b16 %v1917
      %v3039 = vunpack.c.h.b16 %v1917
      %v3040 = vunpack.c.l.b16 %v1918
      %v3041 = vunpack.c.h.b16 %v1918
      %v3042 = vunpack.c.l.b16 %v1919
      %v3043 = vunpack.c.h.b16 %v1919
      %v3044 = vunpack.c.l.b16 %v1920
      %v3045 = vunpack.c.h.b16 %v1920
      %v3046 = vunpack.c.l.b16 %v1921
      %v3047 = vunpack.c.h.b16 %v1921
      %v3048 = vunpack.c.l.b16 %v1922
      %v3049 = vunpack.c.h.b16 %v1922
      %v3050 = vunpack.c.l.b16 %v1923
      %v3051 = vunpack.c.h.b16 %v1923
      %v3052 = vunpack.c.l.b16 %v1924
      %v3053 = vunpack.c.h.b16 %v1924
      %v3054 = vunpack.c.l.b16 %v1925
      %v3055 = vunpack.c.h.b16 %v1925
      %v3056 = vunpack.c.l.b16 %v1926
      %v3057 = vunpack.c.h.b16 %v1926
      %v3058 = vunpack.c.l.b16 %v1927
      %v3059 = vunpack.c.h.b16 %v1927
      %v3060 = vunpack.c.l.b16 %v1928
      %v3061 = vunpack.c.h.b16 %v1928
      %v3062 = vunpack.c.l.b16 %v1929
      %v3063 = vunpack.c.h.b16 %v1929
      %v3064 = vunpack.c.l.b16 %v1930
      %v3065 = vunpack.c.h.b16 %v1930
      %v3066 = vunpack.c.l.b16 %v1931
      %v3067 = vunpack.c.h.b16 %v1931
      %v3068 = vunpack.c.l.b16 %v1932
      %v3069 = vunpack.c.h.b16 %v1932
      %v3070 = vunpack.c.l.b16 %v1933
      %v3071 = vunpack.c.h.b16 %v1933
      %v3072 = vunpack.c.l.b16 %v1934
      %v3073 = vunpack.c.h.b16 %v1934
      %v3074 = vunpack.c.l.b16 %v1935
      %v3075 = vunpack.c.h.b16 %v1935
      %v3076 = vunpack.c.l.b16 %v1936
      %v3077 = vunpack.c.h.b16 %v1936
      %v3078 = vunpack.c.l.b16 %v1937
      %v3079 = vunpack.c.h.b16 %v1937
      %v3080 = vunpack.c.l.b16 %v1938
      %v3081 = vunpack.c.h.b16 %v1938
      %v3082 = vunpack.c.l.b16 %v1939
      %v3083 = vunpack.c.h.b16 %v1939
      %v3084 = vunpack.c.l.b16 %v1940
      %v3085 = vunpack.c.h.b16 %v1940
      %v3086 = vunpack.c.l.b16 %v1941
      %v3087 = vunpack.c.h.b16 %v1941
      %v3088 = vunpack.c.l.b16 %v1942
      %v3089 = vunpack.c.h.b16 %v1942
      %v3090 = vunpack.c.l.b16 %v1943
      %v3091 = vunpack.c.h.b16 %v1943
      %v3092 = vunpack.c.l.b16 %v1944
      %v3093 = vunpack.c.h.b16 %v1944
      %v3094 = vunpack.c.l.b16 %v1945
      %v3095 = vunpack.c.h.b16 %v1945
      %v3096 = vunpack.c.l.b16 %v1946
      %v3097 = vunpack.c.h.b16 %v1946
      %v3098 = vunpack.c.l.b16 %v1947
      %v3099 = vunpack.c.h.b16 %v1947
      %v3100 = vunpack.c.l.b16 %v1948
      %v3101 = vunpack.c.h.b16 %v1948
      %v3102 = vunpack.c.l.b16 %v1949
      %v3103 = vunpack.c.h.b16 %v1949
      %v3104 = vunpack.c.l.b16 %v1950
      %v3105 = vunpack.c.h.b16 %v1950
      %v3106 = vpack.c.b16 %v2346, %v2336
      %v3107 = vpack.c.b16 %v2347, %v2337
      %v3108 = vpack.c.b16 %v2348, %v2338
      %v3109 = vpack.c.b16 %v2349, %v2339
      %v3110 = vpack.c.b16 %v2350, %v2340
      %v3111 = vpack.c.b16 %v2351, %v2341
      %v3112 = vpack.c.b16 %v2352, %v2342
      %v3113 = vpack.c.b16 %v2353, %v2343
      %v3114 = vpack.c.b16 %v2354, %v2344
      %v3115 = vpack.c.b16 %v2355, %v2345
      %v3116 = vpack.c.b16 %v2366, %v2356
      %v3117 = vpack.c.b16 %v2367, %v2357
      %v3118 = vpack.c.b16 %v2368, %v2358
      %v3119 = vpack.c.b16 %v2369, %v2359
      %v3120 = vpack.c.b16 %v2370, %v2360
      %v3121 = vpack.c.b16 %v2371, %v2361
      %v3122 = vpack.c.b16 %v2372, %v2362
      %v3123 = vpack.c.b16 %v2373, %v2363
      %v3124 = vpack.c.b16 %v2374, %v2364
      %v3125 = vpack.c.b16 %v2375, %v2365
      %v3126 = vpack.c.b16 %v2386, %v2376
      %v3127 = vpack.c.b16 %v2387, %v2377
      %v3128 = vpack.c.b16 %v2388, %v2378
      %v3129 = vpack.c.b16 %v2389, %v2379
      %v3130 = vpack.c.b16 %v2390, %v2380
      %v3131 = vpack.c.b16 %v2391, %v2381
      %v3132 = vpack.c.b16 %v2392, %v2382
      %v3133 = vpack.c.b16 %v2393, %v2383
      %v3134 = vpack.c.b16 %v2394, %v2384
      %v3135 = vpack.c.b16 %v2395, %v2385
      %v3136 = vpack.c.b16 %v2406, %v2396
      %v3137 = vpack.c.b16 %v2407, %v2397
      %v3138 = vpack.c.b16 %v2408, %v2398
      %v3139 = vpack.c.b16 %v2409, %v2399
      %v3140 = vpack.c.b16 %v2410, %v2400
      %v3141 = vpack.c.b16 %v2411, %v2401
      %v3142 = vpack.c.b16 %v2412, %v2402
      %v3143 = vpack.c.b16 %v2413, %v2403
      %v3144 = vpack.c.b16 %v2414, %v2404
      %v3145 = vpack.c.b16 %v2415, %v2405
      %v3146 = vpack.c.b16 %v2426, %v2416
      %v3147 = vpack.c.b16 %v2427, %v2417
      %v3148 = vpack.c.b16 %v2428, %v2418
      %v3149 = vpack.c.b16 %v2429, %v2419
      %v3150 = vpack.c.b16 %v2430, %v2420
      %v3151 = vpack.c.b16 %v2431, %v2421
      %v3152 = vpack.c.b16 %v2432, %v2422
      %v3153 = vpack.c.b16 %v2433, %v2423
      %v3154 = vpack.c.b16 %v2434, %v2424
      %v3155 = vpack.c.b16 %v2435, %v2425
      %v3156 = vpack.c.b16 %v2446, %v2436
      %v3157 = vpack.c.b16 %v2447, %v2437
      %v3158 = vpack.c.b16 %v2448, %v2438
      %v3159 = vpack.c.b16 %v2449, %v2439
      %v3160 = vpack.c.b16 %v2450, %v2440
      %v3161 = vpack.c.b16 %v2451, %v2441
      %v3162 = vpack.c.b16 %v2452, %v2442
      %v3163 = vpack.c.b16 %v2453, %v2443
      %v3164 = vpack.c.b16 %v2454, %v2444
      %v3165 = vpack.c.b16 %v2455, %v2445
      %v3166 = vpack.c.b16 %v2466, %v2456
      %v3167 = vpack.c.b16 %v2467, %v2457
      %v3168 = vpack.c.b16 %v2468, %v2458
      %v3169 = vpack.c.b16 %v2469, %v2459
      %v3170 = vpack.c.b16 %v2470, %v2460
      %v3171 = vpack.c.b16 %v2471, %v2461
      %v3172 = vpack.c.b16 %v2472, %v2462
      %v3173 = vpack.c.b16 %v2473, %v2463
      %v3174 = vpack.c.b16 %v2474, %v2464
      %v3175 = vpack.c.b16 %v2475, %v2465
      %v3176 = vpack.c.b16 %v2486, %v2476
      %v3177 = vpack.c.b16 %v2487, %v2477
      %v3178 = vpack.c.b16 %v2488, %v2478
      %v3179 = vpack.c.b16 %v2489, %v2479
      %v3180 = vpack.c.b16 %v2490, %v2480
      %v3181 = vpack.c.b16 %v2491, %v2481
      %v3182 = vpack.c.b16 %v2492, %v2482
      %v3183 = vpack.c.b16 %v2493, %v2483
      %v3184 = vpack.c.b16 %v2494, %v2484
      %v3185 = vpack.c.b16 %v2495, %v2485
      %v3186 = vpack.c.b16 %v2506, %v2496
      %v3187 = vpack.c.b16 %v2507, %v2497
      %v3188 = vpack.c.b16 %v2508, %v2498
      %v3189 = vpack.c.b16 %v2509, %v2499
      %v3190 = vpack.c.b16 %v2510, %v2500
      %v3191 = vpack.c.b16 %v2511, %v2501
      %v3192 = vpack.c.b16 %v2512, %v2502
      %v3193 = vpack.c.b16 %v2513, %v2503
      %v3194 = vpack.c.b16 %v2514, %v2504
      %v3195 = vpack.c.b16 %v2515, %v2505
      %v3196 = vpack.c.b16 %v2526, %v2516
      %v3197 = vpack.c.b16 %v2527, %v2517
      %v3198 = vpack.c.b16 %v2528, %v2518
      %v3199 = vpack.c.b16 %v2529, %v2519
      %v3200 = vpack.c.b16 %v2530, %v2520
      %v3201 = vpack.c.b16 %v2531, %v2521
      %v3202 = vpack.c.b16 %v2532, %v2522
      %v3203 = vpack.c.b16 %v2533, %v2523
      %v3204 = vpack.c.b16 %v2534, %v2524
      %v3205 = vpack.c.b16 %v2535, %v2525
      %v3206 = vpack.c.b16 %v2546, %v2536
      %v3207 = vpack.c.b16 %v2547, %v2537
      %v3208 = vpack.c.b16 %v2548, %v2538
      %v3209 = vpack.c.b16 %v2549, %v2539
      %v3210 = vpack.c.b16 %v2550, %v2540
      %v3211 = vpack.c.b16 %v2551, %v2541
      %v3212 = vpack.c.b16 %v2552, %v2542
      %v3213 = vpack.c.b16 %v2553, %v2543
      %v3214 = vpack.c.b16 %v2554, %v2544
      %v3215 = vpack.c.b16 %v2555, %v2545
      %v3216 = vpack.c.b16 %v2566, %v2556
      %v3217 = vpack.c.b16 %v2567, %v2557
      %v3218 = vpack.c.b16 %v2568, %v2558
      %v3219 = vpack.c.b16 %v2569, %v2559
      %v3220 = vpack.c.b16 %v2570, %v2560
      %v3221 = vpack.c.b16 %v2571, %v2561
      %v3222 = vpack.c.b16 %v2572, %v2562
      %v3223 = vpack.c.b16 %v2573, %v2563
      %v3224 = vpack.c.b16 %v2574, %v2564
      %v3225 = vpack.c.b16 %v2575, %v2565
      %v3226 = vpack.c.b16 %v2586, %v2576
      %v3227 = vpack.c.b16 %v2587, %v2577
      %v3228 = vpack.c.b16 %v2588, %v2578
      %v3229 = vpack.c.b16 %v2589, %v2579
      %v3230 = vpack.c.b16 %v2590, %v2580
      %v3231 = vpack.c.b16 %v2591, %v2581
      %v3232 = vpack.c.b16 %v2592, %v2582
      %v3233 = vpack.c.b16 %v2593, %v2583
      %v3234 = vpack.c.b16 %v2594, %v2584
      %v3235 = vpack.c.b16 %v2595, %v2585
      %v3236 = vpack.c.b16 %v2606, %v2596
      %v3237 = vpack.c.b16 %v2607, %v2597
      %v3238 = vpack.c.b16 %v2608, %v2598
      %v3239 = vpack.c.b16 %v2609, %v2599
      %v3240 = vpack.c.b16 %v2610, %v2600
      %v3241 = vpack.c.b16 %v2611, %v2601
      %v3242 = vpack.c.b16 %v2612, %v2602
      %v3243 = vpack.c.b16 %v2613, %v2603
      %v3244 = vpack.c.b16 %v2614, %v2604
      %v3245 = vpack.c.b16 %v2615, %v2605
      %v3246 = vpack.c.b16 %v2626, %v2616
      %v3247 = vpack.c.b16 %v2627, %v2617
      %v3248 = vpack.c.b16 %v2628, %v2618
      %v3249 = vpack.c.b16 %v2629, %v2619
      %v3250 = vpack.c.b16 %v2630, %v2620
      %v3251 = vpack.c.b16 %v2631, %v2621
      %v3252 = vpack.c.b16 %v2632, %v2622
      %v3253 = vpack.c.b16 %v2633, %v2623
      %v3254 = vpack.c.b16 %v2634, %v2624
      %v3255 = vpack.c.b16 %v2635, %v2625
      %v3256 = vpack.c.b16 %v2646, %v2636
      %v3257 = vpack.c.b16 %v2647, %v2637
      %v3258 = vpack.c.b16 %v2648, %v2638
      %v3259 = vpack.c.b16 %v2649, %v2639
      %v3260 = vpack.c.b16 %v2650, %v2640
      %v3261 = vpack.c.b16 %v2651, %v2641
      %v3262 = vpack.c.b16 %v2652, %v2642
      %v3263 = vpack.c.b16 %v2653, %v2643
      %v3264 = vpack.c.b16 %v2654, %v2644
      %v3265 = vpack.c.b16 %v2655, %v2645
      %v3266 = vpack.c.b16 %v2666, %v2656
      %v3267 = vpack.c.b16 %v2667, %v2657
      %v3268 = vpack.c.b16 %v2668, %v2658
      %v3269 = vpack.c.b16 %v2669, %v2659
      %v3270 = vpack.c.b16 %v2670, %v2660
      %v3271 = vpack.c.b16 %v2671, %v2661
      %v3272 = vpack.c.b16 %v2672, %v2662
      %v3273 = vpack.c.b16 %v2673, %v2663
      %v3274 = vpack.c.b16 %v2674, %v2664
      %v3275 = vpack.c.b16 %v2675, %v2665
      %v3276 = vpack.c.b16 %v2686, %v2676
      %v3277 = vpack.c.b16 %v2687, %v2677
      %v3278 = vpack.c.b16 %v2688, %v2678
      %v3279 = vpack.c.b16 %v2689, %v2679
      %v3280 = vpack.c.b16 %v2690, %v2680
      %v3281 = vpack.c.b16 %v2691, %v2681
      %v3282 = vpack.c.b16 %v2692, %v2682
      %v3283 = vpack.c.b16 %v2693, %v2683
      %v3284 = vpack.c.b16 %v2694, %v2684
      %v3285 = vpack.c.b16 %v2695, %v2685
      %v3286 = vpack.c.b16 %v2706, %v2696
      %v3287 = vpack.c.b16 %v2707, %v2697
      %v3288 = vpack.c.b16 %v2708, %v2698
      %v3289 = vpack.c.b16 %v2709, %v2699
      %v3290 = vpack.c.b16 %v2710, %v2700
      %v3291 = vpack.c.b16 %v2711, %v2701
      %v3292 = vpack.c.b16 %v2712, %v2702
      %v3293 = vpack.c.b16 %v2713, %v2703
      %v3294 = vpack.c.b16 %v2714, %v2704
      %v3295 = vpack.c.b16 %v2715, %v2705
      %v3296 = vpack.c.b16 %v2726, %v2716
      %v3297 = vpack.c.b16 %v2727, %v2717
      %v3298 = vpack.c.b16 %v2728, %v2718
      %v3299 = vpack.c.b16 %v2729, %v2719
      %v3300 = vpack.c.b16 %v2730, %v2720
      %v3301 = vpack.c.b16 %v2731, %v2721
      %v3302 = vpack.c.b16 %v2732, %v2722
      %v3303 = vpack.c.b16 %v2733, %v2723
      %v3304 = vpack.c.b16 %v2734, %v2724
      %v3305 = vpack.c.b16 %v2735, %v2725
      %v3306 = vpack.c.b16 %v2746, %v2736
      %v3307 = vpack.c.b16 %v2747, %v2737
      %v3308 = vpack.c.b16 %v2748, %v2738
      %v3309 = vpack.c.b16 %v2749, %v2739
      %v3310 = vpack.c.b16 %v2750, %v2740
      %v3311 = vpack.c.b16 %v2751, %v2741
      %v3312 = vpack.c.b16 %v2752, %v2742
      %v3313 = vpack.c.b16 %v2753, %v2743
      %v3314 = vpack.c.b16 %v2754, %v2744
      %v3315 = vpack.c.b16 %v2755, %v2745
      %v3316 = vpack.c.b16 %v2766, %v2756
      %v3317 = vpack.c.b16 %v2767, %v2757
      %v3318 = vpack.c.b16 %v2768, %v2758
      %v3319 = vpack.c.b16 %v2769, %v2759
      %v3320 = vpack.c.b16 %v2770, %v2760
      %v3321 = vpack.c.b16 %v2771, %v2761
      %v3322 = vpack.c.b16 %v2772, %v2762
      %v3323 = vpack.c.b16 %v2773, %v2763
      %v3324 = vpack.c.b16 %v2774, %v2764
      %v3325 = vpack.c.b16 %v2775, %v2765
      %v3326 = vpack.c.b16 %v2786, %v2776
      %v3327 = vpack.c.b16 %v2787, %v2777
      %v3328 = vpack.c.b16 %v2788, %v2778
      %v3329 = vpack.c.b16 %v2789, %v2779
      %v3330 = vpack.c.b16 %v2790, %v2780
      %v3331 = vpack.c.b16 %v2791, %v2781
      %v3332 = vpack.c.b16 %v2792, %v2782
      %v3333 = vpack.c.b16 %v2793, %v2783
      %v3334 = vpack.c.b16 %v2794, %v2784
      %v3335 = vpack.c.b16 %v2795, %v2785
      %v3336 = vpack.c.b16 %v2806, %v2796
      %v3337 = vpack.c.b16 %v2807, %v2797
      %v3338 = vpack.c.b16 %v2808, %v2798
      %v3339 = vpack.c.b16 %v2809, %v2799
      %v3340 = vpack.c.b16 %v2810, %v2800
      %v3341 = vpack.c.b16 %v2811, %v2801
      %v3342 = vpack.c.b16 %v2812, %v2802
      %v3343 = vpack.c.b16 %v2813, %v2803
      %v3344 = vpack.c.b16 %v2814, %v2804
      %v3345 = vpack.c.b16 %v2815, %v2805
      %v3346 = vpack.c.b16 %v2826, %v2816
      %v3347 = vpack.c.b16 %v2827, %v2817
      %v3348 = vpack.c.b16 %v2828, %v2818
      %v3349 = vpack.c.b16 %v2829, %v2819
      %v3350 = vpack.c.b16 %v2830, %v2820
      %v3351 = vpack.c.b16 %v2831, %v2821
      %v3352 = vpack.c.b16 %v2832, %v2822
      %v3353 = vpack.c.b16 %v2833, %v2823
      %v3354 = vpack.c.b16 %v2834, %v2824
      %v3355 = vpack.c.b16 %v2835, %v2825
      %v3356 = vpack.c.b16 %v2846, %v2836
      %v3357 = vpack.c.b16 %v2847, %v2837
      %v3358 = vpack.c.b16 %v2848, %v2838
      %v3359 = vpack.c.b16 %v2849, %v2839
      %v3360 = vpack.c.b16 %v2850, %v2840
      %v3361 = vpack.c.b16 %v2851, %v2841
      %v3362 = vpack.c.b16 %v2852, %v2842
      %v3363 = vpack.c.b16 %v2853, %v2843
      %v3364 = vpack.c.b16 %v2854, %v2844
      %v3365 = vpack.c.b16 %v2855, %v2845
      %v3366 = vpack.c.b16 %v2866, %v2856
      %v3367 = vpack.c.b16 %v2867, %v2857
      %v3368 = vpack.c.b16 %v2868, %v2858
      %v3369 = vpack.c.b16 %v2869, %v2859
      %v3370 = vpack.c.b16 %v2870, %v2860
      %v3371 = vpack.c.b16 %v2871, %v2861
      %v3372 = vpack.c.b16 %v2872, %v2862
      %v3373 = vpack.c.b16 %v2873, %v2863
      %v3374 = vpack.c.b16 %v2874, %v2864
      %v3375 = vpack.c.b16 %v2875, %v2865
      %v3376 = vpack.c.b16 %v2886, %v2876
      %v3377 = vpack.c.b16 %v2887, %v2877
      %v3378 = vpack.c.b16 %v2888, %v2878
      %v3379 = vpack.c.b16 %v2889, %v2879
      %v3380 = vpack.c.b16 %v2890, %v2880
      %v3381 = vpack.c.b16 %v2891, %v2881
      %v3382 = vpack.c.b16 %v2892, %v2882
      %v3383 = vpack.c.b16 %v2893, %v2883
      %v3384 = vpack.c.b16 %v2894, %v2884
      %v3385 = vpack.c.b16 %v2895, %v2885
      %v3386 = vpack.c.b16 %v2906, %v2896
      %v3387 = vpack.c.b16 %v2907, %v2897
      %v3388 = vpack.c.b16 %v2908, %v2898
      %v3389 = vpack.c.b16 %v2909, %v2899
      %v3390 = vpack.c.b16 %v2910, %v2900
      %v3391 = vpack.c.b16 %v2911, %v2901
      %v3392 = vpack.c.b16 %v2912, %v2902
      %v3393 = vpack.c.b16 %v2913, %v2903
      %v3394 = vpack.c.b16 %v2914, %v2904
      %v3395 = vpack.c.b16 %v2915, %v2905
      %v3396 = vpack.c.b16 %v2926, %v2916
      %v3397 = vpack.c.b16 %v2927, %v2917
      %v3398 = vpack.c.b16 %v2928, %v2918
      %v3399 = vpack.c.b16 %v2929, %v2919
      %v3400 = vpack.c.b16 %v2930, %v2920
      %v3401 = vpack.c.b16 %v2931, %v2921
      %v3402 = vpack.c.b16 %v2932, %v2922
      %v3403 = vpack.c.b16 %v2933, %v2923
      %v3404 = vpack.c.b16 %v2934, %v2924
      %v3405 = vpack.c.b16 %v2935, %v2925
      %v3406 = vpack.c.b16 %v2946, %v2936
      %v3407 = vpack.c.b16 %v2947, %v2937
      %v3408 = vpack.c.b16 %v2948, %v2938
      %v3409 = vpack.c.b16 %v2949, %v2939
      %v3410 = vpack.c.b16 %v2950, %v2940
      %v3411 = vpack.c.b16 %v2951, %v2941
      %v3412 = vpack.c.b16 %v2952, %v2942
      %v3413 = vpack.c.b16 %v2953, %v2943
      %v3414 = vpack.c.b16 %v2954, %v2944
      %v3415 = vpack.c.b16 %v2955, %v2945
      %v3416 = vpack.c.b16 %v2966, %v2956
      %v3417 = vpack.c.b16 %v2967, %v2957
      %v3418 = vpack.c.b16 %v2968, %v2958
      %v3419 = vpack.c.b16 %v2969, %v2959
      %v3420 = vpack.c.b16 %v2970, %v2960
      %v3421 = vpack.c.b16 %v2971, %v2961
      %v3422 = vpack.c.b16 %v2972, %v2962
      %v3423 = vpack.c.b16 %v2973, %v2963
      %v3424 = vpack.c.b16 %v2974, %v2964
      %v3425 = vpack.c.b16 %v2975, %v2965
      %v3426 = vpack.c.b16 %v2986, %v2976
      %v3427 = vpack.c.b16 %v2987, %v2977
      %v3428 = vpack.c.b16 %v2988, %v2978
      %v3429 = vpack.c.b16 %v2989, %v2979
      %v3430 = vpack.c.b16 %v2990, %v2980
      %v3431 = vpack.c.b16 %v2991, %v2981
      %v3432 = vpack.c.b16 %v2992, %v2982
      %v3433 = vpack.c.b16 %v2993, %v2983
      %v3434 = vpack.c.b16 %v2994, %v2984
      %v3435 = vpack.c.b16 %v2995, %v2985
      %v3436 = vpack.c.b16 %v3006, %v2996
      %v3437 = vpack.c.b16 %v3007, %v2997
      %v3438 = vpack.c.b16 %v3008, %v2998
      %v3439 = vpack.c.b16 %v3009, %v2999
      %v3440 = vpack.c.b16 %v3010, %v3000
      %v3441 = vpack.c.b16 %v3011, %v3001
      %v3442 = vpack.c.b16 %v3012, %v3002
      %v3443 = vpack.c.b16 %v3013, %v3003
      %v3444 = vpack.c.b16 %v3014, %v3004
      %v3445 = vpack.c.b16 %v3015, %v3005
      %v3446 = vpack.c.b16 %v3026, %v3016
      %v3447 = vpack.c.b16 %v3027, %v3017
      %v3448 = vpack.c.b16 %v3028, %v3018
      %v3449 = vpack.c.b16 %v3029, %v3019
      %v3450 = vpack.c.b16 %v3030, %v3020
      %v3451 = vpack.c.b16 %v3031, %v3021
      %v3452 = vpack.c.b16 %v3032, %v3022
      %v3453 = vpack.c.b16 %v3033, %v3023
      %v3454 = vpack.c.b16 %v3034, %v3024
      %v3455 = vpack.c.b16 %v3035, %v3025
      %v3456 = vpack.c.b16 %v3046, %v3036
      %v3457 = vpack.c.b16 %v3047, %v3037
      %v3458 = vpack.c.b16 %v3048, %v3038
      %v3459 = vpack.c.b16 %v3049, %v3039
      %v3460 = vpack.c.b16 %v3050, %v3040
      %v3461 = vpack.c.b16 %v3051, %v3041
      %v3462 = vpack.c.b16 %v3052, %v3042
      %v3463 = vpack.c.b16 %v3053, %v3043
      %v3464 = vpack.c.b16 %v3054, %v3044
      %v3465 = vpack.c.b16 %v3055, %v3045
      %v3466 = vpack.c.b16 %v3066, %v3056
      %v3467 = vpack.c.b16 %v3067, %v3057
      %v3468 = vpack.c.b16 %v3068, %v3058
      %v3469 = vpack.c.b16 %v3069, %v3059
      %v3470 = vpack.c.b16 %v3070, %v3060
      %v3471 = vpack.c.b16 %v3071, %v3061
      %v3472 = vpack.c.b16 %v3072, %v3062
      %v3473 = vpack.c.b16 %v3073, %v3063
      %v3474 = vpack.c.b16 %v3074, %v3064
      %v3475 = vpack.c.b16 %v3075, %v3065
      %v3476 = vpack.c.b16 %v3086, %v3076
      %v3477 = vpack.c.b16 %v3087, %v3077
      %v3478 = vpack.c.b16 %v3088, %v3078
      %v3479 = vpack.c.b16 %v3089, %v3079
      %v3480 = vpack.c.b16 %v3090, %v3080
      %v3481 = vpack.c.b16 %v3091, %v3081
      %v3482 = vpack.c.b16 %v3092, %v3082
      %v3483 = vpack.c.b16 %v3093, %v3083
      %v3484 = vpack.c.b16 %v3094, %v3084
      %v3485 = vpack.c.b16 %v3095, %v3085
      %v3486 = vpack.c.b16 %v3096, %v3096
      %v3487 = vpack.c.b16 %v3097, %v3097
      %v3488 = vpack.c.b16 %v3098, %v3098
      %v3489 = vpack.c.b16 %v3099, %v3099
      %v3490 = vpack.c.b16 %v3100, %v3100
      %v3491 = vpack.c.b16 %v3101, %v3101
      %v3492 = vpack.c.b16 %v3102, %v3102
      %v3493 = vpack.c.b16 %v3103, %v3103
      %v3494 = vpack.c.b16 %v3104, %v3104
      %v3495 = vpack.c.b16 %v3105, %v3105
      %vm3847 = vcmask 654336
      %v3849 = vsel %vm3847, %v3115, 0
      %v3852 = vsel %vm3847, %v3125, 0
      %v3855 = vsel %vm3847, %v3135, 0
      %v3858 = vsel %vm3847, %v3145, 0
      %v3861 = vsel %vm3847, %v3155, 0
      %v3864 = vsel %vm3847, %v3165, 0
      %v3867 = vsel %vm3847, %v3175, 0
      %v3870 = vsel %vm3847, %v3185, 0
      %v3873 = vsel %vm3847, %v3195, 0
      %v3876 = vsel %vm3847, %v3205, 0
      %v3879 = vsel %vm3847, %v3215, 0
      %v3882 = vsel %vm3847, %v3225, 0
      %v3885 = vsel %vm3847, %v3235, 0
      %v3888 = vsel %vm3847, %v3245, 0
      %v3891 = vsel %vm3847, %v3255, 0
      %v3894 = vsel %vm3847, %v3265, 0
      %v3897 = vsel %vm3847, %v3275, 0
      %v3900 = vsel %vm3847, %v3285, 0
      %v3903 = vsel %vm3847, %v3295, 0
      %v3906 = vsel %vm3847, %v3305, 0
      %v3909 = vsel %vm3847, %v3315, 0
      %v3912 = vsel %vm3847, %v3325, 0
      %v3915 = vsel %vm3847, %v3335, 0
      %v3918 = vsel %vm3847, %v3345, 0
      %v3921 = vsel %vm3847, %v3355, 0
      %v3924 = vsel %vm3847, %v3365, 0
      %v3927 = vsel %vm3847, %v3375, 0
      %v3930 = vsel %vm3847, %v3385, 0
      %v3933 = vsel %vm3847, %v3395, 0
      %v3936 = vsel %vm3847, %v3405, 0
      %v3939 = vsel %vm3847, %v3415, 0
      %v3942 = vsel %vm3847, %v3425, 0
      %v3945 = vsel %vm3847, %v3435, 0
      %v3948 = vsel %vm3847, %v3445, 0
      %v3951 = vsel %vm3847, %v3455, 0
      %v3954 = vsel %vm3847, %v3465, 0
      %v3957 = vsel %vm3847, %v3475, 0
      %v3960 = vsel %vm3847, %v3485, 0
      %v3963 = vsel %vm3847, %v3495, 0
      %3965 = vmatprep.subr.bf16.mxu0 %v1413
      %3966 = vmatpush1.bf16.msra.mxu0 %v1412
      %3967 = vmatprep.subr.bf16.mxu0 %v1415
      %3968 = vmatpush1.bf16.msra.mxu0 %v1414
      %3969 = vmatprep.subr.bf16.mxu0 %v1417
      %3970 = vmatpush1.bf16.msra.mxu0 %v1416
      %3971 = vmatprep.subr.bf16.mxu0 %v1419
      %3972 = vmatpush1.bf16.msra.mxu0 %v1418
      %3973 = vmatprep.subr.bf16.mxu0 %v1421
      %3974 = vmatpush1.bf16.msra.mxu0 %v1420
      %3975 = vmatprep.subr.bf16.mxu0 %v1423
      %3976 = vmatpush1.bf16.msra.mxu0 %v1422
      %3977 = vmatprep.subr.bf16.mxu0 %v1425
      %3978 = vmatpush1.bf16.msra.mxu0 %v1424
      %3979 = vmatprep.subr.bf16.mxu0 %v1427
      %3980 = vmatpush1.bf16.msra.mxu0 %v1426
      %3981 = vmatprep.subr.bf16.mxu0 %v1429
      %3982 = vmatpush1.bf16.msra.mxu0 %v1428
      %3983 = vmatprep.subr.bf16.mxu0 %v1431
      %3984 = vmatpush1.bf16.msra.mxu0 %v1430
      %3985 = vmatprep.subr.bf16.mxu0 %v1433
      %3986 = vmatpush1.bf16.msra.mxu0 %v1432
      %3987 = vmatprep.subr.bf16.mxu0 %v1435
      %3988 = vmatpush1.bf16.msra.mxu0 %v1434
      %3989 = vmatprep.subr.bf16.mxu0 %v1437
      %3990 = vmatpush1.bf16.msra.mxu0 %v1436
      %3991 = vmatprep.subr.bf16.mxu0 %v1439
      %3992 = vmatpush1.bf16.msra.mxu0 %v1438
      %3993 = vmatprep.subr.bf16.mxu0 %v1441
      %3994 = vmatpush1.bf16.msra.mxu0 %v1440
      %3995 = vmatprep.subr.bf16.mxu0 %v1443
      %3996 = vmatpush1.bf16.msra.mxu0 %v1442
      %3997 = vmatprep.mubr.bf16.mxu0 %v3107
      %3998 = vmatmul.mubr.bf16.gmra.mrb[0].mxu0 %v3106
      %v3999 = vpop.f32.mrb[0].mxu0
      %v4000 = vadd.f32 0.0, %v3999
      %v4001 = vpop.f32.mrb[0].mxu0
      %v4002 = vadd.f32 0.0, %v4001
      %v4003 = vpop.f32.mrb[0].mxu0
      %v4004 = vadd.f32 0.0, %v4003
      %v4005 = vpop.f32.mrb[0].mxu0
      %v4006 = vadd.f32 0.0, %v4005
      %4007 = vmatprep.mubr.bf16.mxu0 %v3117
      %4008 = vmatmul.mubr.bf16.gmra.mrb[0].mxu0 %v3116
      %v4009 = vpop.f32.mrb[0].mxu0
      %v4010 = vadd.f32 0.0, %v4009
      %v4011 = vpop.f32.mrb[0].mxu0
      %v4012 = vadd.f32 0.0, %v4011
      %v4013 = vpop.f32.mrb[0].mxu0
      %v4014 = vadd.f32 0.0, %v4013
      %v4015 = vpop.f32.mrb[0].mxu0
      %v4016 = vadd.f32 0.0, %v4015
      %4017 = vmatprep.mubr.bf16.mxu0 %v3127
      %4018 = vmatmul.mubr.bf16.gmra.mrb[0].mxu0 %v3126
      %v4019 = vpop.f32.mrb[0].mxu0
      %v4020 = vadd.f32 0.0, %v4019
      %v4021 = vpop.f32.mrb[0].mxu0
      %v4022 = vadd.f32 0.0, %v4021
      %v4023 = vpop.f32.mrb[0].mxu0
      %v4024 = vadd.f32 0.0, %v4023
      %v4025 = vpop.f32.mrb[0].mxu0
      %v4026 = vadd.f32 0.0, %v4025
      %4027 = vmatprep.mubr.bf16.mxu0 %v3137
      %4028 = vmatmul.mubr.bf16.gmra.mrb[0].mxu0 %v3136
      %v4029 = vpop.f32.mrb[0].mxu0
      %v4030 = vadd.f32 0.0, %v4029
      %v4031 = vpop.f32.mrb[0].mxu0
      %v4032 = vadd.f32 0.0, %v4031
      %v4033 = vpop.f32.mrb[0].mxu0
      %v4034 = vadd.f32 0.0, %v4033
      %v4035 = vpop.f32.mrb[0].mxu0
      %v4036 = vadd.f32 0.0, %v4035
      %4037 = vmatprep.mubr.bf16.mxu0 %v3147
      %4038 = vmatmul.mubr.bf16.gmra.mrb[0].mxu0 %v3146
      %v4039 = vpop.f32.mrb[0].mxu0
      %v4040 = vadd.f32 0.0, %v4039
      %v4041 = vpop.f32.mrb[0].mxu0
      %v4042 = vadd.f32 0.0, %v4041
      %v4043 = vpop.f32.mrb[0].mxu0
      %v4044 = vadd.f32 0.0, %v4043
      %v4045 = vpop.f32.mrb[0].mxu0
      %v4046 = vadd.f32 0.0, %v4045
      %4047 = vmatprep.mubr.bf16.mxu0 %v3157
      %4048 = vmatmul.mubr.bf16.gmra.mrb[0].mxu0 %v3156
      %v4049 = vpop.f32.mrb[0].mxu0
      %v4050 = vadd.f32 0.0, %v4049
      %v4051 = vpop.f32.mrb[0].mxu0
      %v4052 = vadd.f32 0.0, %v4051
      %v4053 = vpop.f32.mrb[0].mxu0
      %v4054 = vadd.f32 0.0, %v4053
      %v4055 = vpop.f32.mrb[0].mxu0
      %v4056 = vadd.f32 0.0, %v4055
      %4057 = vmatprep.mubr.bf16.mxu0 %v3167
      %4058 = vmatmul.mubr.bf16.gmra.mrb[0].mxu0 %v3166
      %v4059 = vpop.f32.mrb[0].mxu0
      %v4060 = vadd.f32 0.0, %v4059
      %v4061 = vpop.f32.mrb[0].mxu0
      %v4062 = vadd.f32 0.0, %v4061
      %v4063 = vpop.f32.mrb[0].mxu0
      %v4064 = vadd.f32 0.0, %v4063
      %v4065 = vpop.f32.mrb[0].mxu0
      %v4066 = vadd.f32 0.0, %v4065
      %4067 = vmatprep.mubr.bf16.mxu0 %v3177
      %4068 = vmatmul.mubr.bf16.gmra.mrb[0].mxu0 %v3176
      %v4069 = vpop.f32.mrb[0].mxu0
      %v4070 = vadd.f32 0.0, %v4069
      %v4071 = vpop.f32.mrb[0].mxu0
      %v4072 = vadd.f32 0.0, %v4071
      %v4073 = vpop.f32.mrb[0].mxu0
      %v4074 = vadd.f32 0.0, %v4073
      %v4075 = vpop.f32.mrb[0].mxu0
      %v4076 = vadd.f32 0.0, %v4075
      %4077 = vmatprep.mubr.bf16.mxu0 %v3187
      %4078 = vmatmul.mubr.bf16.gmra.mrb[0].mxu0 %v3186
      %v4079 = vpop.f32.mrb[0].mxu0
      %v4080 = vadd.f32 0.0, %v4079
      %v4081 = vpop.f32.mrb[0].mxu0
      %v4082 = vadd.f32 0.0, %v4081
      %v4083 = vpop.f32.mrb[0].mxu0
      %v4084 = vadd.f32 0.0, %v4083
      %v4085 = vpop.f32.mrb[0].mxu0
      %v4086 = vadd.f32 0.0, %v4085
      %4087 = vmatprep.mubr.bf16.mxu0 %v3197
      %4088 = vmatmul.mubr.bf16.gmra.mrb[0].mxu0 %v3196
      %v4089 = vpop.f32.mrb[0].mxu0
      %v4090 = vadd.f32 0.0, %v4089
      %v4091 = vpop.f32.mrb[0].mxu0
      %v4092 = vadd.f32 0.0, %v4091
      %v4093 = vpop.f32.mrb[0].mxu0
      %v4094 = vadd.f32 0.0, %v4093
      %v4095 = vpop.f32.mrb[0].mxu0
      %v4096 = vadd.f32 0.0, %v4095
      %4097 = vmatprep.mubr.bf16.mxu0 %v3207
      %4098 = vmatmul.mubr.bf16.gmra.mrb[0].mxu0 %v3206
      %v4099 = vpop.f32.mrb[0].mxu0
      %v4100 = vadd.f32 0.0, %v4099
      %v4101 = vpop.f32.mrb[0].mxu0
      %v4102 = vadd.f32 0.0, %v4101
      %v4103 = vpop.f32.mrb[0].mxu0
      %v4104 = vadd.f32 0.0, %v4103
      %v4105 = vpop.f32.mrb[0].mxu0
      %v4106 = vadd.f32 0.0, %v4105
      %4107 = vmatprep.mubr.bf16.mxu0 %v3217
      %4108 = vmatmul.mubr.bf16.gmra.mrb[0].mxu0 %v3216
      %v4109 = vpop.f32.mrb[0].mxu0
      %v4110 = vadd.f32 0.0, %v4109
      %v4111 = vpop.f32.mrb[0].mxu0
      %v4112 = vadd.f32 0.0, %v4111
      %v4113 = vpop.f32.mrb[0].mxu0
      %v4114 = vadd.f32 0.0, %v4113
      %v4115 = vpop.f32.mrb[0].mxu0
      %v4116 = vadd.f32 0.0, %v4115
      %4117 = vmatprep.mubr.bf16.mxu0 %v3227
      %4118 = vmatmul.mubr.bf16.gmra.mrb[0].mxu0 %v3226
      %v4119 = vpop.f32.mrb[0].mxu0
      %v4120 = vadd.f32 0.0, %v4119
      %v4121 = vpop.f32.mrb[0].mxu0
      %v4122 = vadd.f32 0.0, %v4121
      %v4123 = vpop.f32.mrb[0].mxu0
      %v4124 = vadd.f32 0.0, %v4123
      %v4125 = vpop.f32.mrb[0].mxu0
      %v4126 = vadd.f32 0.0, %v4125
      %4127 = vmatprep.mubr.bf16.mxu0 %v3237
      %4128 = vmatmul.mubr.bf16.gmra.mrb[0].mxu0 %v3236
      %v4129 = vpop.f32.mrb[0].mxu0
      %v4130 = vadd.f32 0.0, %v4129
      %v4131 = vpop.f32.mrb[0].mxu0
      %v4132 = vadd.f32 0.0, %v4131
      %v4133 = vpop.f32.mrb[0].mxu0
      %v4134 = vadd.f32 0.0, %v4133
      %v4135 = vpop.f32.mrb[0].mxu0
      %v4136 = vadd.f32 0.0, %v4135
      %4137 = vmatprep.mubr.bf16.mxu0 %v3247
      %4138 = vmatmul.mubr.bf16.gmra.mrb[0].mxu0 %v3246
      %v4139 = vpop.f32.mrb[0].mxu0
      %v4140 = vadd.f32 0.0, %v4139
      %v4141 = vpop.f32.mrb[0].mxu0
      %v4142 = vadd.f32 0.0, %v4141
      %v4143 = vpop.f32.mrb[0].mxu0
      %v4144 = vadd.f32 0.0, %v4143
      %v4145 = vpop.f32.mrb[0].mxu0
      %v4146 = vadd.f32 0.0, %v4145
      %4147 = vmatprep.mubr.bf16.mxu0 %v3257
      %4148 = vmatmul.mubr.bf16.gmra.mrb[0].mxu0 %v3256
      %v4149 = vpop.f32.mrb[0].mxu0
      %v4150 = vadd.f32 0.0, %v4149
      %v4151 = vpop.f32.mrb[0].mxu0
      %v4152 = vadd.f32 0.0, %v4151
      %v4153 = vpop.f32.mrb[0].mxu0
      %v4154 = vadd.f32 0.0, %v4153
      %v4155 = vpop.f32.mrb[0].mxu0
      %v4156 = vadd.f32 0.0, %v4155
      %4157 = vmatprep.mubr.bf16.mxu0 %v3267
      %4158 = vmatmul.mubr.bf16.gmra.mrb[0].mxu0 %v3266
      %v4159 = vpop.f32.mrb[0].mxu0
      %v4160 = vadd.f32 0.0, %v4159
      %v4161 = vpop.f32.mrb[0].mxu0
      %v4162 = vadd.f32 0.0, %v4161
      %v4163 = vpop.f32.mrb[0].mxu0
      %v4164 = vadd.f32 0.0, %v4163
      %v4165 = vpop.f32.mrb[0].mxu0
      %v4166 = vadd.f32 0.0, %v4165
      %4167 = vmatprep.mubr.bf16.mxu0 %v3277
      %4168 = vmatmul.mubr.bf16.gmra.mrb[0].mxu0 %v3276
      %v4169 = vpop.f32.mrb[0].mxu0
      %v4170 = vadd.f32 0.0, %v4169
      %v4171 = vpop.f32.mrb[0].mxu0
      %v4172 = vadd.f32 0.0, %v4171
      %v4173 = vpop.f32.mrb[0].mxu0
      %v4174 = vadd.f32 0.0, %v4173
      %v4175 = vpop.f32.mrb[0].mxu0
      %v4176 = vadd.f32 0.0, %v4175
      %4177 = vmatprep.mubr.bf16.mxu0 %v3287
      %4178 = vmatmul.mubr.bf16.gmra.mrb[0].mxu0 %v3286
      %v4179 = vpop.f32.mrb[0].mxu0
      %v4180 = vadd.f32 0.0, %v4179
      %v4181 = vpop.f32.mrb[0].mxu0
      %v4182 = vadd.f32 0.0, %v4181
      %v4183 = vpop.f32.mrb[0].mxu0
      %v4184 = vadd.f32 0.0, %v4183
      %v4185 = vpop.f32.mrb[0].mxu0
      %v4186 = vadd.f32 0.0, %v4185
      %4187 = vmatprep.mubr.bf16.mxu0 %v3297
      %4188 = vmatmul.mubr.bf16.gmra.mrb[0].mxu0 %v3296
      %v4189 = vpop.f32.mrb[0].mxu0
      %v4190 = vadd.f32 0.0, %v4189
      %v4191 = vpop.f32.mrb[0].mxu0
      %v4192 = vadd.f32 0.0, %v4191
      %v4193 = vpop.f32.mrb[0].mxu0
      %v4194 = vadd.f32 0.0, %v4193
      %v4195 = vpop.f32.mrb[0].mxu0
      %v4196 = vadd.f32 0.0, %v4195
      %4197 = vmatprep.mubr.bf16.mxu0 %v3307
      %4198 = vmatmul.mubr.bf16.gmra.mrb[0].mxu0 %v3306
      %v4199 = vpop.f32.mrb[0].mxu0
      %v4200 = vadd.f32 0.0, %v4199
      %v4201 = vpop.f32.mrb[0].mxu0
      %v4202 = vadd.f32 0.0, %v4201
      %v4203 = vpop.f32.mrb[0].mxu0
      %v4204 = vadd.f32 0.0, %v4203
      %v4205 = vpop.f32.mrb[0].mxu0
      %v4206 = vadd.f32 0.0, %v4205
      %4207 = vmatprep.mubr.bf16.mxu0 %v3317
      %4208 = vmatmul.mubr.bf16.gmra.mrb[0].mxu0 %v3316
      %v4209 = vpop.f32.mrb[0].mxu0
      %v4210 = vadd.f32 0.0, %v4209
      %v4211 = vpop.f32.mrb[0].mxu0
      %v4212 = vadd.f32 0.0, %v4211
      %v4213 = vpop.f32.mrb[0].mxu0
      %v4214 = vadd.f32 0.0, %v4213
      %v4215 = vpop.f32.mrb[0].mxu0
      %v4216 = vadd.f32 0.0, %v4215
      %4217 = vmatprep.mubr.bf16.mxu0 %v3327
      %4218 = vmatmul.mubr.bf16.gmra.mrb[0].mxu0 %v3326
      %v4219 = vpop.f32.mrb[0].mxu0
      %v4220 = vadd.f32 0.0, %v4219
      %v4221 = vpop.f32.mrb[0].mxu0
      %v4222 = vadd.f32 0.0, %v4221
      %v4223 = vpop.f32.mrb[0].mxu0
      %v4224 = vadd.f32 0.0, %v4223
      %v4225 = vpop.f32.mrb[0].mxu0
      %v4226 = vadd.f32 0.0, %v4225
      %4227 = vmatprep.mubr.bf16.mxu0 %v3337
      %4228 = vmatmul.mubr.bf16.gmra.mrb[0].mxu0 %v3336
      %v4229 = vpop.f32.mrb[0].mxu0
      %v4230 = vadd.f32 0.0, %v4229
      %v4231 = vpop.f32.mrb[0].mxu0
      %v4232 = vadd.f32 0.0, %v4231
      %v4233 = vpop.f32.mrb[0].mxu0
      %v4234 = vadd.f32 0.0, %v4233
      %v4235 = vpop.f32.mrb[0].mxu0
      %v4236 = vadd.f32 0.0, %v4235
      %4237 = vmatprep.mubr.bf16.mxu0 %v3347
      %4238 = vmatmul.mubr.bf16.gmra.mrb[0].mxu0 %v3346
      %v4239 = vpop.f32.mrb[0].mxu0
      %v4240 = vadd.f32 0.0, %v4239
      %v4241 = vpop.f32.mrb[0].mxu0
      %v4242 = vadd.f32 0.0, %v4241
      %v4243 = vpop.f32.mrb[0].mxu0
      %v4244 = vadd.f32 0.0, %v4243
      %v4245 = vpop.f32.mrb[0].mxu0
      %v4246 = vadd.f32 0.0, %v4245
      %4247 = vmatprep.mubr.bf16.mxu0 %v3357
      %4248 = vmatmul.mubr.bf16.gmra.mrb[0].mxu0 %v3356
      %v4249 = vpop.f32.mrb[0].mxu0
      %v4250 = vadd.f32 0.0, %v4249
      %v4251 = vpop.f32.mrb[0].mxu0
      %v4252 = vadd.f32 0.0, %v4251
      %v4253 = vpop.f32.mrb[0].mxu0
      %v4254 = vadd.f32 0.0, %v4253
      %v4255 = vpop.f32.mrb[0].mxu0
      %v4256 = vadd.f32 0.0, %v4255
      %4257 = vmatprep.mubr.bf16.mxu0 %v3367
      %4258 = vmatmul.mubr.bf16.gmra.mrb[0].mxu0 %v3366
      %v4259 = vpop.f32.mrb[0].mxu0
      %v4260 = vadd.f32 0.0, %v4259
      %v4261 = vpop.f32.mrb[0].mxu0
      %v4262 = vadd.f32 0.0, %v4261
      %v4263 = vpop.f32.mrb[0].mxu0
      %v4264 = vadd.f32 0.0, %v4263
      %v4265 = vpop.f32.mrb[0].mxu0
      %v4266 = vadd.f32 0.0, %v4265
      %4267 = vmatprep.mubr.bf16.mxu0 %v3377
      %4268 = vmatmul.mubr.bf16.gmra.mrb[0].mxu0 %v3376
      %v4269 = vpop.f32.mrb[0].mxu0
      %v4270 = vadd.f32 0.0, %v4269
      %v4271 = vpop.f32.mrb[0].mxu0
      %v4272 = vadd.f32 0.0, %v4271
      %v4273 = vpop.f32.mrb[0].mxu0
      %v4274 = vadd.f32 0.0, %v4273
      %v4275 = vpop.f32.mrb[0].mxu0
      %v4276 = vadd.f32 0.0, %v4275
      %4277 = vmatprep.mubr.bf16.mxu0 %v3387
      %4278 = vmatmul.mubr.bf16.gmra.mrb[0].mxu0 %v3386
      %v4279 = vpop.f32.mrb[0].mxu0
      %v4280 = vadd.f32 0.0, %v4279
      %v4281 = vpop.f32.mrb[0].mxu0
      %v4282 = vadd.f32 0.0, %v4281
      %v4283 = vpop.f32.mrb[0].mxu0
      %v4284 = vadd.f32 0.0, %v4283
      %v4285 = vpop.f32.mrb[0].mxu0
      %v4286 = vadd.f32 0.0, %v4285
      %4287 = vmatprep.mubr.bf16.mxu0 %v3397
      %4288 = vmatmul.mubr.bf16.gmra.mrb[0].mxu0 %v3396
      %v4289 = vpop.f32.mrb[0].mxu0
      %v4290 = vadd.f32 0.0, %v4289
      %v4291 = vpop.f32.mrb[0].mxu0
      %v4292 = vadd.f32 0.0, %v4291
      %v4293 = vpop.f32.mrb[0].mxu0
      %v4294 = vadd.f32 0.0, %v4293
      %v4295 = vpop.f32.mrb[0].mxu0
      %v4296 = vadd.f32 0.0, %v4295
      %4297 = vmatprep.mubr.bf16.mxu0 %v3407
      %4298 = vmatmul.mubr.bf16.gmra.mrb[0].mxu0 %v3406
      %v4299 = vpop.f32.mrb[0].mxu0
      %v4300 = vadd.f32 0.0, %v4299
      %v4301 = vpop.f32.mrb[0].mxu0
      %v4302 = vadd.f32 0.0, %v4301
      %v4303 = vpop.f32.mrb[0].mxu0
      %v4304 = vadd.f32 0.0, %v4303
      %v4305 = vpop.f32.mrb[0].mxu0
      %v4306 = vadd.f32 0.0, %v4305
      %4307 = vmatprep.mubr.bf16.mxu0 %v3417
      %4308 = vmatmul.mubr.bf16.gmra.mrb[0].mxu0 %v3416
      %v4309 = vpop.f32.mrb[0].mxu0
      %v4310 = vadd.f32 0.0, %v4309
      %v4311 = vpop.f32.mrb[0].mxu0
      %v4312 = vadd.f32 0.0, %v4311
      %v4313 = vpop.f32.mrb[0].mxu0
      %v4314 = vadd.f32 0.0, %v4313
      %v4315 = vpop.f32.mrb[0].mxu0
      %v4316 = vadd.f32 0.0, %v4315
      %4317 = vmatprep.mubr.bf16.mxu0 %v3427
      %4318 = vmatmul.mubr.bf16.gmra.mrb[0].mxu0 %v3426
      %v4319 = vpop.f32.mrb[0].mxu0
      %v4320 = vadd.f32 0.0, %v4319
      %v4321 = vpop.f32.mrb[0].mxu0
      %v4322 = vadd.f32 0.0, %v4321
      %v4323 = vpop.f32.mrb[0].mxu0
      %v4324 = vadd.f32 0.0, %v4323
      %v4325 = vpop.f32.mrb[0].mxu0
      %v4326 = vadd.f32 0.0, %v4325
      %4327 = vmatprep.mubr.bf16.mxu0 %v3437
      %4328 = vmatmul.mubr.bf16.gmra.mrb[0].mxu0 %v3436
      %v4329 = vpop.f32.mrb[0].mxu0
      %v4330 = vadd.f32 0.0, %v4329
      %v4331 = vpop.f32.mrb[0].mxu0
      %v4332 = vadd.f32 0.0, %v4331
      %v4333 = vpop.f32.mrb[0].mxu0
      %v4334 = vadd.f32 0.0, %v4333
      %v4335 = vpop.f32.mrb[0].mxu0
      %v4336 = vadd.f32 0.0, %v4335
      %4337 = vmatprep.mubr.bf16.mxu0 %v3447
      %4338 = vmatmul.mubr.bf16.gmra.mrb[0].mxu0 %v3446
      %v4339 = vpop.f32.mrb[0].mxu0
      %v4340 = vadd.f32 0.0, %v4339
      %v4341 = vpop.f32.mrb[0].mxu0
      %v4342 = vadd.f32 0.0, %v4341
      %v4343 = vpop.f32.mrb[0].mxu0
      %v4344 = vadd.f32 0.0, %v4343
      %v4345 = vpop.f32.mrb[0].mxu0
      %v4346 = vadd.f32 0.0, %v4345
      %4347 = vmatprep.mubr.bf16.mxu0 %v3457
      %4348 = vmatmul.mubr.bf16.gmra.mrb[0].mxu0 %v3456
      %v4349 = vpop.f32.mrb[0].mxu0
      %v4350 = vadd.f32 0.0, %v4349
      %v4351 = vpop.f32.mrb[0].mxu0
      %v4352 = vadd.f32 0.0, %v4351
      %v4353 = vpop.f32.mrb[0].mxu0
      %v4354 = vadd.f32 0.0, %v4353
      %v4355 = vpop.f32.mrb[0].mxu0
      %v4356 = vadd.f32 0.0, %v4355
      %4357 = vmatprep.mubr.bf16.mxu0 %v3467
      %4358 = vmatmul.mubr.bf16.gmra.mrb[0].mxu0 %v3466
      %v4359 = vpop.f32.mrb[0].mxu0
      %v4360 = vadd.f32 0.0, %v4359
      %v4361 = vpop.f32.mrb[0].mxu0
      %v4362 = vadd.f32 0.0, %v4361
      %v4363 = vpop.f32.mrb[0].mxu0
      %v4364 = vadd.f32 0.0, %v4363
      %v4365 = vpop.f32.mrb[0].mxu0
      %v4366 = vadd.f32 0.0, %v4365
      %4367 = vmatprep.mubr.bf16.mxu0 %v3477
      %4368 = vmatmul.mubr.bf16.gmra.mrb[0].mxu0 %v3476
      %v4369 = vpop.f32.mrb[0].mxu0
      %v4370 = vadd.f32 0.0, %v4369
      %v4371 = vpop.f32.mrb[0].mxu0
      %v4372 = vadd.f32 0.0, %v4371
      %v4373 = vpop.f32.mrb[0].mxu0
      %v4374 = vadd.f32 0.0, %v4373
      %v4375 = vpop.f32.mrb[0].mxu0
      %v4376 = vadd.f32 0.0, %v4375
      %4377 = vmatprep.mubr.bf16.mxu0 %v3487
      %4378 = vmatmul.mubr.bf16.gmra.mrb[0].mxu0 %v3486
      %v4379 = vpop.f32.mrb[0].mxu0
      %v4380 = vadd.f32 0.0, %v4379
      %v4381 = vpop.f32.mrb[0].mxu0
      %v4382 = vadd.f32 0.0, %v4381
      %v4383 = vpop.f32.mrb[0].mxu0
      %v4384 = vpop.f32.mrb[0].mxu0
      %4385 = vdwg.mxu0
      %4386 = vmatprep.subr.bf16.mxu0 %v1445
      %4387 = vmatpush1.bf16.msra.mxu0 %v1444
      %4388 = vmatprep.subr.bf16.mxu0 %v1447
      %4389 = vmatpush1.bf16.msra.mxu0 %v1446
      %4390 = vmatprep.subr.bf16.mxu0 %v1449
      %4391 = vmatpush1.bf16.msra.mxu0 %v1448
      %4392 = vmatprep.subr.bf16.mxu0 %v1451
      %4393 = vmatpush1.bf16.msra.mxu0 %v1450
      %4394 = vmatprep.subr.bf16.mxu0 %v1453
      %4395 = vmatpush1.bf16.msra.mxu0 %v1452
      %4396 = vmatprep.subr.bf16.mxu0 %v1455
      %4397 = vmatpush1.bf16.msra.mxu0 %v1454
      %4398 = vmatprep.subr.bf16.mxu0 %v1457
      %4399 = vmatpush1.bf16.msra.mxu0 %v1456
      %4400 = vmatprep.subr.bf16.mxu0 %v1459
      %4401 = vmatpush1.bf16.msra.mxu0 %v1458
      %4402 = vmatprep.subr.bf16.mxu0 %v1461
      %4403 = vmatpush1.bf16.msra.mxu0 %v1460
      %4404 = vmatprep.subr.bf16.mxu0 %v1463
      %4405 = vmatpush1.bf16.msra.mxu0 %v1462
      %4406 = vmatprep.subr.bf16.mxu0 %v1465
      %4407 = vmatpush1.bf16.msra.mxu0 %v1464
      %4408 = vmatprep.subr.bf16.mxu0 %v1467
      %4409 = vmatpush1.bf16.msra.mxu0 %v1466
      %4410 = vmatprep.subr.bf16.mxu0 %v1469
      %4411 = vmatpush1.bf16.msra.mxu0 %v1468
      %4412 = vmatprep.subr.bf16.mxu0 %v1471
      %4413 = vmatpush1.bf16.msra.mxu0 %v1470
      %4414 = vmatprep.subr.bf16.mxu0 %v1473
      %4415 = vmatpush1.bf16.msra.mxu0 %v1472
      %4416 = vmatprep.subr.bf16.mxu0 %v1475
      %4417 = vmatpush1.bf16.msra.mxu0 %v1474
      %4418 = vmatprep.mubr.bf16.mxu0 %v3109
      %4419 = vmatmul.mubr.bf16.gmra.mrb[0].mxu0 %v3108
      %v4420 = vpop.f32.mrb[0].mxu0
      %v4421 = vadd.f32 %v4000, %v4420
      %v4422 = vpop.f32.mrb[0].mxu0
      %v4423 = vadd.f32 %v4002, %v4422
      %v4424 = vpop.f32.mrb[0].mxu0
      %v4425 = vadd.f32 %v4004, %v4424
      %v4426 = vpop.f32.mrb[0].mxu0
      %v4427 = vadd.f32 %v4006, %v4426
      %4428 = vmatprep.mubr.bf16.mxu0 %v3119
      %4429 = vmatmul.mubr.bf16.gmra.mrb[0].mxu0 %v3118
      %v4430 = vpop.f32.mrb[0].mxu0
      %v4431 = vadd.f32 %v4010, %v4430
      %v4432 = vpop.f32.mrb[0].mxu0
      %v4433 = vadd.f32 %v4012, %v4432
      %v4434 = vpop.f32.mrb[0].mxu0
      %v4435 = vadd.f32 %v4014, %v4434
      %v4436 = vpop.f32.mrb[0].mxu0
      %v4437 = vadd.f32 %v4016, %v4436
      %4438 = vmatprep.mubr.bf16.mxu0 %v3129
      %4439 = vmatmul.mubr.bf16.gmra.mrb[0].mxu0 %v3128
      %v4440 = vpop.f32.mrb[0].mxu0
      %v4441 = vadd.f32 %v4020, %v4440
      %v4442 = vpop.f32.mrb[0].mxu0
      %v4443 = vadd.f32 %v4022, %v4442
      %v4444 = vpop.f32.mrb[0].mxu0
      %v4445 = vadd.f32 %v4024, %v4444
      %v4446 = vpop.f32.mrb[0].mxu0
      %v4447 = vadd.f32 %v4026, %v4446
      %4448 = vmatprep.mubr.bf16.mxu0 %v3139
      %4449 = vmatmul.mubr.bf16.gmra.mrb[0].mxu0 %v3138
      %v4450 = vpop.f32.mrb[0].mxu0
      %v4451 = vadd.f32 %v4030, %v4450
      %v4452 = vpop.f32.mrb[0].mxu0
      %v4453 = vadd.f32 %v4032, %v4452
      %v4454 = vpop.f32.mrb[0].mxu0
      %v4455 = vadd.f32 %v4034, %v4454
      %v4456 = vpop.f32.mrb[0].mxu0
      %v4457 = vadd.f32 %v4036, %v4456
      %4458 = vmatprep.mubr.bf16.mxu0 %v3149
      %4459 = vmatmul.mubr.bf16.gmra.mrb[0].mxu0 %v3148
      %v4460 = vpop.f32.mrb[0].mxu0
      %v4461 = vadd.f32 %v4040, %v4460
      %v4462 = vpop.f32.mrb[0].mxu0
      %v4463 = vadd.f32 %v4042, %v4462
      %v4464 = vpop.f32.mrb[0].mxu0
      %v4465 = vadd.f32 %v4044, %v4464
      %v4466 = vpop.f32.mrb[0].mxu0
      %v4467 = vadd.f32 %v4046, %v4466
      %4468 = vmatprep.mubr.bf16.mxu0 %v3159
      %4469 = vmatmul.mubr.bf16.gmra.mrb[0].mxu0 %v3158
      %v4470 = vpop.f32.mrb[0].mxu0
      %v4471 = vadd.f32 %v4050, %v4470
      %v4472 = vpop.f32.mrb[0].mxu0
      %v4473 = vadd.f32 %v4052, %v4472
      %v4474 = vpop.f32.mrb[0].mxu0
      %v4475 = vadd.f32 %v4054, %v4474
      %v4476 = vpop.f32.mrb[0].mxu0
      %v4477 = vadd.f32 %v4056, %v4476
      %4478 = vmatprep.mubr.bf16.mxu0 %v3169
      %4479 = vmatmul.mubr.bf16.gmra.mrb[0].mxu0 %v3168
      %v4480 = vpop.f32.mrb[0].mxu0
      %v4481 = vadd.f32 %v4060, %v4480
      %v4482 = vpop.f32.mrb[0].mxu0
      %v4483 = vadd.f32 %v4062, %v4482
      %v4484 = vpop.f32.mrb[0].mxu0
      %v4485 = vadd.f32 %v4064, %v4484
      %v4486 = vpop.f32.mrb[0].mxu0
      %v4487 = vadd.f32 %v4066, %v4486
      %4488 = vmatprep.mubr.bf16.mxu0 %v3179
      %4489 = vmatmul.mubr.bf16.gmra.mrb[0].mxu0 %v3178
      %v4490 = vpop.f32.mrb[0].mxu0
      %v4491 = vadd.f32 %v4070, %v4490
      %v4492 = vpop.f32.mrb[0].mxu0
      %v4493 = vadd.f32 %v4072, %v4492
      %v4494 = vpop.f32.mrb[0].mxu0
      %v4495 = vadd.f32 %v4074, %v4494
      %v4496 = vpop.f32.mrb[0].mxu0
      %v4497 = vadd.f32 %v4076, %v4496
      %4498 = vmatprep.mubr.bf16.mxu0 %v3189
      %4499 = vmatmul.mubr.bf16.gmra.mrb[0].mxu0 %v3188
      %v4500 = vpop.f32.mrb[0].mxu0
      %v4501 = vadd.f32 %v4080, %v4500
      %v4502 = vpop.f32.mrb[0].mxu0
      %v4503 = vadd.f32 %v4082, %v4502
      %v4504 = vpop.f32.mrb[0].mxu0
      %v4505 = vadd.f32 %v4084, %v4504
      %v4506 = vpop.f32.mrb[0].mxu0
      %v4507 = vadd.f32 %v4086, %v4506
      %4508 = vmatprep.mubr.bf16.mxu0 %v3199
      %4509 = vmatmul.mubr.bf16.gmra.mrb[0].mxu0 %v3198
      %v4510 = vpop.f32.mrb[0].mxu0
      %v4511 = vadd.f32 %v4090, %v4510
      %v4512 = vpop.f32.mrb[0].mxu0
      %v4513 = vadd.f32 %v4092, %v4512
      %v4514 = vpop.f32.mrb[0].mxu0
      %v4515 = vadd.f32 %v4094, %v4514
      %v4516 = vpop.f32.mrb[0].mxu0
      %v4517 = vadd.f32 %v4096, %v4516
      %4518 = vmatprep.mubr.bf16.mxu0 %v3209
      %4519 = vmatmul.mubr.bf16.gmra.mrb[0].mxu0 %v3208
      %v4520 = vpop.f32.mrb[0].mxu0
      %v4521 = vadd.f32 %v4100, %v4520
      %v4522 = vpop.f32.mrb[0].mxu0
      %v4523 = vadd.f32 %v4102, %v4522
      %v4524 = vpop.f32.mrb[0].mxu0
      %v4525 = vadd.f32 %v4104, %v4524
      %v4526 = vpop.f32.mrb[0].mxu0
      %v4527 = vadd.f32 %v4106, %v4526
      %4528 = vmatprep.mubr.bf16.mxu0 %v3219
      %4529 = vmatmul.mubr.bf16.gmra.mrb[0].mxu0 %v3218
      %v4530 = vpop.f32.mrb[0].mxu0
      %v4531 = vadd.f32 %v4110, %v4530
      %v4532 = vpop.f32.mrb[0].mxu0
      %v4533 = vadd.f32 %v4112, %v4532
      %v4534 = vpop.f32.mrb[0].mxu0
      %v4535 = vadd.f32 %v4114, %v4534
      %v4536 = vpop.f32.mrb[0].mxu0
      %v4537 = vadd.f32 %v4116, %v4536
      %4538 = vmatprep.mubr.bf16.mxu0 %v3229
      %4539 = vmatmul.mubr.bf16.gmra.mrb[0].mxu0 %v3228
      %v4540 = vpop.f32.mrb[0].mxu0
      %v4541 = vadd.f32 %v4120, %v4540
      %v4542 = vpop.f32.mrb[0].mxu0
      %v4543 = vadd.f32 %v4122, %v4542
      %v4544 = vpop.f32.mrb[0].mxu0
      %v4545 = vadd.f32 %v4124, %v4544
      %v4546 = vpop.f32.mrb[0].mxu0
      %v4547 = vadd.f32 %v4126, %v4546
      %4548 = vmatprep.mubr.bf16.mxu0 %v3239
      %4549 = vmatmul.mubr.bf16.gmra.mrb[0].mxu0 %v3238
      %v4550 = vpop.f32.mrb[0].mxu0
      %v4551 = vadd.f32 %v4130, %v4550
      %v4552 = vpop.f32.mrb[0].mxu0
      %v4553 = vadd.f32 %v4132, %v4552
      %v4554 = vpop.f32.mrb[0].mxu0
      %v4555 = vadd.f32 %v4134, %v4554
      %v4556 = vpop.f32.mrb[0].mxu0
      %v4557 = vadd.f32 %v4136, %v4556
      %4558 = vmatprep.mubr.bf16.mxu0 %v3249
      %4559 = vmatmul.mubr.bf16.gmra.mrb[0].mxu0 %v3248
      %v4560 = vpop.f32.mrb[0].mxu0
      %v4561 = vadd.f32 %v4140, %v4560
      %v4562 = vpop.f32.mrb[0].mxu0
      %v4563 = vadd.f32 %v4142, %v4562
      %v4564 = vpop.f32.mrb[0].mxu0
      %v4565 = vadd.f32 %v4144, %v4564
      %v4566 = vpop.f32.mrb[0].mxu0
      %v4567 = vadd.f32 %v4146, %v4566
      %4568 = vmatprep.mubr.bf16.mxu0 %v3259
      %4569 = vmatmul.mubr.bf16.gmra.mrb[0].mxu0 %v3258
      %v4570 = vpop.f32.mrb[0].mxu0
      %v4571 = vadd.f32 %v4150, %v4570
      %v4572 = vpop.f32.mrb[0].mxu0
      %v4573 = vadd.f32 %v4152, %v4572
      %v4574 = vpop.f32.mrb[0].mxu0
      %v4575 = vadd.f32 %v4154, %v4574
      %v4576 = vpop.f32.mrb[0].mxu0
      %v4577 = vadd.f32 %v4156, %v4576
      %4578 = vmatprep.mubr.bf16.mxu0 %v3269
      %4579 = vmatmul.mubr.bf16.gmra.mrb[0].mxu0 %v3268
      %v4580 = vpop.f32.mrb[0].mxu0
      %v4581 = vadd.f32 %v4160, %v4580
      %v4582 = vpop.f32.mrb[0].mxu0
      %v4583 = vadd.f32 %v4162, %v4582
      %v4584 = vpop.f32.mrb[0].mxu0
      %v4585 = vadd.f32 %v4164, %v4584
      %v4586 = vpop.f32.mrb[0].mxu0
      %v4587 = vadd.f32 %v4166, %v4586
      %4588 = vmatprep.mubr.bf16.mxu0 %v3279
      %4589 = vmatmul.mubr.bf16.gmra.mrb[0].mxu0 %v3278
      %v4590 = vpop.f32.mrb[0].mxu0
      %v4591 = vadd.f32 %v4170, %v4590
      %v4592 = vpop.f32.mrb[0].mxu0
      %v4593 = vadd.f32 %v4172, %v4592
      %v4594 = vpop.f32.mrb[0].mxu0
      %v4595 = vadd.f32 %v4174, %v4594
      %v4596 = vpop.f32.mrb[0].mxu0
      %v4597 = vadd.f32 %v4176, %v4596
      %4598 = vmatprep.mubr.bf16.mxu0 %v3289
      %4599 = vmatmul.mubr.bf16.gmra.mrb[0].mxu0 %v3288
      %v4600 = vpop.f32.mrb[0].mxu0
      %v4601 = vadd.f32 %v4180, %v4600
      %v4602 = vpop.f32.mrb[0].mxu0
      %v4603 = vadd.f32 %v4182, %v4602
      %v4604 = vpop.f32.mrb[0].mxu0
      %v4605 = vadd.f32 %v4184, %v4604
      %v4606 = vpop.f32.mrb[0].mxu0
      %v4607 = vadd.f32 %v4186, %v4606
      %4608 = vmatprep.mubr.bf16.mxu0 %v3299
      %4609 = vmatmul.mubr.bf16.gmra.mrb[0].mxu0 %v3298
      %v4610 = vpop.f32.mrb[0].mxu0
      %v4611 = vadd.f32 %v4190, %v4610
      %v4612 = vpop.f32.mrb[0].mxu0
      %v4613 = vadd.f32 %v4192, %v4612
      %v4614 = vpop.f32.mrb[0].mxu0
      %v4615 = vadd.f32 %v4194, %v4614
      %v4616 = vpop.f32.mrb[0].mxu0
      %v4617 = vadd.f32 %v4196, %v4616
      %4618 = vmatprep.mubr.bf16.mxu0 %v3309
      %4619 = vmatmul.mubr.bf16.gmra.mrb[0].mxu0 %v3308
      %v4620 = vpop.f32.mrb[0].mxu0
      %v4621 = vadd.f32 %v4200, %v4620
      %v4622 = vpop.f32.mrb[0].mxu0
      %v4623 = vadd.f32 %v4202, %v4622
      %v4624 = vpop.f32.mrb[0].mxu0
      %v4625 = vadd.f32 %v4204, %v4624
      %v4626 = vpop.f32.mrb[0].mxu0
      %v4627 = vadd.f32 %v4206, %v4626
      %4628 = vmatprep.mubr.bf16.mxu0 %v3319
      %4629 = vmatmul.mubr.bf16.gmra.mrb[0].mxu0 %v3318
      %v4630 = vpop.f32.mrb[0].mxu0
      %v4631 = vadd.f32 %v4210, %v4630
      %v4632 = vpop.f32.mrb[0].mxu0
      %v4633 = vadd.f32 %v4212, %v4632
      %v4634 = vpop.f32.mrb[0].mxu0
      %v4635 = vadd.f32 %v4214, %v4634
      %v4636 = vpop.f32.mrb[0].mxu0
      %v4637 = vadd.f32 %v4216, %v4636
      %4638 = vmatprep.mubr.bf16.mxu0 %v3329
      %4639 = vmatmul.mubr.bf16.gmra.mrb[0].mxu0 %v3328
      %v4640 = vpop.f32.mrb[0].mxu0
      %v4641 = vadd.f32 %v4220, %v4640
      %v4642 = vpop.f32.mrb[0].mxu0
      %v4643 = vadd.f32 %v4222, %v4642
      %v4644 = vpop.f32.mrb[0].mxu0
      %v4645 = vadd.f32 %v4224, %v4644
      %v4646 = vpop.f32.mrb[0].mxu0
      %v4647 = vadd.f32 %v4226, %v4646
      %4648 = vmatprep.mubr.bf16.mxu0 %v3339
      %4649 = vmatmul.mubr.bf16.gmra.mrb[0].mxu0 %v3338
      %v4650 = vpop.f32.mrb[0].mxu0
      %v4651 = vadd.f32 %v4230, %v4650
      %v4652 = vpop.f32.mrb[0].mxu0
      %v4653 = vadd.f32 %v4232, %v4652
      %v4654 = vpop.f32.mrb[0].mxu0
      %v4655 = vadd.f32 %v4234, %v4654
      %v4656 = vpop.f32.mrb[0].mxu0
      %v4657 = vadd.f32 %v4236, %v4656
      %4658 = vmatprep.mubr.bf16.mxu0 %v3349
      %4659 = vmatmul.mubr.bf16.gmra.mrb[0].mxu0 %v3348
      %v4660 = vpop.f32.mrb[0].mxu0
      %v4661 = vadd.f32 %v4240, %v4660
      %v4662 = vpop.f32.mrb[0].mxu0
      %v4663 = vadd.f32 %v4242, %v4662
      %v4664 = vpop.f32.mrb[0].mxu0
      %v4665 = vadd.f32 %v4244, %v4664
      %v4666 = vpop.f32.mrb[0].mxu0
      %v4667 = vadd.f32 %v4246, %v4666
      %4668 = vmatprep.mubr.bf16.mxu0 %v3359
      %4669 = vmatmul.mubr.bf16.gmra.mrb[0].mxu0 %v3358
      %v4670 = vpop.f32.mrb[0].mxu0
      %v4671 = vadd.f32 %v4250, %v4670
      %v4672 = vpop.f32.mrb[0].mxu0
      %v4673 = vadd.f32 %v4252, %v4672
      %v4674 = vpop.f32.mrb[0].mxu0
      %v4675 = vadd.f32 %v4254, %v4674
      %v4676 = vpop.f32.mrb[0].mxu0
      %v4677 = vadd.f32 %v4256, %v4676
      %4678 = vmatprep.mubr.bf16.mxu0 %v3369
      %4679 = vmatmul.mubr.bf16.gmra.mrb[0].mxu0 %v3368
      %v4680 = vpop.f32.mrb[0].mxu0
      %v4681 = vadd.f32 %v4260, %v4680
      %v4682 = vpop.f32.mrb[0].mxu0
      %v4683 = vadd.f32 %v4262, %v4682
      %v4684 = vpop.f32.mrb[0].mxu0
      %v4685 = vadd.f32 %v4264, %v4684
      %v4686 = vpop.f32.mrb[0].mxu0
      %v4687 = vadd.f32 %v4266, %v4686
      %4688 = vmatprep.mubr.bf16.mxu0 %v3379
      %4689 = vmatmul.mubr.bf16.gmra.mrb[0].mxu0 %v3378
      %v4690 = vpop.f32.mrb[0].mxu0
      %v4691 = vadd.f32 %v4270, %v4690
      %v4692 = vpop.f32.mrb[0].mxu0
      %v4693 = vadd.f32 %v4272, %v4692
      %v4694 = vpop.f32.mrb[0].mxu0
      %v4695 = vadd.f32 %v4274, %v4694
      %v4696 = vpop.f32.mrb[0].mxu0
      %v4697 = vadd.f32 %v4276, %v4696
      %4698 = vmatprep.mubr.bf16.mxu0 %v3389
      %4699 = vmatmul.mubr.bf16.gmra.mrb[0].mxu0 %v3388
      %v4700 = vpop.f32.mrb[0].mxu0
      %v4701 = vadd.f32 %v4280, %v4700
      %v4702 = vpop.f32.mrb[0].mxu0
      %v4703 = vadd.f32 %v4282, %v4702
      %v4704 = vpop.f32.mrb[0].mxu0
      %v4705 = vadd.f32 %v4284, %v4704
      %v4706 = vpop.f32.mrb[0].mxu0
      %v4707 = vadd.f32 %v4286, %v4706
      %4708 = vmatprep.mubr.bf16.mxu0 %v3399
      %4709 = vmatmul.mubr.bf16.gmra.mrb[0].mxu0 %v3398
      %v4710 = vpop.f32.mrb[0].mxu0
      %v4711 = vadd.f32 %v4290, %v4710
      %v4712 = vpop.f32.mrb[0].mxu0
      %v4713 = vadd.f32 %v4292, %v4712
      %v4714 = vpop.f32.mrb[0].mxu0
      %v4715 = vadd.f32 %v4294, %v4714
      %v4716 = vpop.f32.mrb[0].mxu0
      %v4717 = vadd.f32 %v4296, %v4716
      %4718 = vmatprep.mubr.bf16.mxu0 %v3409
      %4719 = vmatmul.mubr.bf16.gmra.mrb[0].mxu0 %v3408
      %v4720 = vpop.f32.mrb[0].mxu0
      %v4721 = vadd.f32 %v4300, %v4720
      %v4722 = vpop.f32.mrb[0].mxu0
      %v4723 = vadd.f32 %v4302, %v4722
      %v4724 = vpop.f32.mrb[0].mxu0
      %v4725 = vadd.f32 %v4304, %v4724
      %v4726 = vpop.f32.mrb[0].mxu0
      %v4727 = vadd.f32 %v4306, %v4726
      %4728 = vmatprep.mubr.bf16.mxu0 %v3419
      %4729 = vmatmul.mubr.bf16.gmra.mrb[0].mxu0 %v3418
      %v4730 = vpop.f32.mrb[0].mxu0
      %v4731 = vadd.f32 %v4310, %v4730
      %v4732 = vpop.f32.mrb[0].mxu0
      %v4733 = vadd.f32 %v4312, %v4732
      %v4734 = vpop.f32.mrb[0].mxu0
      %v4735 = vadd.f32 %v4314, %v4734
      %v4736 = vpop.f32.mrb[0].mxu0
      %v4737 = vadd.f32 %v4316, %v4736
      %4738 = vmatprep.mubr.bf16.mxu0 %v3429
      %4739 = vmatmul.mubr.bf16.gmra.mrb[0].mxu0 %v3428
      %v4740 = vpop.f32.mrb[0].mxu0
      %v4741 = vadd.f32 %v4320, %v4740
      %v4742 = vpop.f32.mrb[0].mxu0
      %v4743 = vadd.f32 %v4322, %v4742
      %v4744 = vpop.f32.mrb[0].mxu0
      %v4745 = vadd.f32 %v4324, %v4744
      %v4746 = vpop.f32.mrb[0].mxu0
      %v4747 = vadd.f32 %v4326, %v4746
      %4748 = vmatprep.mubr.bf16.mxu0 %v3439
      %4749 = vmatmul.mubr.bf16.gmra.mrb[0].mxu0 %v3438
      %v4750 = vpop.f32.mrb[0].mxu0
      %v4751 = vadd.f32 %v4330, %v4750
      %v4752 = vpop.f32.mrb[0].mxu0
      %v4753 = vadd.f32 %v4332, %v4752
      %v4754 = vpop.f32.mrb[0].mxu0
      %v4755 = vadd.f32 %v4334, %v4754
      %v4756 = vpop.f32.mrb[0].mxu0
      %v4757 = vadd.f32 %v4336, %v4756
      %4758 = vmatprep.mubr.bf16.mxu0 %v3449
      %4759 = vmatmul.mubr.bf16.gmra.mrb[0].mxu0 %v3448
      %v4760 = vpop.f32.mrb[0].mxu0
      %v4761 = vadd.f32 %v4340, %v4760
      %v4762 = vpop.f32.mrb[0].mxu0
      %v4763 = vadd.f32 %v4342, %v4762
      %v4764 = vpop.f32.mrb[0].mxu0
      %v4765 = vadd.f32 %v4344, %v4764
      %v4766 = vpop.f32.mrb[0].mxu0
      %v4767 = vadd.f32 %v4346, %v4766
      %4768 = vmatprep.mubr.bf16.mxu0 %v3459
      %4769 = vmatmul.mubr.bf16.gmra.mrb[0].mxu0 %v3458
      %v4770 = vpop.f32.mrb[0].mxu0
      %v4771 = vadd.f32 %v4350, %v4770
      %v4772 = vpop.f32.mrb[0].mxu0
      %v4773 = vadd.f32 %v4352, %v4772
      %v4774 = vpop.f32.mrb[0].mxu0
      %v4775 = vadd.f32 %v4354, %v4774
      %v4776 = vpop.f32.mrb[0].mxu0
      %v4777 = vadd.f32 %v4356, %v4776
      %4778 = vmatprep.mubr.bf16.mxu0 %v3469
      %4779 = vmatmul.mubr.bf16.gmra.mrb[0].mxu0 %v3468
      %v4780 = vpop.f32.mrb[0].mxu0
      %v4781 = vadd.f32 %v4360, %v4780
      %v4782 = vpop.f32.mrb[0].mxu0
      %v4783 = vadd.f32 %v4362, %v4782
      %v4784 = vpop.f32.mrb[0].mxu0
      %v4785 = vadd.f32 %v4364, %v4784
      %v4786 = vpop.f32.mrb[0].mxu0
      %v4787 = vadd.f32 %v4366, %v4786
      %4788 = vmatprep.mubr.bf16.mxu0 %v3479
      %4789 = vmatmul.mubr.bf16.gmra.mrb[0].mxu0 %v3478
      %v4790 = vpop.f32.mrb[0].mxu0
      %v4791 = vadd.f32 %v4370, %v4790
      %v4792 = vpop.f32.mrb[0].mxu0
      %v4793 = vadd.f32 %v4372, %v4792
      %v4794 = vpop.f32.mrb[0].mxu0
      %v4795 = vadd.f32 %v4374, %v4794
      %v4796 = vpop.f32.mrb[0].mxu0
      %v4797 = vadd.f32 %v4376, %v4796
      %4798 = vmatprep.mubr.bf16.mxu0 %v3489
      %4799 = vmatmul.mubr.bf16.gmra.mrb[0].mxu0 %v3488
      %v4800 = vpop.f32.mrb[0].mxu0
      %v4801 = vadd.f32 %v4380, %v4800
      %v4802 = vpop.f32.mrb[0].mxu0
      %v4803 = vadd.f32 %v4382, %v4802
      %v4804 = vpop.f32.mrb[0].mxu0
      %v4805 = vpop.f32.mrb[0].mxu0
      %4806 = vdwg.mxu0
      %4807 = vmatprep.subr.bf16.mxu0 %v1477
      %4808 = vmatpush1.bf16.msra.mxu0 %v1476
      %4809 = vmatprep.subr.bf16.mxu0 %v1479
      %4810 = vmatpush1.bf16.msra.mxu0 %v1478
      %4811 = vmatprep.subr.bf16.mxu0 %v1481
      %4812 = vmatpush1.bf16.msra.mxu0 %v1480
      %4813 = vmatprep.subr.bf16.mxu0 %v1483
      %4814 = vmatpush1.bf16.msra.mxu0 %v1482
      %4815 = vmatprep.subr.bf16.mxu0 %v1485
      %4816 = vmatpush1.bf16.msra.mxu0 %v1484
      %4817 = vmatprep.subr.bf16.mxu0 %v1487
      %4818 = vmatpush1.bf16.msra.mxu0 %v1486
      %4819 = vmatprep.subr.bf16.mxu0 %v1489
      %4820 = vmatpush1.bf16.msra.mxu0 %v1488
      %4821 = vmatprep.subr.bf16.mxu0 %v1491
      %4822 = vmatpush1.bf16.msra.mxu0 %v1490
      %4823 = vmatprep.subr.bf16.mxu0 %v1493
      %4824 = vmatpush1.bf16.msra.mxu0 %v1492
      %4825 = vmatprep.subr.bf16.mxu0 %v1495
      %4826 = vmatpush1.bf16.msra.mxu0 %v1494
      %4827 = vmatprep.subr.bf16.mxu0 %v1497
      %4828 = vmatpush1.bf16.msra.mxu0 %v1496
      %4829 = vmatprep.subr.bf16.mxu0 %v1499
      %4830 = vmatpush1.bf16.msra.mxu0 %v1498
      %4831 = vmatprep.subr.bf16.mxu0 %v1501
      %4832 = vmatpush1.bf16.msra.mxu0 %v1500
      %4833 = vmatprep.subr.bf16.mxu0 %v1503
      %4834 = vmatpush1.bf16.msra.mxu0 %v1502
      %4835 = vmatprep.subr.bf16.mxu0 %v1505
      %4836 = vmatpush1.bf16.msra.mxu0 %v1504
      %4837 = vmatprep.subr.bf16.mxu0 %v1507
      %4838 = vmatpush1.bf16.msra.mxu0 %v1506
      %4839 = vmatprep.mubr.bf16.mxu0 %v3111
      %4840 = vmatmul.mubr.bf16.gmra.mrb[0].mxu0 %v3110
      %v4841 = vpop.f32.mrb[0].mxu0
      %v4842 = vadd.f32 %v4421, %v4841
      %v4843 = vpop.f32.mrb[0].mxu0
      %v4844 = vadd.f32 %v4423, %v4843
      %v4845 = vpop.f32.mrb[0].mxu0
      %v4846 = vadd.f32 %v4425, %v4845
      %v4847 = vpop.f32.mrb[0].mxu0
      %v4848 = vadd.f32 %v4427, %v4847
      %4849 = vmatprep.mubr.bf16.mxu0 %v3121
      %4850 = vmatmul.mubr.bf16.gmra.mrb[0].mxu0 %v3120
      %v4851 = vpop.f32.mrb[0].mxu0
      %v4852 = vadd.f32 %v4431, %v4851
      %v4853 = vpop.f32.mrb[0].mxu0
      %v4854 = vadd.f32 %v4433, %v4853
      %v4855 = vpop.f32.mrb[0].mxu0
      %v4856 = vadd.f32 %v4435, %v4855
      %v4857 = vpop.f32.mrb[0].mxu0
      %v4858 = vadd.f32 %v4437, %v4857
      %4859 = vmatprep.mubr.bf16.mxu0 %v3131
      %4860 = vmatmul.mubr.bf16.gmra.mrb[0].mxu0 %v3130
      %v4861 = vpop.f32.mrb[0].mxu0
      %v4862 = vadd.f32 %v4441, %v4861
      %v4863 = vpop.f32.mrb[0].mxu0
      %v4864 = vadd.f32 %v4443, %v4863
      %v4865 = vpop.f32.mrb[0].mxu0
      %v4866 = vadd.f32 %v4445, %v4865
      %v4867 = vpop.f32.mrb[0].mxu0
      %v4868 = vadd.f32 %v4447, %v4867
      %4869 = vmatprep.mubr.bf16.mxu0 %v3141
      %4870 = vmatmul.mubr.bf16.gmra.mrb[0].mxu0 %v3140
      %v4871 = vpop.f32.mrb[0].mxu0
      %v4872 = vadd.f32 %v4451, %v4871
      %v4873 = vpop.f32.mrb[0].mxu0
      %v4874 = vadd.f32 %v4453, %v4873
      %v4875 = vpop.f32.mrb[0].mxu0
      %v4876 = vadd.f32 %v4455, %v4875
      %v4877 = vpop.f32.mrb[0].mxu0
      %v4878 = vadd.f32 %v4457, %v4877
      %4879 = vmatprep.mubr.bf16.mxu0 %v3151
      %4880 = vmatmul.mubr.bf16.gmra.mrb[0].mxu0 %v3150
      %v4881 = vpop.f32.mrb[0].mxu0
      %v4882 = vadd.f32 %v4461, %v4881
      %v4883 = vpop.f32.mrb[0].mxu0
      %v4884 = vadd.f32 %v4463, %v4883
      %v4885 = vpop.f32.mrb[0].mxu0
      %v4886 = vadd.f32 %v4465, %v4885
      %v4887 = vpop.f32.mrb[0].mxu0
      %v4888 = vadd.f32 %v4467, %v4887
      %4889 = vmatprep.mubr.bf16.mxu0 %v3161
      %4890 = vmatmul.mubr.bf16.gmra.mrb[0].mxu0 %v3160
      %v4891 = vpop.f32.mrb[0].mxu0
      %v4892 = vadd.f32 %v4471, %v4891
      %v4893 = vpop.f32.mrb[0].mxu0
      %v4894 = vadd.f32 %v4473, %v4893
      %v4895 = vpop.f32.mrb[0].mxu0
      %v4896 = vadd.f32 %v4475, %v4895
      %v4897 = vpop.f32.mrb[0].mxu0
      %v4898 = vadd.f32 %v4477, %v4897
      %4899 = vmatprep.mubr.bf16.mxu0 %v3171
      %4900 = vmatmul.mubr.bf16.gmra.mrb[0].mxu0 %v3170
      %v4901 = vpop.f32.mrb[0].mxu0
      %v4902 = vadd.f32 %v4481, %v4901
      %v4903 = vpop.f32.mrb[0].mxu0
      %v4904 = vadd.f32 %v4483, %v4903
      %v4905 = vpop.f32.mrb[0].mxu0
      %v4906 = vadd.f32 %v4485, %v4905
      %v4907 = vpop.f32.mrb[0].mxu0
      %v4908 = vadd.f32 %v4487, %v4907
      %4909 = vmatprep.mubr.bf16.mxu0 %v3181
      %4910 = vmatmul.mubr.bf16.gmra.mrb[0].mxu0 %v3180
      %v4911 = vpop.f32.mrb[0].mxu0
      %v4912 = vadd.f32 %v4491, %v4911
      %v4913 = vpop.f32.mrb[0].mxu0
      %v4914 = vadd.f32 %v4493, %v4913
      %v4915 = vpop.f32.mrb[0].mxu0
      %v4916 = vadd.f32 %v4495, %v4915
      %v4917 = vpop.f32.mrb[0].mxu0
      %v4918 = vadd.f32 %v4497, %v4917
      %4919 = vmatprep.mubr.bf16.mxu0 %v3191
      %4920 = vmatmul.mubr.bf16.gmra.mrb[0].mxu0 %v3190
      %v4921 = vpop.f32.mrb[0].mxu0
      %v4922 = vadd.f32 %v4501, %v4921
      %v4923 = vpop.f32.mrb[0].mxu0
      %v4924 = vadd.f32 %v4503, %v4923
      %v4925 = vpop.f32.mrb[0].mxu0
      %v4926 = vadd.f32 %v4505, %v4925
      %v4927 = vpop.f32.mrb[0].mxu0
      %v4928 = vadd.f32 %v4507, %v4927
      %4929 = vmatprep.mubr.bf16.mxu0 %v3201
      %4930 = vmatmul.mubr.bf16.gmra.mrb[0].mxu0 %v3200
      %v4931 = vpop.f32.mrb[0].mxu0
      %v4932 = vadd.f32 %v4511, %v4931
      %v4933 = vpop.f32.mrb[0].mxu0
      %v4934 = vadd.f32 %v4513, %v4933
      %v4935 = vpop.f32.mrb[0].mxu0
      %v4936 = vadd.f32 %v4515, %v4935
      %v4937 = vpop.f32.mrb[0].mxu0
      %v4938 = vadd.f32 %v4517, %v4937
      %4939 = vmatprep.mubr.bf16.mxu0 %v3211
      %4940 = vmatmul.mubr.bf16.gmra.mrb[0].mxu0 %v3210
      %v4941 = vpop.f32.mrb[0].mxu0
      %v4942 = vadd.f32 %v4521, %v4941
      %v4943 = vpop.f32.mrb[0].mxu0
      %v4944 = vadd.f32 %v4523, %v4943
      %v4945 = vpop.f32.mrb[0].mxu0
      %v4946 = vadd.f32 %v4525, %v4945
      %v4947 = vpop.f32.mrb[0].mxu0
      %v4948 = vadd.f32 %v4527, %v4947
      %4949 = vmatprep.mubr.bf16.mxu0 %v3221
      %4950 = vmatmul.mubr.bf16.gmra.mrb[0].mxu0 %v3220
      %v4951 = vpop.f32.mrb[0].mxu0
      %v4952 = vadd.f32 %v4531, %v4951
      %v4953 = vpop.f32.mrb[0].mxu0
      %v4954 = vadd.f32 %v4533, %v4953
      %v4955 = vpop.f32.mrb[0].mxu0
      %v4956 = vadd.f32 %v4535, %v4955
      %v4957 = vpop.f32.mrb[0].mxu0
      %v4958 = vadd.f32 %v4537, %v4957
      %4959 = vmatprep.mubr.bf16.mxu0 %v3231
      %4960 = vmatmul.mubr.bf16.gmra.mrb[0].mxu0 %v3230
      %v4961 = vpop.f32.mrb[0].mxu0
      %v4962 = vadd.f32 %v4541, %v4961
      %v4963 = vpop.f32.mrb[0].mxu0
      %v4964 = vadd.f32 %v4543, %v4963
      %v4965 = vpop.f32.mrb[0].mxu0
      %v4966 = vadd.f32 %v4545, %v4965
      %v4967 = vpop.f32.mrb[0].mxu0
      %v4968 = vadd.f32 %v4547, %v4967
      %4969 = vmatprep.mubr.bf16.mxu0 %v3241
      %4970 = vmatmul.mubr.bf16.gmra.mrb[0].mxu0 %v3240
      %v4971 = vpop.f32.mrb[0].mxu0
      %v4972 = vadd.f32 %v4551, %v4971
      %v4973 = vpop.f32.mrb[0].mxu0
      %v4974 = vadd.f32 %v4553, %v4973
      %v4975 = vpop.f32.mrb[0].mxu0
      %v4976 = vadd.f32 %v4555, %v4975
      %v4977 = vpop.f32.mrb[0].mxu0
      %v4978 = vadd.f32 %v4557, %v4977
      %4979 = vmatprep.mubr.bf16.mxu0 %v3251
      %4980 = vmatmul.mubr.bf16.gmra.mrb[0].mxu0 %v3250
      %v4981 = vpop.f32.mrb[0].mxu0
      %v4982 = vadd.f32 %v4561, %v4981
      %v4983 = vpop.f32.mrb[0].mxu0
      %v4984 = vadd.f32 %v4563, %v4983
      %v4985 = vpop.f32.mrb[0].mxu0
      %v4986 = vadd.f32 %v4565, %v4985
      %v4987 = vpop.f32.mrb[0].mxu0
      %v4988 = vadd.f32 %v4567, %v4987
      %4989 = vmatprep.mubr.bf16.mxu0 %v3261
      %4990 = vmatmul.mubr.bf16.gmra.mrb[0].mxu0 %v3260
      %v4991 = vpop.f32.mrb[0].mxu0
      %v4992 = vadd.f32 %v4571, %v4991
      %v4993 = vpop.f32.mrb[0].mxu0
      %v4994 = vadd.f32 %v4573, %v4993
      %v4995 = vpop.f32.mrb[0].mxu0
      %v4996 = vadd.f32 %v4575, %v4995
      %v4997 = vpop.f32.mrb[0].mxu0
      %v4998 = vadd.f32 %v4577, %v4997
      %4999 = vmatprep.mubr.bf16.mxu0 %v3271
      %5000 = vmatmul.mubr.bf16.gmra.mrb[0].mxu0 %v3270
      %v5001 = vpop.f32.mrb[0].mxu0
      %v5002 = vadd.f32 %v4581, %v5001
      %v5003 = vpop.f32.mrb[0].mxu0
      %v5004 = vadd.f32 %v4583, %v5003
      %v5005 = vpop.f32.mrb[0].mxu0
      %v5006 = vadd.f32 %v4585, %v5005
      %v5007 = vpop.f32.mrb[0].mxu0
      %v5008 = vadd.f32 %v4587, %v5007
      %5009 = vmatprep.mubr.bf16.mxu0 %v3281
      %5010 = vmatmul.mubr.bf16.gmra.mrb[0].mxu0 %v3280
      %v5011 = vpop.f32.mrb[0].mxu0
      %v5012 = vadd.f32 %v4591, %v5011
      %v5013 = vpop.f32.mrb[0].mxu0
      %v5014 = vadd.f32 %v4593, %v5013
      %v5015 = vpop.f32.mrb[0].mxu0
      %v5016 = vadd.f32 %v4595, %v5015
      %v5017 = vpop.f32.mrb[0].mxu0
      %v5018 = vadd.f32 %v4597, %v5017
      %5019 = vmatprep.mubr.bf16.mxu0 %v3291
      %5020 = vmatmul.mubr.bf16.gmra.mrb[0].mxu0 %v3290
      %v5021 = vpop.f32.mrb[0].mxu0
      %v5022 = vadd.f32 %v4601, %v5021
      %v5023 = vpop.f32.mrb[0].mxu0
      %v5024 = vadd.f32 %v4603, %v5023
      %v5025 = vpop.f32.mrb[0].mxu0
      %v5026 = vadd.f32 %v4605, %v5025
      %v5027 = vpop.f32.mrb[0].mxu0
      %v5028 = vadd.f32 %v4607, %v5027
      %5029 = vmatprep.mubr.bf16.mxu0 %v3301
      %5030 = vmatmul.mubr.bf16.gmra.mrb[0].mxu0 %v3300
      %v5031 = vpop.f32.mrb[0].mxu0
      %v5032 = vadd.f32 %v4611, %v5031
      %v5033 = vpop.f32.mrb[0].mxu0
      %v5034 = vadd.f32 %v4613, %v5033
      %v5035 = vpop.f32.mrb[0].mxu0
      %v5036 = vadd.f32 %v4615, %v5035
      %v5037 = vpop.f32.mrb[0].mxu0
      %v5038 = vadd.f32 %v4617, %v5037
      %5039 = vmatprep.mubr.bf16.mxu0 %v3311
      %5040 = vmatmul.mubr.bf16.gmra.mrb[0].mxu0 %v3310
      %v5041 = vpop.f32.mrb[0].mxu0
      %v5042 = vadd.f32 %v4621, %v5041
      %v5043 = vpop.f32.mrb[0].mxu0
      %v5044 = vadd.f32 %v4623, %v5043
      %v5045 = vpop.f32.mrb[0].mxu0
      %v5046 = vadd.f32 %v4625, %v5045
      %v5047 = vpop.f32.mrb[0].mxu0
      %v5048 = vadd.f32 %v4627, %v5047
      %5049 = vmatprep.mubr.bf16.mxu0 %v3321
      %5050 = vmatmul.mubr.bf16.gmra.mrb[0].mxu0 %v3320
      %v5051 = vpop.f32.mrb[0].mxu0
      %v5052 = vadd.f32 %v4631, %v5051
      %v5053 = vpop.f32.mrb[0].mxu0
      %v5054 = vadd.f32 %v4633, %v5053
      %v5055 = vpop.f32.mrb[0].mxu0
      %v5056 = vadd.f32 %v4635, %v5055
      %v5057 = vpop.f32.mrb[0].mxu0
      %v5058 = vadd.f32 %v4637, %v5057
      %5059 = vmatprep.mubr.bf16.mxu0 %v3331
      %5060 = vmatmul.mubr.bf16.gmra.mrb[0].mxu0 %v3330
      %v5061 = vpop.f32.mrb[0].mxu0
      %v5062 = vadd.f32 %v4641, %v5061
      %v5063 = vpop.f32.mrb[0].mxu0
      %v5064 = vadd.f32 %v4643, %v5063
      %v5065 = vpop.f32.mrb[0].mxu0
      %v5066 = vadd.f32 %v4645, %v5065
      %v5067 = vpop.f32.mrb[0].mxu0
      %v5068 = vadd.f32 %v4647, %v5067
      %5069 = vmatprep.mubr.bf16.mxu0 %v3341
      %5070 = vmatmul.mubr.bf16.gmra.mrb[0].mxu0 %v3340
      %v5071 = vpop.f32.mrb[0].mxu0
      %v5072 = vadd.f32 %v4651, %v5071
      %v5073 = vpop.f32.mrb[0].mxu0
      %v5074 = vadd.f32 %v4653, %v5073
      %v5075 = vpop.f32.mrb[0].mxu0
      %v5076 = vadd.f32 %v4655, %v5075
      %v5077 = vpop.f32.mrb[0].mxu0
      %v5078 = vadd.f32 %v4657, %v5077
      %5079 = vmatprep.mubr.bf16.mxu0 %v3351
      %5080 = vmatmul.mubr.bf16.gmra.mrb[0].mxu0 %v3350
      %v5081 = vpop.f32.mrb[0].mxu0
      %v5082 = vadd.f32 %v4661, %v5081
      %v5083 = vpop.f32.mrb[0].mxu0
      %v5084 = vadd.f32 %v4663, %v5083
      %v5085 = vpop.f32.mrb[0].mxu0
      %v5086 = vadd.f32 %v4665, %v5085
      %v5087 = vpop.f32.mrb[0].mxu0
      %v5088 = vadd.f32 %v4667, %v5087
      %5089 = vmatprep.mubr.bf16.mxu0 %v3361
      %5090 = vmatmul.mubr.bf16.gmra.mrb[0].mxu0 %v3360
      %v5091 = vpop.f32.mrb[0].mxu0
      %v5092 = vadd.f32 %v4671, %v5091
      %v5093 = vpop.f32.mrb[0].mxu0
      %v5094 = vadd.f32 %v4673, %v5093
      %v5095 = vpop.f32.mrb[0].mxu0
      %v5096 = vadd.f32 %v4675, %v5095
      %v5097 = vpop.f32.mrb[0].mxu0
      %v5098 = vadd.f32 %v4677, %v5097
      %5099 = vmatprep.mubr.bf16.mxu0 %v3371
      %5100 = vmatmul.mubr.bf16.gmra.mrb[0].mxu0 %v3370
      %v5101 = vpop.f32.mrb[0].mxu0
      %v5102 = vadd.f32 %v4681, %v5101
      %v5103 = vpop.f32.mrb[0].mxu0
      %v5104 = vadd.f32 %v4683, %v5103
      %v5105 = vpop.f32.mrb[0].mxu0
      %v5106 = vadd.f32 %v4685, %v5105
      %v5107 = vpop.f32.mrb[0].mxu0
      %v5108 = vadd.f32 %v4687, %v5107
      %5109 = vmatprep.mubr.bf16.mxu0 %v3381
      %5110 = vmatmul.mubr.bf16.gmra.mrb[0].mxu0 %v3380
      %v5111 = vpop.f32.mrb[0].mxu0
      %v5112 = vadd.f32 %v4691, %v5111
      %v5113 = vpop.f32.mrb[0].mxu0
      %v5114 = vadd.f32 %v4693, %v5113
      %v5115 = vpop.f32.mrb[0].mxu0
      %v5116 = vadd.f32 %v4695, %v5115
      %v5117 = vpop.f32.mrb[0].mxu0
      %v5118 = vadd.f32 %v4697, %v5117
      %5119 = vmatprep.mubr.bf16.mxu0 %v3391
      %5120 = vmatmul.mubr.bf16.gmra.mrb[0].mxu0 %v3390
      %v5121 = vpop.f32.mrb[0].mxu0
      %v5122 = vadd.f32 %v4701, %v5121
      %v5123 = vpop.f32.mrb[0].mxu0
      %v5124 = vadd.f32 %v4703, %v5123
      %v5125 = vpop.f32.mrb[0].mxu0
      %v5126 = vadd.f32 %v4705, %v5125
      %v5127 = vpop.f32.mrb[0].mxu0
      %v5128 = vadd.f32 %v4707, %v5127
      %5129 = vmatprep.mubr.bf16.mxu0 %v3401
      %5130 = vmatmul.mubr.bf16.gmra.mrb[0].mxu0 %v3400
      %v5131 = vpop.f32.mrb[0].mxu0
      %v5132 = vadd.f32 %v4711, %v5131
      %v5133 = vpop.f32.mrb[0].mxu0
      %v5134 = vadd.f32 %v4713, %v5133
      %v5135 = vpop.f32.mrb[0].mxu0
      %v5136 = vadd.f32 %v4715, %v5135
      %v5137 = vpop.f32.mrb[0].mxu0
      %v5138 = vadd.f32 %v4717, %v5137
      %5139 = vmatprep.mubr.bf16.mxu0 %v3411
      %5140 = vmatmul.mubr.bf16.gmra.mrb[0].mxu0 %v3410
      %v5141 = vpop.f32.mrb[0].mxu0
      %v5142 = vadd.f32 %v4721, %v5141
      %v5143 = vpop.f32.mrb[0].mxu0
      %v5144 = vadd.f32 %v4723, %v5143
      %v5145 = vpop.f32.mrb[0].mxu0
      %v5146 = vadd.f32 %v4725, %v5145
      %v5147 = vpop.f32.mrb[0].mxu0
      %v5148 = vadd.f32 %v4727, %v5147
      %5149 = vmatprep.mubr.bf16.mxu0 %v3421
      %5150 = vmatmul.mubr.bf16.gmra.mrb[0].mxu0 %v3420
      %v5151 = vpop.f32.mrb[0].mxu0
      %v5152 = vadd.f32 %v4731, %v5151
      %v5153 = vpop.f32.mrb[0].mxu0
      %v5154 = vadd.f32 %v4733, %v5153
      %v5155 = vpop.f32.mrb[0].mxu0
      %v5156 = vadd.f32 %v4735, %v5155
      %v5157 = vpop.f32.mrb[0].mxu0
      %v5158 = vadd.f32 %v4737, %v5157
      %5159 = vmatprep.mubr.bf16.mxu0 %v3431
      %5160 = vmatmul.mubr.bf16.gmra.mrb[0].mxu0 %v3430
      %v5161 = vpop.f32.mrb[0].mxu0
      %v5162 = vadd.f32 %v4741, %v5161
      %v5163 = vpop.f32.mrb[0].mxu0
      %v5164 = vadd.f32 %v4743, %v5163
      %v5165 = vpop.f32.mrb[0].mxu0
      %v5166 = vadd.f32 %v4745, %v5165
      %v5167 = vpop.f32.mrb[0].mxu0
      %v5168 = vadd.f32 %v4747, %v5167
      %5169 = vmatprep.mubr.bf16.mxu0 %v3441
      %5170 = vmatmul.mubr.bf16.gmra.mrb[0].mxu0 %v3440
      %v5171 = vpop.f32.mrb[0].mxu0
      %v5172 = vadd.f32 %v4751, %v5171
      %v5173 = vpop.f32.mrb[0].mxu0
      %v5174 = vadd.f32 %v4753, %v5173
      %v5175 = vpop.f32.mrb[0].mxu0
      %v5176 = vadd.f32 %v4755, %v5175
      %v5177 = vpop.f32.mrb[0].mxu0
      %v5178 = vadd.f32 %v4757, %v5177
      %5179 = vmatprep.mubr.bf16.mxu0 %v3451
      %5180 = vmatmul.mubr.bf16.gmra.mrb[0].mxu0 %v3450
      %v5181 = vpop.f32.mrb[0].mxu0
      %v5182 = vadd.f32 %v4761, %v5181
      %v5183 = vpop.f32.mrb[0].mxu0
      %v5184 = vadd.f32 %v4763, %v5183
      %v5185 = vpop.f32.mrb[0].mxu0
      %v5186 = vadd.f32 %v4765, %v5185
      %v5187 = vpop.f32.mrb[0].mxu0
      %v5188 = vadd.f32 %v4767, %v5187
      %5189 = vmatprep.mubr.bf16.mxu0 %v3461
      %5190 = vmatmul.mubr.bf16.gmra.mrb[0].mxu0 %v3460
      %v5191 = vpop.f32.mrb[0].mxu0
      %v5192 = vadd.f32 %v4771, %v5191
      %v5193 = vpop.f32.mrb[0].mxu0
      %v5194 = vadd.f32 %v4773, %v5193
      %v5195 = vpop.f32.mrb[0].mxu0
      %v5196 = vadd.f32 %v4775, %v5195
      %v5197 = vpop.f32.mrb[0].mxu0
      %v5198 = vadd.f32 %v4777, %v5197
      %5199 = vmatprep.mubr.bf16.mxu0 %v3471
      %5200 = vmatmul.mubr.bf16.gmra.mrb[0].mxu0 %v3470
      %v5201 = vpop.f32.mrb[0].mxu0
      %v5202 = vadd.f32 %v4781, %v5201
      %v5203 = vpop.f32.mrb[0].mxu0
      %v5204 = vadd.f32 %v4783, %v5203
      %v5205 = vpop.f32.mrb[0].mxu0
      %v5206 = vadd.f32 %v4785, %v5205
      %v5207 = vpop.f32.mrb[0].mxu0
      %v5208 = vadd.f32 %v4787, %v5207
      %5209 = vmatprep.mubr.bf16.mxu0 %v3481
      %5210 = vmatmul.mubr.bf16.gmra.mrb[0].mxu0 %v3480
      %v5211 = vpop.f32.mrb[0].mxu0
      %v5212 = vadd.f32 %v4791, %v5211
      %v5213 = vpop.f32.mrb[0].mxu0
      %v5214 = vadd.f32 %v4793, %v5213
      %v5215 = vpop.f32.mrb[0].mxu0
      %v5216 = vadd.f32 %v4795, %v5215
      %v5217 = vpop.f32.mrb[0].mxu0
      %v5218 = vadd.f32 %v4797, %v5217
      %5219 = vmatprep.mubr.bf16.mxu0 %v3491
      %5220 = vmatmul.mubr.bf16.gmra.mrb[0].mxu0 %v3490
      %v5221 = vpop.f32.mrb[0].mxu0
      %v5222 = vadd.f32 %v4801, %v5221
      %v5223 = vpop.f32.mrb[0].mxu0
      %v5224 = vadd.f32 %v4803, %v5223
      %v5225 = vpop.f32.mrb[0].mxu0
      %v5226 = vpop.f32.mrb[0].mxu0
      %5227 = vdwg.mxu0
      %5228 = vmatprep.subr.bf16.mxu0 %v1509
      %5229 = vmatpush1.bf16.msra.mxu0 %v1508
      %5230 = vmatprep.subr.bf16.mxu0 %v1511
      %5231 = vmatpush1.bf16.msra.mxu0 %v1510
      %5232 = vmatprep.subr.bf16.mxu0 %v1513
      %5233 = vmatpush1.bf16.msra.mxu0 %v1512
      %5234 = vmatprep.subr.bf16.mxu0 %v1515
      %5235 = vmatpush1.bf16.msra.mxu0 %v1514
      %5236 = vmatprep.subr.bf16.mxu0 %v1517
      %5237 = vmatpush1.bf16.msra.mxu0 %v1516
      %5238 = vmatprep.subr.bf16.mxu0 %v1519
      %5239 = vmatpush1.bf16.msra.mxu0 %v1518
      %5240 = vmatprep.subr.bf16.mxu0 %v1521
      %5241 = vmatpush1.bf16.msra.mxu0 %v1520
      %5242 = vmatprep.subr.bf16.mxu0 %v1523
      %5243 = vmatpush1.bf16.msra.mxu0 %v1522
      %5244 = vmatprep.subr.bf16.mxu0 %v1525
      %5245 = vmatpush1.bf16.msra.mxu0 %v1524
      %5246 = vmatprep.subr.bf16.mxu0 %v1527
      %5247 = vmatpush1.bf16.msra.mxu0 %v1526
      %5248 = vmatprep.subr.bf16.mxu0 %v1529
      %5249 = vmatpush1.bf16.msra.mxu0 %v1528
      %5250 = vmatprep.subr.bf16.mxu0 %v1531
      %5251 = vmatpush1.bf16.msra.mxu0 %v1530
      %5252 = vmatprep.subr.bf16.mxu0 %v1533
      %5253 = vmatpush1.bf16.msra.mxu0 %v1532
      %5254 = vmatprep.subr.bf16.mxu0 %v1535
      %5255 = vmatpush1.bf16.msra.mxu0 %v1534
      %5256 = vmatprep.subr.bf16.mxu0 %v1537
      %5257 = vmatpush1.bf16.msra.mxu0 %v1536
      %5258 = vmatprep.subr.bf16.mxu0 %v1539
      %5259 = vmatpush1.bf16.msra.mxu0 %v1538
      %5260 = vmatprep.mubr.bf16.mxu0 %v3113
      %5261 = vmatmul.mubr.bf16.gmra.mrb[0].mxu0 %v3112
      %v5262 = vpop.f32.mrb[0].mxu0
      %v5263 = vadd.f32 %v4842, %v5262
      %v5264 = vpop.f32.mrb[0].mxu0
      %v5265 = vadd.f32 %v4844, %v5264
      %v5266 = vpop.f32.mrb[0].mxu0
      %v5267 = vadd.f32 %v4846, %v5266
      %v5268 = vpop.f32.mrb[0].mxu0
      %v5269 = vadd.f32 %v4848, %v5268
      %5270 = vmatprep.mubr.bf16.mxu0 %v3123
      %5271 = vmatmul.mubr.bf16.gmra.mrb[0].mxu0 %v3122
      %v5272 = vpop.f32.mrb[0].mxu0
      %v5273 = vadd.f32 %v4852, %v5272
      %v5274 = vpop.f32.mrb[0].mxu0
      %v5275 = vadd.f32 %v4854, %v5274
      %v5276 = vpop.f32.mrb[0].mxu0
      %v5277 = vadd.f32 %v4856, %v5276
      %v5278 = vpop.f32.mrb[0].mxu0
      %v5279 = vadd.f32 %v4858, %v5278
      %5280 = vmatprep.mubr.bf16.mxu0 %v3133
      %5281 = vmatmul.mubr.bf16.gmra.mrb[0].mxu0 %v3132
      %v5282 = vpop.f32.mrb[0].mxu0
      %v5283 = vadd.f32 %v4862, %v5282
      %v5284 = vpop.f32.mrb[0].mxu0
      %v5285 = vadd.f32 %v4864, %v5284
      %v5286 = vpop.f32.mrb[0].mxu0
      %v5287 = vadd.f32 %v4866, %v5286
      %v5288 = vpop.f32.mrb[0].mxu0
      %v5289 = vadd.f32 %v4868, %v5288
      %5290 = vmatprep.mubr.bf16.mxu0 %v3143
      %5291 = vmatmul.mubr.bf16.gmra.mrb[0].mxu0 %v3142
      %v5292 = vpop.f32.mrb[0].mxu0
      %v5293 = vadd.f32 %v4872, %v5292
      %v5294 = vpop.f32.mrb[0].mxu0
      %v5295 = vadd.f32 %v4874, %v5294
      %v5296 = vpop.f32.mrb[0].mxu0
      %v5297 = vadd.f32 %v4876, %v5296
      %v5298 = vpop.f32.mrb[0].mxu0
      %v5299 = vadd.f32 %v4878, %v5298
      %5300 = vmatprep.mubr.bf16.mxu0 %v3153
      %5301 = vmatmul.mubr.bf16.gmra.mrb[0].mxu0 %v3152
      %v5302 = vpop.f32.mrb[0].mxu0
      %v5303 = vadd.f32 %v4882, %v5302
      %v5304 = vpop.f32.mrb[0].mxu0
      %v5305 = vadd.f32 %v4884, %v5304
      %v5306 = vpop.f32.mrb[0].mxu0
      %v5307 = vadd.f32 %v4886, %v5306
      %v5308 = vpop.f32.mrb[0].mxu0
      %v5309 = vadd.f32 %v4888, %v5308
      %5310 = vmatprep.mubr.bf16.mxu0 %v3163
      %5311 = vmatmul.mubr.bf16.gmra.mrb[0].mxu0 %v3162
      %v5312 = vpop.f32.mrb[0].mxu0
      %v5313 = vadd.f32 %v4892, %v5312
      %v5314 = vpop.f32.mrb[0].mxu0
      %v5315 = vadd.f32 %v4894, %v5314
      %v5316 = vpop.f32.mrb[0].mxu0
      %v5317 = vadd.f32 %v4896, %v5316
      %v5318 = vpop.f32.mrb[0].mxu0
      %v5319 = vadd.f32 %v4898, %v5318
      %5320 = vmatprep.mubr.bf16.mxu0 %v3173
      %5321 = vmatmul.mubr.bf16.gmra.mrb[0].mxu0 %v3172
      %v5322 = vpop.f32.mrb[0].mxu0
      %v5323 = vadd.f32 %v4902, %v5322
      %v5324 = vpop.f32.mrb[0].mxu0
      %v5325 = vadd.f32 %v4904, %v5324
      %v5326 = vpop.f32.mrb[0].mxu0
      %v5327 = vadd.f32 %v4906, %v5326
      %v5328 = vpop.f32.mrb[0].mxu0
      %v5329 = vadd.f32 %v4908, %v5328
      %5330 = vmatprep.mubr.bf16.mxu0 %v3183
      %5331 = vmatmul.mubr.bf16.gmra.mrb[0].mxu0 %v3182
      %v5332 = vpop.f32.mrb[0].mxu0
      %v5333 = vadd.f32 %v4912, %v5332
      %v5334 = vpop.f32.mrb[0].mxu0
      %v5335 = vadd.f32 %v4914, %v5334
      %v5336 = vpop.f32.mrb[0].mxu0
      %v5337 = vadd.f32 %v4916, %v5336
      %v5338 = vpop.f32.mrb[0].mxu0
      %v5339 = vadd.f32 %v4918, %v5338
      %5340 = vmatprep.mubr.bf16.mxu0 %v3193
      %5341 = vmatmul.mubr.bf16.gmra.mrb[0].mxu0 %v3192
      %v5342 = vpop.f32.mrb[0].mxu0
      %v5343 = vadd.f32 %v4922, %v5342
      %v5344 = vpop.f32.mrb[0].mxu0
      %v5345 = vadd.f32 %v4924, %v5344
      %v5346 = vpop.f32.mrb[0].mxu0
      %v5347 = vadd.f32 %v4926, %v5346
      %v5348 = vpop.f32.mrb[0].mxu0
      %v5349 = vadd.f32 %v4928, %v5348
      %5350 = vmatprep.mubr.bf16.mxu0 %v3203
      %5351 = vmatmul.mubr.bf16.gmra.mrb[0].mxu0 %v3202
      %v5352 = vpop.f32.mrb[0].mxu0
      %v5353 = vadd.f32 %v4932, %v5352
      %v5354 = vpop.f32.mrb[0].mxu0
      %v5355 = vadd.f32 %v4934, %v5354
      %v5356 = vpop.f32.mrb[0].mxu0
      %v5357 = vadd.f32 %v4936, %v5356
      %v5358 = vpop.f32.mrb[0].mxu0
      %v5359 = vadd.f32 %v4938, %v5358
      %5360 = vmatprep.mubr.bf16.mxu0 %v3213
      %5361 = vmatmul.mubr.bf16.gmra.mrb[0].mxu0 %v3212
      %v5362 = vpop.f32.mrb[0].mxu0
      %v5363 = vadd.f32 %v4942, %v5362
      %v5364 = vpop.f32.mrb[0].mxu0
      %v5365 = vadd.f32 %v4944, %v5364
      %v5366 = vpop.f32.mrb[0].mxu0
      %v5367 = vadd.f32 %v4946, %v5366
      %v5368 = vpop.f32.mrb[0].mxu0
      %v5369 = vadd.f32 %v4948, %v5368
      %5370 = vmatprep.mubr.bf16.mxu0 %v3223
      %5371 = vmatmul.mubr.bf16.gmra.mrb[0].mxu0 %v3222
      %v5372 = vpop.f32.mrb[0].mxu0
      %v5373 = vadd.f32 %v4952, %v5372
      %v5374 = vpop.f32.mrb[0].mxu0
      %v5375 = vadd.f32 %v4954, %v5374
      %v5376 = vpop.f32.mrb[0].mxu0
      %v5377 = vadd.f32 %v4956, %v5376
      %v5378 = vpop.f32.mrb[0].mxu0
      %v5379 = vadd.f32 %v4958, %v5378
      %5380 = vmatprep.mubr.bf16.mxu0 %v3233
      %5381 = vmatmul.mubr.bf16.gmra.mrb[0].mxu0 %v3232
      %v5382 = vpop.f32.mrb[0].mxu0
      %v5383 = vadd.f32 %v4962, %v5382
      %v5384 = vpop.f32.mrb[0].mxu0
      %v5385 = vadd.f32 %v4964, %v5384
      %v5386 = vpop.f32.mrb[0].mxu0
      %v5387 = vadd.f32 %v4966, %v5386
      %v5388 = vpop.f32.mrb[0].mxu0
      %v5389 = vadd.f32 %v4968, %v5388
      %5390 = vmatprep.mubr.bf16.mxu0 %v3243
      %5391 = vmatmul.mubr.bf16.gmra.mrb[0].mxu0 %v3242
      %v5392 = vpop.f32.mrb[0].mxu0
      %v5393 = vadd.f32 %v4972, %v5392
      %v5394 = vpop.f32.mrb[0].mxu0
      %v5395 = vadd.f32 %v4974, %v5394
      %v5396 = vpop.f32.mrb[0].mxu0
      %v5397 = vadd.f32 %v4976, %v5396
      %v5398 = vpop.f32.mrb[0].mxu0
      %v5399 = vadd.f32 %v4978, %v5398
      %5400 = vmatprep.mubr.bf16.mxu0 %v3253
      %5401 = vmatmul.mubr.bf16.gmra.mrb[0].mxu0 %v3252
      %v5402 = vpop.f32.mrb[0].mxu0
      %v5403 = vadd.f32 %v4982, %v5402
      %v5404 = vpop.f32.mrb[0].mxu0
      %v5405 = vadd.f32 %v4984, %v5404
      %v5406 = vpop.f32.mrb[0].mxu0
      %v5407 = vadd.f32 %v4986, %v5406
      %v5408 = vpop.f32.mrb[0].mxu0
      %v5409 = vadd.f32 %v4988, %v5408
      %5410 = vmatprep.mubr.bf16.mxu0 %v3263
      %5411 = vmatmul.mubr.bf16.gmra.mrb[0].mxu0 %v3262
      %v5412 = vpop.f32.mrb[0].mxu0
      %v5413 = vadd.f32 %v4992, %v5412
      %v5414 = vpop.f32.mrb[0].mxu0
      %v5415 = vadd.f32 %v4994, %v5414
      %v5416 = vpop.f32.mrb[0].mxu0
      %v5417 = vadd.f32 %v4996, %v5416
      %v5418 = vpop.f32.mrb[0].mxu0
      %v5419 = vadd.f32 %v4998, %v5418
      %5420 = vmatprep.mubr.bf16.mxu0 %v3273
      %5421 = vmatmul.mubr.bf16.gmra.mrb[0].mxu0 %v3272
      %v5422 = vpop.f32.mrb[0].mxu0
      %v5423 = vadd.f32 %v5002, %v5422
      %v5424 = vpop.f32.mrb[0].mxu0
      %v5425 = vadd.f32 %v5004, %v5424
      %v5426 = vpop.f32.mrb[0].mxu0
      %v5427 = vadd.f32 %v5006, %v5426
      %v5428 = vpop.f32.mrb[0].mxu0
      %v5429 = vadd.f32 %v5008, %v5428
      %5430 = vmatprep.mubr.bf16.mxu0 %v3283
      %5431 = vmatmul.mubr.bf16.gmra.mrb[0].mxu0 %v3282
      %v5432 = vpop.f32.mrb[0].mxu0
      %v5433 = vadd.f32 %v5012, %v5432
      %v5434 = vpop.f32.mrb[0].mxu0
      %v5435 = vadd.f32 %v5014, %v5434
      %v5436 = vpop.f32.mrb[0].mxu0
      %v5437 = vadd.f32 %v5016, %v5436
      %v5438 = vpop.f32.mrb[0].mxu0
      %v5439 = vadd.f32 %v5018, %v5438
      %5440 = vmatprep.mubr.bf16.mxu0 %v3293
      %5441 = vmatmul.mubr.bf16.gmra.mrb[0].mxu0 %v3292
      %v5442 = vpop.f32.mrb[0].mxu0
      %v5443 = vadd.f32 %v5022, %v5442
      %v5444 = vpop.f32.mrb[0].mxu0
      %v5445 = vadd.f32 %v5024, %v5444
      %v5446 = vpop.f32.mrb[0].mxu0
      %v5447 = vadd.f32 %v5026, %v5446
      %v5448 = vpop.f32.mrb[0].mxu0
      %v5449 = vadd.f32 %v5028, %v5448
      %5450 = vmatprep.mubr.bf16.mxu0 %v3303
      %5451 = vmatmul.mubr.bf16.gmra.mrb[0].mxu0 %v3302
      %v5452 = vpop.f32.mrb[0].mxu0
      %v5453 = vadd.f32 %v5032, %v5452
      %v5454 = vpop.f32.mrb[0].mxu0
      %v5455 = vadd.f32 %v5034, %v5454
      %v5456 = vpop.f32.mrb[0].mxu0
      %v5457 = vadd.f32 %v5036, %v5456
      %v5458 = vpop.f32.mrb[0].mxu0
      %v5459 = vadd.f32 %v5038, %v5458
      %5460 = vmatprep.mubr.bf16.mxu0 %v3313
      %5461 = vmatmul.mubr.bf16.gmra.mrb[0].mxu0 %v3312
      %v5462 = vpop.f32.mrb[0].mxu0
      %v5463 = vadd.f32 %v5042, %v5462
      %v5464 = vpop.f32.mrb[0].mxu0
      %v5465 = vadd.f32 %v5044, %v5464
      %v5466 = vpop.f32.mrb[0].mxu0
      %v5467 = vadd.f32 %v5046, %v5466
      %v5468 = vpop.f32.mrb[0].mxu0
      %v5469 = vadd.f32 %v5048, %v5468
      %5470 = vmatprep.mubr.bf16.mxu0 %v3323
      %5471 = vmatmul.mubr.bf16.gmra.mrb[0].mxu0 %v3322
      %v5472 = vpop.f32.mrb[0].mxu0
      %v5473 = vadd.f32 %v5052, %v5472
      %v5474 = vpop.f32.mrb[0].mxu0
      %v5475 = vadd.f32 %v5054, %v5474
      %v5476 = vpop.f32.mrb[0].mxu0
      %v5477 = vadd.f32 %v5056, %v5476
      %v5478 = vpop.f32.mrb[0].mxu0
      %v5479 = vadd.f32 %v5058, %v5478
      %5480 = vmatprep.mubr.bf16.mxu0 %v3333
      %5481 = vmatmul.mubr.bf16.gmra.mrb[0].mxu0 %v3332
      %v5482 = vpop.f32.mrb[0].mxu0
      %v5483 = vadd.f32 %v5062, %v5482
      %v5484 = vpop.f32.mrb[0].mxu0
      %v5485 = vadd.f32 %v5064, %v5484
      %v5486 = vpop.f32.mrb[0].mxu0
      %v5487 = vadd.f32 %v5066, %v5486
      %v5488 = vpop.f32.mrb[0].mxu0
      %v5489 = vadd.f32 %v5068, %v5488
      %5490 = vmatprep.mubr.bf16.mxu0 %v3343
      %5491 = vmatmul.mubr.bf16.gmra.mrb[0].mxu0 %v3342
      %v5492 = vpop.f32.mrb[0].mxu0
      %v5493 = vadd.f32 %v5072, %v5492
      %v5494 = vpop.f32.mrb[0].mxu0
      %v5495 = vadd.f32 %v5074, %v5494
      %v5496 = vpop.f32.mrb[0].mxu0
      %v5497 = vadd.f32 %v5076, %v5496
      %v5498 = vpop.f32.mrb[0].mxu0
      %v5499 = vadd.f32 %v5078, %v5498
      %5500 = vmatprep.mubr.bf16.mxu0 %v3353
      %5501 = vmatmul.mubr.bf16.gmra.mrb[0].mxu0 %v3352
      %v5502 = vpop.f32.mrb[0].mxu0
      %v5503 = vadd.f32 %v5082, %v5502
      %v5504 = vpop.f32.mrb[0].mxu0
      %v5505 = vadd.f32 %v5084, %v5504
      %v5506 = vpop.f32.mrb[0].mxu0
      %v5507 = vadd.f32 %v5086, %v5506
      %v5508 = vpop.f32.mrb[0].mxu0
      %v5509 = vadd.f32 %v5088, %v5508
      %5510 = vmatprep.mubr.bf16.mxu0 %v3363
      %5511 = vmatmul.mubr.bf16.gmra.mrb[0].mxu0 %v3362
      %v5512 = vpop.f32.mrb[0].mxu0
      %v5513 = vadd.f32 %v5092, %v5512
      %v5514 = vpop.f32.mrb[0].mxu0
      %v5515 = vadd.f32 %v5094, %v5514
      %v5516 = vpop.f32.mrb[0].mxu0
      %v5517 = vadd.f32 %v5096, %v5516
      %v5518 = vpop.f32.mrb[0].mxu0
      %v5519 = vadd.f32 %v5098, %v5518
      %5520 = vmatprep.mubr.bf16.mxu0 %v3373
      %5521 = vmatmul.mubr.bf16.gmra.mrb[0].mxu0 %v3372
      %v5522 = vpop.f32.mrb[0].mxu0
      %v5523 = vadd.f32 %v5102, %v5522
      %v5524 = vpop.f32.mrb[0].mxu0
      %v5525 = vadd.f32 %v5104, %v5524
      %v5526 = vpop.f32.mrb[0].mxu0
      %v5527 = vadd.f32 %v5106, %v5526
      %v5528 = vpop.f32.mrb[0].mxu0
      %v5529 = vadd.f32 %v5108, %v5528
      %5530 = vmatprep.mubr.bf16.mxu0 %v3383
      %5531 = vmatmul.mubr.bf16.gmra.mrb[0].mxu0 %v3382
      %v5532 = vpop.f32.mrb[0].mxu0
      %v5533 = vadd.f32 %v5112, %v5532
      %v5534 = vpop.f32.mrb[0].mxu0
      %v5535 = vadd.f32 %v5114, %v5534
      %v5536 = vpop.f32.mrb[0].mxu0
      %v5537 = vadd.f32 %v5116, %v5536
      %v5538 = vpop.f32.mrb[0].mxu0
      %v5539 = vadd.f32 %v5118, %v5538
      %5540 = vmatprep.mubr.bf16.mxu0 %v3393
      %5541 = vmatmul.mubr.bf16.gmra.mrb[0].mxu0 %v3392
      %v5542 = vpop.f32.mrb[0].mxu0
      %v5543 = vadd.f32 %v5122, %v5542
      %v5544 = vpop.f32.mrb[0].mxu0
      %v5545 = vadd.f32 %v5124, %v5544
      %v5546 = vpop.f32.mrb[0].mxu0
      %v5547 = vadd.f32 %v5126, %v5546
      %v5548 = vpop.f32.mrb[0].mxu0
      %v5549 = vadd.f32 %v5128, %v5548
      %5550 = vmatprep.mubr.bf16.mxu0 %v3403
      %5551 = vmatmul.mubr.bf16.gmra.mrb[0].mxu0 %v3402
      %v5552 = vpop.f32.mrb[0].mxu0
      %v5553 = vadd.f32 %v5132, %v5552
      %v5554 = vpop.f32.mrb[0].mxu0
      %v5555 = vadd.f32 %v5134, %v5554
      %v5556 = vpop.f32.mrb[0].mxu0
      %v5557 = vadd.f32 %v5136, %v5556
      %v5558 = vpop.f32.mrb[0].mxu0
      %v5559 = vadd.f32 %v5138, %v5558
      %5560 = vmatprep.mubr.bf16.mxu0 %v3413
      %5561 = vmatmul.mubr.bf16.gmra.mrb[0].mxu0 %v3412
      %v5562 = vpop.f32.mrb[0].mxu0
      %v5563 = vadd.f32 %v5142, %v5562
      %v5564 = vpop.f32.mrb[0].mxu0
      %v5565 = vadd.f32 %v5144, %v5564
      %v5566 = vpop.f32.mrb[0].mxu0
      %v5567 = vadd.f32 %v5146, %v5566
      %v5568 = vpop.f32.mrb[0].mxu0
      %v5569 = vadd.f32 %v5148, %v5568
      %5570 = vmatprep.mubr.bf16.mxu0 %v3423
      %5571 = vmatmul.mubr.bf16.gmra.mrb[0].mxu0 %v3422
      %v5572 = vpop.f32.mrb[0].mxu0
      %v5573 = vadd.f32 %v5152, %v5572
      %v5574 = vpop.f32.mrb[0].mxu0
      %v5575 = vadd.f32 %v5154, %v5574
      %v5576 = vpop.f32.mrb[0].mxu0
      %v5577 = vadd.f32 %v5156, %v5576
      %v5578 = vpop.f32.mrb[0].mxu0
      %v5579 = vadd.f32 %v5158, %v5578
      %5580 = vmatprep.mubr.bf16.mxu0 %v3433
      %5581 = vmatmul.mubr.bf16.gmra.mrb[0].mxu0 %v3432
      %v5582 = vpop.f32.mrb[0].mxu0
      %v5583 = vadd.f32 %v5162, %v5582
      %v5584 = vpop.f32.mrb[0].mxu0
      %v5585 = vadd.f32 %v5164, %v5584
      %v5586 = vpop.f32.mrb[0].mxu0
      %v5587 = vadd.f32 %v5166, %v5586
      %v5588 = vpop.f32.mrb[0].mxu0
      %v5589 = vadd.f32 %v5168, %v5588
      %5590 = vmatprep.mubr.bf16.mxu0 %v3443
      %5591 = vmatmul.mubr.bf16.gmra.mrb[0].mxu0 %v3442
      %v5592 = vpop.f32.mrb[0].mxu0
      %v5593 = vadd.f32 %v5172, %v5592
      %v5594 = vpop.f32.mrb[0].mxu0
      %v5595 = vadd.f32 %v5174, %v5594
      %v5596 = vpop.f32.mrb[0].mxu0
      %v5597 = vadd.f32 %v5176, %v5596
      %v5598 = vpop.f32.mrb[0].mxu0
      %v5599 = vadd.f32 %v5178, %v5598
      %5600 = vmatprep.mubr.bf16.mxu0 %v3453
      %5601 = vmatmul.mubr.bf16.gmra.mrb[0].mxu0 %v3452
      %v5602 = vpop.f32.mrb[0].mxu0
      %v5603 = vadd.f32 %v5182, %v5602
      %v5604 = vpop.f32.mrb[0].mxu0
      %v5605 = vadd.f32 %v5184, %v5604
      %v5606 = vpop.f32.mrb[0].mxu0
      %v5607 = vadd.f32 %v5186, %v5606
      %v5608 = vpop.f32.mrb[0].mxu0
      %v5609 = vadd.f32 %v5188, %v5608
      %5610 = vmatprep.mubr.bf16.mxu0 %v3463
      %5611 = vmatmul.mubr.bf16.gmra.mrb[0].mxu0 %v3462
      %v5612 = vpop.f32.mrb[0].mxu0
      %v5613 = vadd.f32 %v5192, %v5612
      %v5614 = vpop.f32.mrb[0].mxu0
      %v5615 = vadd.f32 %v5194, %v5614
      %v5616 = vpop.f32.mrb[0].mxu0
      %v5617 = vadd.f32 %v5196, %v5616
      %v5618 = vpop.f32.mrb[0].mxu0
      %v5619 = vadd.f32 %v5198, %v5618
      %5620 = vmatprep.mubr.bf16.mxu0 %v3473
      %5621 = vmatmul.mubr.bf16.gmra.mrb[0].mxu0 %v3472
      %v5622 = vpop.f32.mrb[0].mxu0
      %v5623 = vadd.f32 %v5202, %v5622
      %v5624 = vpop.f32.mrb[0].mxu0
      %v5625 = vadd.f32 %v5204, %v5624
      %v5626 = vpop.f32.mrb[0].mxu0
      %v5627 = vadd.f32 %v5206, %v5626
      %v5628 = vpop.f32.mrb[0].mxu0
      %v5629 = vadd.f32 %v5208, %v5628
      %5630 = vmatprep.mubr.bf16.mxu0 %v3483
      %5631 = vmatmul.mubr.bf16.gmra.mrb[0].mxu0 %v3482
      %v5632 = vpop.f32.mrb[0].mxu0
      %v5633 = vadd.f32 %v5212, %v5632
      %v5634 = vpop.f32.mrb[0].mxu0
      %v5635 = vadd.f32 %v5214, %v5634
      %v5636 = vpop.f32.mrb[0].mxu0
      %v5637 = vadd.f32 %v5216, %v5636
      %v5638 = vpop.f32.mrb[0].mxu0
      %v5639 = vadd.f32 %v5218, %v5638
      %5640 = vmatprep.mubr.bf16.mxu0 %v3493
      %5641 = vmatmul.mubr.bf16.gmra.mrb[0].mxu0 %v3492
      %v5642 = vpop.f32.mrb[0].mxu0
      %v5643 = vadd.f32 %v5222, %v5642
      %v5644 = vpop.f32.mrb[0].mxu0
      %v5645 = vadd.f32 %v5224, %v5644
      %v5646 = vpop.f32.mrb[0].mxu0
      %v5647 = vpop.f32.mrb[0].mxu0
      %5648 = vdwg.mxu0
      %5649 = vmatprep.subr.bf16.mxu0 %v1541
      %5650 = vmatpush1.bf16.msra.mxu0 %v1540
      %5651 = vmatprep.subr.bf16.mxu0 %v1543
      %5652 = vmatpush1.bf16.msra.mxu0 %v1542
      %5653 = vmatprep.subr.bf16.mxu0 %v1545
      %5654 = vmatpush1.bf16.msra.mxu0 %v1544
      %5655 = vmatprep.subr.bf16.mxu0 %v1547
      %5656 = vmatpush1.bf16.msra.mxu0 %v1546
      %5657 = vmatprep.subr.bf16.mxu0 %v1549
      %5658 = vmatpush1.bf16.msra.mxu0 %v1548
      %5659 = vmatprep.subr.bf16.mxu0 %v1551
      %5660 = vmatpush1.bf16.msra.mxu0 %v1550
      %5661 = vmatprep.subr.bf16.mxu0 %v1553
      %5662 = vmatpush1.bf16.msra.mxu0 %v1552
      %5663 = vmatprep.subr.bf16.mxu0 %v1555
      %5664 = vmatpush1.bf16.msra.mxu0 %v1554
      %5665 = vmatprep.subr.bf16.mxu0 %v1557
      %5666 = vmatpush1.bf16.msra.mxu0 %v1556
      %5667 = vmatprep.subr.bf16.mxu0 %v1559
      %5668 = vmatpush1.bf16.msra.mxu0 %v1558
      %5669 = vmatprep.subr.bf16.mxu0 %v1561
      %5670 = vmatpush1.bf16.msra.mxu0 %v1560
      %5671 = vmatprep.subr.bf16.mxu0 %v1563
      %5672 = vmatpush1.bf16.msra.mxu0 %v1562
      %5673 = vmatprep.subr.bf16.mxu0 %v1565
      %5674 = vmatpush1.bf16.msra.mxu0 %v1564
      %5675 = vmatprep.subr.bf16.mxu0 0
      %5676 = vmatpush1.bf16.msra.mxu0 0
      %5677 = vmatprep.subr.bf16.mxu0 0
      %5678 = vmatpush1.bf16.msra.mxu0 0
      %5679 = vmatprep.subr.bf16.mxu0 0
      %5680 = vmatpush1.bf16.msra.mxu0 0
      %5681 = vmatprep.mubr.bf16.mxu0 %v3849
      %5682 = vmatmul.mubr.bf16.gmra.mrb[0].mxu0 %v3114
      %v5683 = vpop.f32.mrb[0].mxu0
      %v5684 = vadd.f32 %v5263, %v5683
      %v5685 = vpop.f32.mrb[0].mxu0
      %v5686 = vadd.f32 %v5265, %v5685
      %v5687 = vpop.f32.mrb[0].mxu0
      %v5688 = vadd.f32 %v5267, %v5687
      %v5689 = vpop.f32.mrb[0].mxu0
      %v5690 = vadd.f32 %v5269, %v5689
      %5691 = vmatprep.mubr.bf16.mxu0 %v3852
      %5692 = vmatmul.mubr.bf16.gmra.mrb[0].mxu0 %v3124
      %v5693 = vpop.f32.mrb[0].mxu0
      %v5694 = vadd.f32 %v5273, %v5693
      %v5695 = vpop.f32.mrb[0].mxu0
      %v5696 = vadd.f32 %v5275, %v5695
      %v5697 = vpop.f32.mrb[0].mxu0
      %v5698 = vadd.f32 %v5277, %v5697
      %v5699 = vpop.f32.mrb[0].mxu0
      %v5700 = vadd.f32 %v5279, %v5699
      %5701 = vmatprep.mubr.bf16.mxu0 %v3855
      %5702 = vmatmul.mubr.bf16.gmra.mrb[0].mxu0 %v3134
      %v5703 = vpop.f32.mrb[0].mxu0
      %v5704 = vadd.f32 %v5283, %v5703
      %v5705 = vpop.f32.mrb[0].mxu0
      %v5706 = vadd.f32 %v5285, %v5705
      %v5707 = vpop.f32.mrb[0].mxu0
      %v5708 = vadd.f32 %v5287, %v5707
      %v5709 = vpop.f32.mrb[0].mxu0
      %v5710 = vadd.f32 %v5289, %v5709
      %5711 = vmatprep.mubr.bf16.mxu0 %v3858
      %5712 = vmatmul.mubr.bf16.gmra.mrb[0].mxu0 %v3144
      %v5713 = vpop.f32.mrb[0].mxu0
      %v5714 = vadd.f32 %v5293, %v5713
      %v5715 = vpop.f32.mrb[0].mxu0
      %v5716 = vadd.f32 %v5295, %v5715
      %v5717 = vpop.f32.mrb[0].mxu0
      %v5718 = vadd.f32 %v5297, %v5717
      %v5719 = vpop.f32.mrb[0].mxu0
      %v5720 = vadd.f32 %v5299, %v5719
      %5721 = vmatprep.mubr.bf16.mxu0 %v3861
      %5722 = vmatmul.mubr.bf16.gmra.mrb[0].mxu0 %v3154
      %v5723 = vpop.f32.mrb[0].mxu0
      %v5724 = vadd.f32 %v5303, %v5723
      %v5725 = vpop.f32.mrb[0].mxu0
      %v5726 = vadd.f32 %v5305, %v5725
      %v5727 = vpop.f32.mrb[0].mxu0
      %v5728 = vadd.f32 %v5307, %v5727
      %v5729 = vpop.f32.mrb[0].mxu0
      %v5730 = vadd.f32 %v5309, %v5729
      %5731 = vmatprep.mubr.bf16.mxu0 %v3864
      %5732 = vmatmul.mubr.bf16.gmra.mrb[0].mxu0 %v3164
      %v5733 = vpop.f32.mrb[0].mxu0
      %v5734 = vadd.f32 %v5313, %v5733
      %v5735 = vpop.f32.mrb[0].mxu0
      %v5736 = vadd.f32 %v5315, %v5735
      %v5737 = vpop.f32.mrb[0].mxu0
      %v5738 = vadd.f32 %v5317, %v5737
      %v5739 = vpop.f32.mrb[0].mxu0
      %v5740 = vadd.f32 %v5319, %v5739
      %5741 = vmatprep.mubr.bf16.mxu0 %v3867
      %5742 = vmatmul.mubr.bf16.gmra.mrb[0].mxu0 %v3174
      %v5743 = vpop.f32.mrb[0].mxu0
      %v5744 = vadd.f32 %v5323, %v5743
      %v5745 = vpop.f32.mrb[0].mxu0
      %v5746 = vadd.f32 %v5325, %v5745
      %v5747 = vpop.f32.mrb[0].mxu0
      %v5748 = vadd.f32 %v5327, %v5747
      %v5749 = vpop.f32.mrb[0].mxu0
      %v5750 = vadd.f32 %v5329, %v5749
      %5751 = vmatprep.mubr.bf16.mxu0 %v3870
      %5752 = vmatmul.mubr.bf16.gmra.mrb[0].mxu0 %v3184
      %v5753 = vpop.f32.mrb[0].mxu0
      %v5754 = vadd.f32 %v5333, %v5753
      %v5755 = vpop.f32.mrb[0].mxu0
      %v5756 = vadd.f32 %v5335, %v5755
      %v5757 = vpop.f32.mrb[0].mxu0
      %v5758 = vadd.f32 %v5337, %v5757
      %v5759 = vpop.f32.mrb[0].mxu0
      %v5760 = vadd.f32 %v5339, %v5759
      %5761 = vmatprep.mubr.bf16.mxu0 %v3873
      %5762 = vmatmul.mubr.bf16.gmra.mrb[0].mxu0 %v3194
      %v5763 = vpop.f32.mrb[0].mxu0
      %v5764 = vadd.f32 %v5343, %v5763
      %v5765 = vpop.f32.mrb[0].mxu0
      %v5766 = vadd.f32 %v5345, %v5765
      %v5767 = vpop.f32.mrb[0].mxu0
      %v5768 = vadd.f32 %v5347, %v5767
      %v5769 = vpop.f32.mrb[0].mxu0
      %v5770 = vadd.f32 %v5349, %v5769
      %5771 = vmatprep.mubr.bf16.mxu0 %v3876
      %5772 = vmatmul.mubr.bf16.gmra.mrb[0].mxu0 %v3204
      %v5773 = vpop.f32.mrb[0].mxu0
      %v5774 = vadd.f32 %v5353, %v5773
      %v5775 = vpop.f32.mrb[0].mxu0
      %v5776 = vadd.f32 %v5355, %v5775
      %v5777 = vpop.f32.mrb[0].mxu0
      %v5778 = vadd.f32 %v5357, %v5777
      %v5779 = vpop.f32.mrb[0].mxu0
      %v5780 = vadd.f32 %v5359, %v5779
      %5781 = vmatprep.mubr.bf16.mxu0 %v3879
      %5782 = vmatmul.mubr.bf16.gmra.mrb[0].mxu0 %v3214
      %v5783 = vpop.f32.mrb[0].mxu0
      %v5784 = vadd.f32 %v5363, %v5783
      %v5785 = vpop.f32.mrb[0].mxu0
      %v5786 = vadd.f32 %v5365, %v5785
      %v5787 = vpop.f32.mrb[0].mxu0
      %v5788 = vadd.f32 %v5367, %v5787
      %v5789 = vpop.f32.mrb[0].mxu0
      %v5790 = vadd.f32 %v5369, %v5789
      %5791 = vmatprep.mubr.bf16.mxu0 %v3882
      %5792 = vmatmul.mubr.bf16.gmra.mrb[0].mxu0 %v3224
      %v5793 = vpop.f32.mrb[0].mxu0
      %v5794 = vadd.f32 %v5373, %v5793
      %v5795 = vpop.f32.mrb[0].mxu0
      %v5796 = vadd.f32 %v5375, %v5795
      %v5797 = vpop.f32.mrb[0].mxu0
      %v5798 = vadd.f32 %v5377, %v5797
      %v5799 = vpop.f32.mrb[0].mxu0
      %v5800 = vadd.f32 %v5379, %v5799
      %5801 = vmatprep.mubr.bf16.mxu0 %v3885
      %5802 = vmatmul.mubr.bf16.gmra.mrb[0].mxu0 %v3234
      %v5803 = vpop.f32.mrb[0].mxu0
      %v5804 = vadd.f32 %v5383, %v5803
      %v5805 = vpop.f32.mrb[0].mxu0
      %v5806 = vadd.f32 %v5385, %v5805
      %v5807 = vpop.f32.mrb[0].mxu0
      %v5808 = vadd.f32 %v5387, %v5807
      %v5809 = vpop.f32.mrb[0].mxu0
      %v5810 = vadd.f32 %v5389, %v5809
      %5811 = vmatprep.mubr.bf16.mxu0 %v3888
      %5812 = vmatmul.mubr.bf16.gmra.mrb[0].mxu0 %v3244
      %v5813 = vpop.f32.mrb[0].mxu0
      %v5814 = vadd.f32 %v5393, %v5813
      %v5815 = vpop.f32.mrb[0].mxu0
      %v5816 = vadd.f32 %v5395, %v5815
      %v5817 = vpop.f32.mrb[0].mxu0
      %v5818 = vadd.f32 %v5397, %v5817
      %v5819 = vpop.f32.mrb[0].mxu0
      %v5820 = vadd.f32 %v5399, %v5819
      %5821 = vmatprep.mubr.bf16.mxu0 %v3891
      %5822 = vmatmul.mubr.bf16.gmra.mrb[0].mxu0 %v3254
      %v5823 = vpop.f32.mrb[0].mxu0
      %v5824 = vadd.f32 %v5403, %v5823
      %v5825 = vpop.f32.mrb[0].mxu0
      %v5826 = vadd.f32 %v5405, %v5825
      %v5827 = vpop.f32.mrb[0].mxu0
      %v5828 = vadd.f32 %v5407, %v5827
      %v5829 = vpop.f32.mrb[0].mxu0
      %v5830 = vadd.f32 %v5409, %v5829
      %5831 = vmatprep.mubr.bf16.mxu0 %v3894
      %5832 = vmatmul.mubr.bf16.gmra.mrb[0].mxu0 %v3264
      %v5833 = vpop.f32.mrb[0].mxu0
      %v5834 = vadd.f32 %v5413, %v5833
      %v5835 = vpop.f32.mrb[0].mxu0
      %v5836 = vadd.f32 %v5415, %v5835
      %v5837 = vpop.f32.mrb[0].mxu0
      %v5838 = vadd.f32 %v5417, %v5837
      %v5839 = vpop.f32.mrb[0].mxu0
      %v5840 = vadd.f32 %v5419, %v5839
      %5841 = vmatprep.mubr.bf16.mxu0 %v3897
      %5842 = vmatmul.mubr.bf16.gmra.mrb[0].mxu0 %v3274
      %v5843 = vpop.f32.mrb[0].mxu0
      %v5844 = vadd.f32 %v5423, %v5843
      %v5845 = vpop.f32.mrb[0].mxu0
      %v5846 = vadd.f32 %v5425, %v5845
      %v5847 = vpop.f32.mrb[0].mxu0
      %v5848 = vadd.f32 %v5427, %v5847
      %v5849 = vpop.f32.mrb[0].mxu0
      %v5850 = vadd.f32 %v5429, %v5849
      %5851 = vmatprep.mubr.bf16.mxu0 %v3900
      %5852 = vmatmul.mubr.bf16.gmra.mrb[0].mxu0 %v3284
      %v5853 = vpop.f32.mrb[0].mxu0
      %v5854 = vadd.f32 %v5433, %v5853
      %v5855 = vpop.f32.mrb[0].mxu0
      %v5856 = vadd.f32 %v5435, %v5855
      %v5857 = vpop.f32.mrb[0].mxu0
      %v5858 = vadd.f32 %v5437, %v5857
      %v5859 = vpop.f32.mrb[0].mxu0
      %v5860 = vadd.f32 %v5439, %v5859
      %5861 = vmatprep.mubr.bf16.mxu0 %v3903
      %5862 = vmatmul.mubr.bf16.gmra.mrb[0].mxu0 %v3294
      %v5863 = vpop.f32.mrb[0].mxu0
      %v5864 = vadd.f32 %v5443, %v5863
      %v5865 = vpop.f32.mrb[0].mxu0
      %v5866 = vadd.f32 %v5445, %v5865
      %v5867 = vpop.f32.mrb[0].mxu0
      %v5868 = vadd.f32 %v5447, %v5867
      %v5869 = vpop.f32.mrb[0].mxu0
      %v5870 = vadd.f32 %v5449, %v5869
      %5871 = vmatprep.mubr.bf16.mxu0 %v3906
      %5872 = vmatmul.mubr.bf16.gmra.mrb[0].mxu0 %v3304
      %v5873 = vpop.f32.mrb[0].mxu0
      %v5874 = vadd.f32 %v5453, %v5873
      %v5875 = vpop.f32.mrb[0].mxu0
      %v5876 = vadd.f32 %v5455, %v5875
      %v5877 = vpop.f32.mrb[0].mxu0
      %v5878 = vadd.f32 %v5457, %v5877
      %v5879 = vpop.f32.mrb[0].mxu0
      %v5880 = vadd.f32 %v5459, %v5879
      %5881 = vmatprep.mubr.bf16.mxu0 %v3909
      %5882 = vmatmul.mubr.bf16.gmra.mrb[0].mxu0 %v3314
      %v5883 = vpop.f32.mrb[0].mxu0
      %v5884 = vadd.f32 %v5463, %v5883
      %v5885 = vpop.f32.mrb[0].mxu0
      %v5886 = vadd.f32 %v5465, %v5885
      %v5887 = vpop.f32.mrb[0].mxu0
      %v5888 = vadd.f32 %v5467, %v5887
      %v5889 = vpop.f32.mrb[0].mxu0
      %v5890 = vadd.f32 %v5469, %v5889
      %5891 = vmatprep.mubr.bf16.mxu0 %v3912
      %5892 = vmatmul.mubr.bf16.gmra.mrb[0].mxu0 %v3324
      %v5893 = vpop.f32.mrb[0].mxu0
      %v5894 = vadd.f32 %v5473, %v5893
      %v5895 = vpop.f32.mrb[0].mxu0
      %v5896 = vadd.f32 %v5475, %v5895
      %v5897 = vpop.f32.mrb[0].mxu0
      %v5898 = vadd.f32 %v5477, %v5897
      %v5899 = vpop.f32.mrb[0].mxu0
      %v5900 = vadd.f32 %v5479, %v5899
      %5901 = vmatprep.mubr.bf16.mxu0 %v3915
      %5902 = vmatmul.mubr.bf16.gmra.mrb[0].mxu0 %v3334
      %v5903 = vpop.f32.mrb[0].mxu0
      %v5904 = vadd.f32 %v5483, %v5903
      %v5905 = vpop.f32.mrb[0].mxu0
      %v5906 = vadd.f32 %v5485, %v5905
      %v5907 = vpop.f32.mrb[0].mxu0
      %v5908 = vadd.f32 %v5487, %v5907
      %v5909 = vpop.f32.mrb[0].mxu0
      %v5910 = vadd.f32 %v5489, %v5909
      %5911 = vmatprep.mubr.bf16.mxu0 %v3918
      %5912 = vmatmul.mubr.bf16.gmra.mrb[0].mxu0 %v3344
      %v5913 = vpop.f32.mrb[0].mxu0
      %v5914 = vadd.f32 %v5493, %v5913
      %v5915 = vpop.f32.mrb[0].mxu0
      %v5916 = vadd.f32 %v5495, %v5915
      %v5917 = vpop.f32.mrb[0].mxu0
      %v5918 = vadd.f32 %v5497, %v5917
      %v5919 = vpop.f32.mrb[0].mxu0
      %v5920 = vadd.f32 %v5499, %v5919
      %5921 = vmatprep.mubr.bf16.mxu0 %v3921
      %5922 = vmatmul.mubr.bf16.gmra.mrb[0].mxu0 %v3354
      %v5923 = vpop.f32.mrb[0].mxu0
      %v5924 = vadd.f32 %v5503, %v5923
      %v5925 = vpop.f32.mrb[0].mxu0
      %v5926 = vadd.f32 %v5505, %v5925
      %v5927 = vpop.f32.mrb[0].mxu0
      %v5928 = vadd.f32 %v5507, %v5927
      %v5929 = vpop.f32.mrb[0].mxu0
      %v5930 = vadd.f32 %v5509, %v5929
      %5931 = vmatprep.mubr.bf16.mxu0 %v3924
      %5932 = vmatmul.mubr.bf16.gmra.mrb[0].mxu0 %v3364
      %v5933 = vpop.f32.mrb[0].mxu0
      %v5934 = vadd.f32 %v5513, %v5933
      %v5935 = vpop.f32.mrb[0].mxu0
      %v5936 = vadd.f32 %v5515, %v5935
      %v5937 = vpop.f32.mrb[0].mxu0
      %v5938 = vadd.f32 %v5517, %v5937
      %v5939 = vpop.f32.mrb[0].mxu0
      %v5940 = vadd.f32 %v5519, %v5939
      %5941 = vmatprep.mubr.bf16.mxu0 %v3927
      %5942 = vmatmul.mubr.bf16.gmra.mrb[0].mxu0 %v3374
      %v5943 = vpop.f32.mrb[0].mxu0
      %v5944 = vadd.f32 %v5523, %v5943
      %v5945 = vpop.f32.mrb[0].mxu0
      %v5946 = vadd.f32 %v5525, %v5945
      %v5947 = vpop.f32.mrb[0].mxu0
      %v5948 = vadd.f32 %v5527, %v5947
      %v5949 = vpop.f32.mrb[0].mxu0
      %v5950 = vadd.f32 %v5529, %v5949
      %5951 = vmatprep.mubr.bf16.mxu0 %v3930
      %5952 = vmatmul.mubr.bf16.gmra.mrb[0].mxu0 %v3384
      %v5953 = vpop.f32.mrb[0].mxu0
      %v5954 = vadd.f32 %v5533, %v5953
      %v5955 = vpop.f32.mrb[0].mxu0
      %v5956 = vadd.f32 %v5535, %v5955
      %v5957 = vpop.f32.mrb[0].mxu0
      %v5958 = vadd.f32 %v5537, %v5957
      %v5959 = vpop.f32.mrb[0].mxu0
      %v5960 = vadd.f32 %v5539, %v5959
      %5961 = vmatprep.mubr.bf16.mxu0 %v3933
      %5962 = vmatmul.mubr.bf16.gmra.mrb[0].mxu0 %v3394
      %v5963 = vpop.f32.mrb[0].mxu0
      %v5964 = vadd.f32 %v5543, %v5963
      %v5965 = vpop.f32.mrb[0].mxu0
      %v5966 = vadd.f32 %v5545, %v5965
      %v5967 = vpop.f32.mrb[0].mxu0
      %v5968 = vadd.f32 %v5547, %v5967
      %v5969 = vpop.f32.mrb[0].mxu0
      %v5970 = vadd.f32 %v5549, %v5969
      %5971 = vmatprep.mubr.bf16.mxu0 %v3936
      %5972 = vmatmul.mubr.bf16.gmra.mrb[0].mxu0 %v3404
      %v5973 = vpop.f32.mrb[0].mxu0
      %v5974 = vadd.f32 %v5553, %v5973
      %v5975 = vpop.f32.mrb[0].mxu0
      %v5976 = vadd.f32 %v5555, %v5975
      %v5977 = vpop.f32.mrb[0].mxu0
      %v5978 = vadd.f32 %v5557, %v5977
      %v5979 = vpop.f32.mrb[0].mxu0
      %v5980 = vadd.f32 %v5559, %v5979
      %5981 = vmatprep.mubr.bf16.mxu0 %v3939
      %5982 = vmatmul.mubr.bf16.gmra.mrb[0].mxu0 %v3414
      %v5983 = vpop.f32.mrb[0].mxu0
      %v5984 = vadd.f32 %v5563, %v5983
      %v5985 = vpop.f32.mrb[0].mxu0
      %v5986 = vadd.f32 %v5565, %v5985
      %v5987 = vpop.f32.mrb[0].mxu0
      %v5988 = vadd.f32 %v5567, %v5987
      %v5989 = vpop.f32.mrb[0].mxu0
      %v5990 = vadd.f32 %v5569, %v5989
      %5991 = vmatprep.mubr.bf16.mxu0 %v3942
      %5992 = vmatmul.mubr.bf16.gmra.mrb[0].mxu0 %v3424
      %v5993 = vpop.f32.mrb[0].mxu0
      %v5994 = vadd.f32 %v5573, %v5993
      %v5995 = vpop.f32.mrb[0].mxu0
      %v5996 = vadd.f32 %v5575, %v5995
      %v5997 = vpop.f32.mrb[0].mxu0
      %v5998 = vadd.f32 %v5577, %v5997
      %v5999 = vpop.f32.mrb[0].mxu0
      %v6000 = vadd.f32 %v5579, %v5999
      %6001 = vmatprep.mubr.bf16.mxu0 %v3945
      %6002 = vmatmul.mubr.bf16.gmra.mrb[0].mxu0 %v3434
      %v6003 = vpop.f32.mrb[0].mxu0
      %v6004 = vadd.f32 %v5583, %v6003
      %v6005 = vpop.f32.mrb[0].mxu0
      %v6006 = vadd.f32 %v5585, %v6005
      %v6007 = vpop.f32.mrb[0].mxu0
      %v6008 = vadd.f32 %v5587, %v6007
      %v6009 = vpop.f32.mrb[0].mxu0
      %v6010 = vadd.f32 %v5589, %v6009
      %6011 = vmatprep.mubr.bf16.mxu0 %v3948
      %6012 = vmatmul.mubr.bf16.gmra.mrb[0].mxu0 %v3444
      %v6013 = vpop.f32.mrb[0].mxu0
      %v6014 = vadd.f32 %v5593, %v6013
      %v6015 = vpop.f32.mrb[0].mxu0
      %v6016 = vadd.f32 %v5595, %v6015
      %v6017 = vpop.f32.mrb[0].mxu0
      %v6018 = vadd.f32 %v5597, %v6017
      %v6019 = vpop.f32.mrb[0].mxu0
      %v6020 = vadd.f32 %v5599, %v6019
      %6021 = vmatprep.mubr.bf16.mxu0 %v3951
      %6022 = vmatmul.mubr.bf16.gmra.mrb[0].mxu0 %v3454
      %v6023 = vpop.f32.mrb[0].mxu0
      %v6024 = vadd.f32 %v5603, %v6023
      %v6025 = vpop.f32.mrb[0].mxu0
      %v6026 = vadd.f32 %v5605, %v6025
      %v6027 = vpop.f32.mrb[0].mxu0
      %v6028 = vadd.f32 %v5607, %v6027
      %v6029 = vpop.f32.mrb[0].mxu0
      %v6030 = vadd.f32 %v5609, %v6029
      %6031 = vmatprep.mubr.bf16.mxu0 %v3954
      %6032 = vmatmul.mubr.bf16.gmra.mrb[0].mxu0 %v3464
      %v6033 = vpop.f32.mrb[0].mxu0
      %v6034 = vadd.f32 %v5613, %v6033
      %v6035 = vpop.f32.mrb[0].mxu0
      %v6036 = vadd.f32 %v5615, %v6035
      %v6037 = vpop.f32.mrb[0].mxu0
      %v6038 = vadd.f32 %v5617, %v6037
      %v6039 = vpop.f32.mrb[0].mxu0
      %v6040 = vadd.f32 %v5619, %v6039
      %6041 = vmatprep.mubr.bf16.mxu0 %v3957
      %6042 = vmatmul.mubr.bf16.gmra.mrb[0].mxu0 %v3474
      %v6043 = vpop.f32.mrb[0].mxu0
      %v6044 = vadd.f32 %v5623, %v6043
      %v6045 = vpop.f32.mrb[0].mxu0
      %v6046 = vadd.f32 %v5625, %v6045
      %v6047 = vpop.f32.mrb[0].mxu0
      %v6048 = vadd.f32 %v5627, %v6047
      %v6049 = vpop.f32.mrb[0].mxu0
      %v6050 = vadd.f32 %v5629, %v6049
      %6051 = vmatprep.mubr.bf16.mxu0 %v3960
      %6052 = vmatmul.mubr.bf16.gmra.mrb[0].mxu0 %v3484
      %v6053 = vpop.f32.mrb[0].mxu0
      %v6054 = vadd.f32 %v5633, %v6053
      %v6055 = vpop.f32.mrb[0].mxu0
      %v6056 = vadd.f32 %v5635, %v6055
      %v6057 = vpop.f32.mrb[0].mxu0
      %v6058 = vadd.f32 %v5637, %v6057
      %v6059 = vpop.f32.mrb[0].mxu0
      %v6060 = vadd.f32 %v5639, %v6059
      %6061 = vmatprep.mubr.bf16.mxu0 %v3963
      %6062 = vmatmul.mubr.bf16.gmra.mrb[0].mxu0 %v3494
      %v6063 = vpop.f32.mrb[0].mxu0
      %v6064 = vadd.f32 %v5643, %v6063
      %v6065 = vpop.f32.mrb[0].mxu0
      %v6066 = vadd.f32 %v5645, %v6065
      %v6067 = vpop.f32.mrb[0].mxu0
      %v6068 = vpop.f32.mrb[0].mxu0
      %6069 = vdwg.mxu0
      %6070 = vst [vmem:[%s177] sm:$0xff] %v5684
      %vm6071 = vcmask 556032
      %6072 = vst.msk [vmem:[%s177 + $0x8] sm:$0xff] %vm6071, %v5686
      %6073 = vst [vmem:[%s177 + $0x10] sm:$0xff] %v5688
      %6074 = vst.msk [vmem:[%s177 + $0x18] sm:$0xff] %vm6071, %v5690
      %6075 = vst [vmem:[%s177 + $0x20] sm:$0xff] %v5694
      %6076 = vst.msk [vmem:[%s177 + $0x28] sm:$0xff] %vm6071, %v5696
      %6077 = vst [vmem:[%s177 + $0x30] sm:$0xff] %v5698
      %6078 = vst.msk [vmem:[%s177 + $0x38] sm:$0xff] %vm6071, %v5700
      %6079 = vst [vmem:[%s177 + $0x40] sm:$0xff] %v5704
      %6080 = vst.msk [vmem:[%s177 + $0x48] sm:$0xff] %vm6071, %v5706
      %6081 = vst [vmem:[%s177 + $0x50] sm:$0xff] %v5708
      %6082 = vst.msk [vmem:[%s177 + $0x58] sm:$0xff] %vm6071, %v5710
      %6083 = vst [vmem:[%s177 + $0x60] sm:$0xff] %v5714
      %6084 = vst.msk [vmem:[%s177 + $0x68] sm:$0xff] %vm6071, %v5716
      %6085 = vst [vmem:[%s177 + $0x70] sm:$0xff] %v5718
      %6086 = vst.msk [vmem:[%s177 + $0x78] sm:$0xff] %vm6071, %v5720
      %6087 = vst [vmem:[%s177 + $0x80] sm:$0xff] %v5724
      %6088 = vst.msk [vmem:[%s177 + $0x88] sm:$0xff] %vm6071, %v5726
      %6089 = vst [vmem:[%s177 + $0x90] sm:$0xff] %v5728
      %6090 = vst.msk [vmem:[%s177 + $0x98] sm:$0xff] %vm6071, %v5730
      %6091 = vst [vmem:[%s177 + $0xa0] sm:$0xff] %v5734
      %6092 = vst.msk [vmem:[%s177 + $0xa8] sm:$0xff] %vm6071, %v5736
      %6093 = vst [vmem:[%s177 + $0xb0] sm:$0xff] %v5738
      %6094 = vst.msk [vmem:[%s177 + $0xb8] sm:$0xff] %vm6071, %v5740
      %6095 = vst [vmem:[%s177 + $0xc0] sm:$0xff] %v5744
      %6096 = vst.msk [vmem:[%s177 + $0xc8] sm:$0xff] %vm6071, %v5746
      %6097 = vst [vmem:[%s177 + $0xd0] sm:$0xff] %v5748
      %6098 = vst.msk [vmem:[%s177 + $0xd8] sm:$0xff] %vm6071, %v5750
      %6099 = vst [vmem:[%s177 + $0xe0] sm:$0xff] %v5754
      %6100 = vst.msk [vmem:[%s177 + $0xe8] sm:$0xff] %vm6071, %v5756
      %6101 = vst [vmem:[%s177 + $0xf0] sm:$0xff] %v5758
      %6102 = vst.msk [vmem:[%s177 + $0xf8] sm:$0xff] %vm6071, %v5760
      %6103 = vst [vmem:[%s177 + $0x100] sm:$0xff] %v5764
      %6104 = vst.msk [vmem:[%s177 + $0x108] sm:$0xff] %vm6071, %v5766
      %6105 = vst [vmem:[%s177 + $0x110] sm:$0xff] %v5768
      %6106 = vst.msk [vmem:[%s177 + $0x118] sm:$0xff] %vm6071, %v5770
      %6107 = vst [vmem:[%s177 + $0x120] sm:$0xff] %v5774
      %6108 = vst.msk [vmem:[%s177 + $0x128] sm:$0xff] %vm6071, %v5776
      %6109 = vst [vmem:[%s177 + $0x130] sm:$0xff] %v5778
      %6110 = vst.msk [vmem:[%s177 + $0x138] sm:$0xff] %vm6071, %v5780
      %6111 = vst [vmem:[%s177 + $0x140] sm:$0xff] %v5784
      %6112 = vst.msk [vmem:[%s177 + $0x148] sm:$0xff] %vm6071, %v5786
      %6113 = vst [vmem:[%s177 + $0x150] sm:$0xff] %v5788
      %6114 = vst.msk [vmem:[%s177 + $0x158] sm:$0xff] %vm6071, %v5790
      %6115 = vst [vmem:[%s177 + $0x160] sm:$0xff] %v5794
      %6116 = vst.msk [vmem:[%s177 + $0x168] sm:$0xff] %vm6071, %v5796
      %6117 = vst [vmem:[%s177 + $0x170] sm:$0xff] %v5798
      %6118 = vst.msk [vmem:[%s177 + $0x178] sm:$0xff] %vm6071, %v5800
      %6119 = vst [vmem:[%s177 + $0x180] sm:$0xff] %v5804
      %6120 = vst.msk [vmem:[%s177 + $0x188] sm:$0xff] %vm6071, %v5806
      %6121 = vst [vmem:[%s177 + $0x190] sm:$0xff] %v5808
      %6122 = vst.msk [vmem:[%s177 + $0x198] sm:$0xff] %vm6071, %v5810
      %6123 = vst [vmem:[%s177 + $0x1a0] sm:$0xff] %v5814
      %6124 = vst.msk [vmem:[%s177 + $0x1a8] sm:$0xff] %vm6071, %v5816
      %6125 = vst [vmem:[%s177 + $0x1b0] sm:$0xff] %v5818
      %6126 = vst.msk [vmem:[%s177 + $0x1b8] sm:$0xff] %vm6071, %v5820
      %6127 = vst [vmem:[%s177 + $0x1c0] sm:$0xff] %v5824
      %6128 = vst.msk [vmem:[%s177 + $0x1c8] sm:$0xff] %vm6071, %v5826
      %6129 = vst [vmem:[%s177 + $0x1d0] sm:$0xff] %v5828
      %6130 = vst.msk [vmem:[%s177 + $0x1d8] sm:$0xff] %vm6071, %v5830
      %6131 = vst [vmem:[%s177 + $0x1e0] sm:$0xff] %v5834
      %6132 = vst.msk [vmem:[%s177 + $0x1e8] sm:$0xff] %vm6071, %v5836
      %6133 = vst [vmem:[%s177 + $0x1f0] sm:$0xff] %v5838
      %6134 = vst.msk [vmem:[%s177 + $0x1f8] sm:$0xff] %vm6071, %v5840
      %6135 = vst [vmem:[%s177 + $0x200] sm:$0xff] %v5844
      %6136 = vst.msk [vmem:[%s177 + $0x208] sm:$0xff] %vm6071, %v5846
      %6137 = vst [vmem:[%s177 + $0x210] sm:$0xff] %v5848
      %6138 = vst.msk [vmem:[%s177 + $0x218] sm:$0xff] %vm6071, %v5850
      %6139 = vst [vmem:[%s177 + $0x220] sm:$0xff] %v5854
      %6140 = vst.msk [vmem:[%s177 + $0x228] sm:$0xff] %vm6071, %v5856
      %6141 = vst [vmem:[%s177 + $0x230] sm:$0xff] %v5858
      %6142 = vst.msk [vmem:[%s177 + $0x238] sm:$0xff] %vm6071, %v5860
      %6143 = vst [vmem:[%s177 + $0x240] sm:$0xff] %v5864
      %6144 = vst.msk [vmem:[%s177 + $0x248] sm:$0xff] %vm6071, %v5866
      %6145 = vst [vmem:[%s177 + $0x250] sm:$0xff] %v5868
      %6146 = vst.msk [vmem:[%s177 + $0x258] sm:$0xff] %vm6071, %v5870
      %6147 = vst [vmem:[%s177 + $0x260] sm:$0xff] %v5874
      %6148 = vst.msk [vmem:[%s177 + $0x268] sm:$0xff] %vm6071, %v5876
      %6149 = vst [vmem:[%s177 + $0x270] sm:$0xff] %v5878
      %6150 = vst.msk [vmem:[%s177 + $0x278] sm:$0xff] %vm6071, %v5880
      %6151 = vst [vmem:[%s177 + $0x280] sm:$0xff] %v5884
      %6152 = vst.msk [vmem:[%s177 + $0x288] sm:$0xff] %vm6071, %v5886
      %6153 = vst [vmem:[%s177 + $0x290] sm:$0xff] %v5888
      %6154 = vst.msk [vmem:[%s177 + $0x298] sm:$0xff] %vm6071, %v5890
      %6155 = vst [vmem:[%s177 + $0x2a0] sm:$0xff] %v5894
      %6156 = vst.msk [vmem:[%s177 + $0x2a8] sm:$0xff] %vm6071, %v5896
      %6157 = vst [vmem:[%s177 + $0x2b0] sm:$0xff] %v5898
      %6158 = vst.msk [vmem:[%s177 + $0x2b8] sm:$0xff] %vm6071, %v5900
      %6159 = vst [vmem:[%s177 + $0x2c0] sm:$0xff] %v5904
      %6160 = vst.msk [vmem:[%s177 + $0x2c8] sm:$0xff] %vm6071, %v5906
      %6161 = vst [vmem:[%s177 + $0x2d0] sm:$0xff] %v5908
      %6162 = vst.msk [vmem:[%s177 + $0x2d8] sm:$0xff] %vm6071, %v5910
      %6163 = vst [vmem:[%s177 + $0x2e0] sm:$0xff] %v5914
      %6164 = vst.msk [vmem:[%s177 + $0x2e8] sm:$0xff] %vm6071, %v5916
      %6165 = vst [vmem:[%s177 + $0x2f0] sm:$0xff] %v5918
      %6166 = vst.msk [vmem:[%s177 + $0x2f8] sm:$0xff] %vm6071, %v5920
      %6167 = vst [vmem:[%s177 + $0x300] sm:$0xff] %v5924
      %6168 = vst.msk [vmem:[%s177 + $0x308] sm:$0xff] %vm6071, %v5926
      %6169 = vst [vmem:[%s177 + $0x310] sm:$0xff] %v5928
      %6170 = vst.msk [vmem:[%s177 + $0x318] sm:$0xff] %vm6071, %v5930
      %6171 = vst [vmem:[%s177 + $0x320] sm:$0xff] %v5934
      %6172 = vst.msk [vmem:[%s177 + $0x328] sm:$0xff] %vm6071, %v5936
      %6173 = vst [vmem:[%s177 + $0x330] sm:$0xff] %v5938
      %6174 = vst.msk [vmem:[%s177 + $0x338] sm:$0xff] %vm6071, %v5940
      %6175 = vst [vmem:[%s177 + $0x340] sm:$0xff] %v5944
      %6176 = vst.msk [vmem:[%s177 + $0x348] sm:$0xff] %vm6071, %v5946
      %6177 = vst [vmem:[%s177 + $0x350] sm:$0xff] %v5948
      %6178 = vst.msk [vmem:[%s177 + $0x358] sm:$0xff] %vm6071, %v5950
      %6179 = vst [vmem:[%s177 + $0x360] sm:$0xff] %v5954
      %6180 = vst.msk [vmem:[%s177 + $0x368] sm:$0xff] %vm6071, %v5956
      %6181 = vst [vmem:[%s177 + $0x370] sm:$0xff] %v5958
      %6182 = vst.msk [vmem:[%s177 + $0x378] sm:$0xff] %vm6071, %v5960
      %6183 = vst [vmem:[%s177 + $0x380] sm:$0xff] %v5964
      %6184 = vst.msk [vmem:[%s177 + $0x388] sm:$0xff] %vm6071, %v5966
      %6185 = vst [vmem:[%s177 + $0x390] sm:$0xff] %v5968
      %6186 = vst.msk [vmem:[%s177 + $0x398] sm:$0xff] %vm6071, %v5970
      %6187 = vst [vmem:[%s177 + $0x3a0] sm:$0xff] %v5974
      %6188 = vst.msk [vmem:[%s177 + $0x3a8] sm:$0xff] %vm6071, %v5976
      %6189 = vst [vmem:[%s177 + $0x3b0] sm:$0xff] %v5978
      %6190 = vst.msk [vmem:[%s177 + $0x3b8] sm:$0xff] %vm6071, %v5980
      %6191 = vst [vmem:[%s177 + $0x3c0] sm:$0xff] %v5984
      %6192 = vst.msk [vmem:[%s177 + $0x3c8] sm:$0xff] %vm6071, %v5986
      %6193 = vst [vmem:[%s177 + $0x3d0] sm:$0xff] %v5988
      %6194 = vst.msk [vmem:[%s177 + $0x3d8] sm:$0xff] %vm6071, %v5990
      %6195 = vst [vmem:[%s177 + $0x3e0] sm:$0xff] %v5994
      %6196 = vst.msk [vmem:[%s177 + $0x3e8] sm:$0xff] %vm6071, %v5996
      %6197 = vst [vmem:[%s177 + $0x3f0] sm:$0xff] %v5998
      %6198 = vst.msk [vmem:[%s177 + $0x3f8] sm:$0xff] %vm6071, %v6000
      %6199 = vst [vmem:[%s177 + $0x400] sm:$0xff] %v6004
      %6200 = vst.msk [vmem:[%s177 + $0x408] sm:$0xff] %vm6071, %v6006
      %6201 = vst [vmem:[%s177 + $0x410] sm:$0xff] %v6008
      %6202 = vst.msk [vmem:[%s177 + $0x418] sm:$0xff] %vm6071, %v6010
      %6203 = vst [vmem:[%s177 + $0x420] sm:$0xff] %v6014
      %6204 = vst.msk [vmem:[%s177 + $0x428] sm:$0xff] %vm6071, %v6016
      %6205 = vst [vmem:[%s177 + $0x430] sm:$0xff] %v6018
      %6206 = vst.msk [vmem:[%s177 + $0x438] sm:$0xff] %vm6071, %v6020
      %6207 = vst [vmem:[%s177 + $0x440] sm:$0xff] %v6024
      %6208 = vst.msk [vmem:[%s177 + $0x448] sm:$0xff] %vm6071, %v6026
      %6209 = vst [vmem:[%s177 + $0x450] sm:$0xff] %v6028
      %6210 = vst.msk [vmem:[%s177 + $0x458] sm:$0xff] %vm6071, %v6030
      %6211 = vst [vmem:[%s177 + $0x460] sm:$0xff] %v6034
      %6212 = vst.msk [vmem:[%s177 + $0x468] sm:$0xff] %vm6071, %v6036
      %6213 = vst [vmem:[%s177 + $0x470] sm:$0xff] %v6038
      %6214 = vst.msk [vmem:[%s177 + $0x478] sm:$0xff] %vm6071, %v6040
      %6215 = vst [vmem:[%s177 + $0x480] sm:$0xff] %v6044
      %6216 = vst.msk [vmem:[%s177 + $0x488] sm:$0xff] %vm6071, %v6046
      %6217 = vst [vmem:[%s177 + $0x490] sm:$0xff] %v6048
      %6218 = vst.msk [vmem:[%s177 + $0x498] sm:$0xff] %vm6071, %v6050
      %6219 = vst [vmem:[%s177 + $0x4a0] sm:$0xff] %v6054
      %6220 = vst.msk [vmem:[%s177 + $0x4a8] sm:$0xff] %vm6071, %v6056
      %6221 = vst [vmem:[%s177 + $0x4b0] sm:$0xff] %v6058
      %6222 = vst.msk [vmem:[%s177 + $0x4b8] sm:$0xff] %vm6071, %v6060
      %6223 = vst [vmem:[%s177 + $0x4c0] sm:$0xff] %v6064
      %6224 = vst.msk [vmem:[%s177 + $0x4c8] sm:$0xff] %vm6071, %v6066
      %s6225 = smul.u32 77, %s14
      %p6226 = scmp.lt.s32.totalorder %s6225, 153
      %s6227 = scalar_select %p6226, %s6225, 153
      %s6228 = smul.addr %s6227, 2
      %s6229 = smul.addr %s6228, 8
      %s6230 = scalar_lea.vmem %s3, %s6229
      // Predicated region
      $region33: #{tpu_custom_call.1} parent=31 // pred_check
        %p6231 = pneg %p100
      $region34: #{tpu_custom_call.1} parent=31 // pred_check_branch
        %6233 = sbr.rel (%p6231) target = $region36
      $region35: #{tpu_custom_call.1} parent=31 // pred_region
        %s6234 = smul.u32 77, %s14
      $region36: #{tpu_custom_call.1} parent=31 // pred_fallthru
        _
    $region32: #{tpu_custom_call.1} parent=5 // pred_fallthru
      _
    %p6235 = scmp.le.s32.totalorder 2, %s9
    // Predicated region
    $region37: #{tpu_custom_call.1} parent=5 // pred_check
      %p6236 = pneg %p6235
    $region38: #{tpu_custom_call.1} parent=5 // pred_check_branch
      %6238 = sbr.rel (%p6236) target = $region40
    $region39: #{tpu_custom_call.1} parent=5 // pred_region
      %s6239 = ssub.s32 %s9, 2
      // Predicated region
      $region41: #{tpu_custom_call.1} parent=39 // pred_check
        %p6240 = pneg %p106
      $region42: #{tpu_custom_call.1} parent=39 // pred_check_branch
        %6242 = sbr.rel (%p6240) target = $region44
      $region43: #{tpu_custom_call.1} parent=39 // pred_region
        %s6243 = smul.u32 77, %s15
        %p6244 = scmp.lt.s32.totalorder %s6243, 153
        %s6245 = scalar_select %p6244, %s6243, 153
        %s6246 = smul.addr %s6245, 2
        %s6247 = smul.addr %s6246, 8
        %s6248 = scalar_lea.vmem %s3, %s6247
      $region44: #{tpu_custom_call.1} parent=39 // pred_fallthru
        _
    $region40: #{tpu_custom_call.1} parent=5 // pred_fallthru
      _
  $region6: #{tpu_custom_call.1} parent=0 // loop_footer
    %s13 = sadd.s32 1, %s9
  $region7: #{tpu_custom_call.1} parent=0 // loop_footer_branch
    %8 = sbr.rel target = $region3
  $region8: #{tpu_custom_call.1} parent=0 // loop_exit
    _

</llo_original>
